<compile_context>
chip_gen: v7x
topology: tpu7x:2x2x1
jax: 0.10.0
libtpu: 0.0.40
codegen_flags: <defaults>
</compile_context>

<pallas_src>
import functools

import jax
import jax.numpy as jnp
import numpy as np
from jax.experimental import pallas as pl
from jax.experimental.pallas import tpu as pltpu

LRELU_SLOPE = 0.2  # TODO(synk): verify against the real IAM definition.


# ---------------------------------------------------------------------------
# In-kernel helpers
# ---------------------------------------------------------------------------
def _f32_dot(a, b):
    """~f32-accurate MXU matmul via a Dekker bf16 hi/lo split of both operands.

    Robust to the MXU's default f32 handling: exact-ish if the lowering runs
    full-precision f32, ~2^-16 relative if it rounds inputs to bf16."""
    a_hi = a.astype(jnp.bfloat16).astype(jnp.float32)
    a_lo = a - a_hi
    b_hi = b.astype(jnp.bfloat16).astype(jnp.float32)
    b_lo = b - b_hi
    d = functools.partial(jnp.dot, preferred_element_type=jnp.float32)
    return d(a_hi, b_hi) + d(a_lo, b_hi) + d(a_hi, b_lo)


def _perm_dot_r(data, perm):
    """data @ perm where perm holds only {0, 0.5, 1} (exact in bf16):
    only the data operand needs the hi/lo split."""
    hi = data.astype(jnp.bfloat16).astype(jnp.float32)
    lo = data - hi
    d = functools.partial(jnp.dot, preferred_element_type=jnp.float32)
    return d(hi, perm) + d(lo, perm)


def _perm_dot_l(perm, data):
    """perm @ data, same exactness argument as _perm_dot_r."""
    hi = data.astype(jnp.bfloat16).astype(jnp.float32)
    lo = data - hi
    d = functools.partial(jnp.dot, preferred_element_type=jnp.float32)
    return d(perm, hi) + d(perm, lo)


def _shift_flat(xf, s, hw):
    """result[:, p] = xf[:, p + s] when 0 <= p + s < hw, else 0 (static s)."""
    if s == 0:
        return xf
    rows = xf.shape[0]
    pad = jnp.zeros((rows, abs(s)), xf.dtype)
    if s > 0:
        return jnp.concatenate([xf[:, s:], pad], axis=1)
    return jnp.concatenate([pad, xf[:, :hw + s]], axis=1)


# ---------------------------------------------------------------------------
# Fused forward kernel: IAM chain + tail conv + Haar IWT + 2x interleave
# ---------------------------------------------------------------------------
def _upfrg3_kernel(xl_ref, xlh_ref, xhl_ref, xhh_ref, wiam_ref, wtail_ref,
                   pe_ref, po_ref, re_ref, ro_ref, up_ref, l1_ref,
                   *, c, h, w, n_blocks):
    hw = h * w
    xf = xl_ref[0].astype(jnp.float32)                     # (c, h*w) flat

    # W-halo masks for the flat-layout shifts (shared by every conv).
    col = jax.lax.broadcasted_iota(jnp.int32, (1, hw), 1) % w
    not_first_col = col >= 1             # valid lanes when dx == -1
    not_last_col = col < (w - 1)         # valid lanes when dx == +1
    ones_row = jnp.ones((1, hw), jnp.float32)              # folded-bias input

    def conv3x3(src, wmat):
        # im2col in the flat layout: 9 shifted+masked copies + a ones row,
        # then ONE MXU matmul (cout, 9*cin+1) @ (9*cin+1, h*w).
        parts = []
        for ky in range(3):
            dy = ky - 1
            for kx in range(3):
                dx = kx - 1
                shifted = _shift_flat(src, dy * w + dx, hw)
                if dx == -1:
                    shifted = jnp.where(not_first_col, shifted, 0.0)
                elif dx == 1:
                    shifted = jnp.where(not_last_col, shifted, 0.0)
                parts.append(shifted)
        parts.append(ones_row)
        patches = jnp.concatenate(parts, axis=0)           # (9*cin + 1, h*w)
        return _f32_dot(wmat, patches)                     # (cout, h*w)

    # ---- fused IAM chain: x_l never leaves VMEM between blocks -------------
    for blk in range(n_blocks):
        hid = conv3x3(xf, wiam_ref[blk, 0])
        hid = jnp.where(hid > 0, hid, LRELU_SLOPE * hid)   # LeakyReLU(0.2)
        xf = xf + conv3x3(hid, wiam_ref[blk, 1])

    # ---- tail conv (dim -> 3), written lane-flat (256 lanes) ---------------
    l1_ref[0] = conv3x3(xf, wtail_ref[...]).astype(l1_ref.dtype)

    # ---- Haar IWT + 2x interleave via hoisted one-hot spread matmuls -------
    # Flat -> spatial for the post-chain x_l via guaranteed-lowerable slices
    # (a lane-dim-splitting reshape is layout-fragile on Mosaic).
    x1 = jnp.stack([xf[:, y * w:(y + 1) * w] for y in range(h)], axis=1)
    x1 = x1.reshape(c * h, w)
    x2 = xlh_ref[0].astype(jnp.float32).reshape(c * h, w)
    x3 = xhl_ref[0].astype(jnp.float32).reshape(c * h, w)
    x4 = xhh_ref[0].astype(jnp.float32).reshape(c * h, w)

    # MWCNN IWT convention; the 0.5 Haar scale is folded into pe/po.
    sub_ee = x1 - x2 - x3 + x4           # -> out[0::2, 0::2]
    sub_oe = x1 - x2 + x3 - x4           # -> out[1::2, 0::2]
    sub_eo = x1 + x2 - x3 - x4           # -> out[0::2, 1::2]
    sub_oo = x1 + x2 + x3 + x4           # -> out[1::2, 1::2]

    pe = pe_ref[...]
    po = po_ref[...]
    even_rows = _perm_dot_r(sub_ee, pe) + _perm_dot_r(sub_eo, po)   # (c*h, 2w)
    odd_rows = _perm_dot_r(sub_oe, pe) + _perm_dot_r(sub_oo, po)    # (c*h, 2w)
    out = (_perm_dot_l(re_ref[...], even_rows)
           + _perm_dot_l(ro_ref[...], odd_rows))                    # (c*2h, 2w)
    up_ref[0] = out.astype(up_ref.dtype)


# ---------------------------------------------------------------------------
# Wrapper
# ---------------------------------------------------------------------------
def _conv_mat(w, b):
    """(3,3,cin,cout) HWIO weights + bias -> (cout, 9*cin+1) im2col matrix."""
    cout = w.shape[-1]
    wm = w.reshape(-1, cout).T                              # (cout, 9*cin)
    return jnp.concatenate([wm, b.reshape(cout, 1)], axis=1).astype(jnp.float32)


def _spread_matrices(c, h, w):
    """One-hot 2x-interleave spread matrices (Haar 0.5 folded into pe/po),
    built once per forward in the wrapper (hoisted out of the grid body)."""
    pe = np.zeros((w, 2 * w), np.float32)
    po = np.zeros((w, 2 * w), np.float32)
    pe[np.arange(w), 2 * np.arange(w)] = 0.5
    po[np.arange(w), 2 * np.arange(w) + 1] = 0.5
    src = np.arange(c * h)
    dst = (src // h) * (2 * h) + 2 * (src % h)
    re = np.zeros((2 * c * h, c * h), np.float32)           # block-diagonal
    ro = np.zeros((2 * c * h, c * h), np.float32)
    re[dst, src] = 1.0
    ro[dst + 1, src] = 1.0
    return jnp.asarray(pe), jnp.asarray(po), jnp.asarray(re), jnp.asarray(ro)


def upfrg3_forward(params, x_l, x_h):
    n, c, h, w = x_l.shape
    hw = h * w
    n_blocks = len(params["iam"])
    kdim = 9 * c + 1

    w_iam = jnp.stack([jnp.stack([_conv_mat(w1, b1), _conv_mat(w2, b2)])
                       for (w1, b1, w2, b2) in params["iam"]])  # (nb,2,c,kdim)
    w_tail = _conv_mat(params["conv_w"], params["conv_b"])      # (3, kdim)
    pe, po, re, ro = _spread_matrices(c, h, w)

    x_l_flat = x_l.astype(jnp.float32).reshape(n, c, hw)   # free metadata reshape
    x_h = x_h.astype(jnp.float32)

    up_flat, l1_flat = pl.pallas_call(
        functools.partial(_upfrg3_kernel, c=c, h=h, w=w, n_blocks=n_blocks),
        out_shape=(
            jax.ShapeDtypeStruct((n, 2 * c * h, 2 * w), jnp.float32),
            jax.ShapeDtypeStruct((n, 3, hw), jnp.float32),
        ),
        grid=(n,),
        in_specs=[
            pl.BlockSpec((1, c, hw), lambda i: (i, 0, 0)),                   # x_l
            pl.BlockSpec((1, c, h, w), lambda i: (i, 0, 0, 0)),              # LH
            pl.BlockSpec((1, c, h, w), lambda i, n=n: (i + n, 0, 0, 0)),     # HL
            pl.BlockSpec((1, c, h, w), lambda i, n=n: (i + 2 * n, 0, 0, 0)), # HH
            pl.BlockSpec((n_blocks, 2, c, kdim), lambda i: (0, 0, 0, 0)),    # IAM w
            pl.BlockSpec((3, kdim), lambda i: (0, 0)),                       # tail w
            pl.BlockSpec((w, 2 * w), lambda i: (0, 0)),                      # P_even
            pl.BlockSpec((w, 2 * w), lambda i: (0, 0)),                      # P_odd
            pl.BlockSpec((2 * c * h, c * h), lambda i: (0, 0)),              # R_even
            pl.BlockSpec((2 * c * h, c * h), lambda i: (0, 0)),              # R_odd
        ],
        out_specs=(
            pl.BlockSpec((1, 2 * c * h, 2 * w), lambda i: (i, 0, 0)),
            pl.BlockSpec((1, 3, hw), lambda i: (i, 0, 0)),
        ),
        compiler_params=pltpu.CompilerParams(
            dimension_semantics=("parallel",)),
    )(x_l_flat, x_h, x_h, x_h, w_iam, w_tail, pe, po, re, ro)

    # Free row-major metadata reshapes back to NCHW.
    x_up = up_flat.reshape(n, c, 2 * h, 2 * w)
    x_l1 = l1_flat.reshape(n, 3, h, w)
    return x_up, x_l1


def init_params(key, dim, n_l_blocks=1):
    iam = []
    for _ in range(n_l_blocks):
        key, k1, k2, k3, k4 = jax.random.split(key, 5)
        iam.append((0.1 * jax.random.normal(k1, (3, 3, dim, dim), jnp.float32),
                    0.1 * jax.random.normal(k2, (dim,), jnp.float32),
                    0.1 * jax.random.normal(k3, (3, 3, dim, dim), jnp.float32),
                    0.1 * jax.random.normal(k4, (dim,), jnp.float32)))
    key, kw, kb = jax.random.split(key, 3)
    return {
        "iam": iam,
        "conv_w": 0.1 * jax.random.normal(kw, (3, 3, dim, 3), jnp.float32),
        "conv_b": 0.1 * jax.random.normal(kb, (3,), jnp.float32),
    }


# ---------------------------------------------------------------------------
# Pure-JAX reference (numerical sanity check)
# ---------------------------------------------------------------------------
def _conv3x3_ref(x, w, b):
    y = jax.lax.conv_general_dilated(
        x, w, window_strides=(1, 1), padding="SAME",
        dimension_numbers=("NCHW", "HWIO", "NCHW"),
        precision=jax.lax.Precision.HIGHEST)
    return y + b.reshape(1, -1, 1, 1)


def _iwt_ref(x):
    n, c4, h, w = x.shape
    c = c4 // 4
    x1 = x[:, 0 * c:1 * c] / 2
    x2 = x[:, 1 * c:2 * c] / 2
    x3 = x[:, 2 * c:3 * c] / 2
    x4 = x[:, 3 * c:4 * c] / 2
    out = jnp.zeros((n, c, 2 * h, 2 * w), x.dtype)
    out = out.at[:, :, 0::2, 0::2].set(x1 - x2 - x3 + x4)
    out = out.at[:, :, 1::2, 0::2].set(x1 - x2 + x3 - x4)
    out = out.at[:, :, 0::2, 1::2].set(x1 + x2 - x3 - x4)
    out = out.at[:, :, 1::2, 1::2].set(x1 + x2 + x3 + x4)
    return out


def upfrg3_reference(params, x_l, x_h):
    for (w1, b1, w2, b2) in params["iam"]:
        hmid = _conv3x3_ref(x_l, w1, b1)
        hmid = jnp.where(hmid > 0, hmid, LRELU_SLOPE * hmid)
        x_l = x_l + _conv3x3_ref(hmid, w2, b2)
    x_l1 = _conv3x3_ref(x_l, params["conv_w"], params["conv_b"])
    n = x_l.shape[0]
    x_cat = jnp.concatenate(
        [x_l, x_h[:n], x_h[n:2 * n], x_h[2 * n:3 * n]], axis=1)
    return _iwt_ref(x_cat), x_l1


if __name__ == "__main__":
    N, DIM, H, W = 2, 4, 16, 16
    N_L_BLOCKS = 2            # exercises the fused multi-block IAM chain
    key = jax.random.PRNGKey(0)
    kp, kl, kh = jax.random.split(key, 3)

    params = init_params(kp, DIM, n_l_blocks=N_L_BLOCKS)
    x_l = jax.random.normal(kl, (N, DIM, H, W), jnp.float32)        # NCHW
    x_h = jax.random.normal(kh, (3 * N, DIM, H, W), jnp.float32)    # NCHW

    x_up, x_l1 = jax.jit(upfrg3_forward)(params, x_l, x_h)
    jax.block_until_ready((x_up, x_l1))

    assert x_up.shape == (N, DIM, 2 * H, 2 * W), x_up.shape
    assert x_l1.shape == (N, 3, H, W), x_l1.shape

    ref_up, ref_l1 = jax.jit(upfrg3_reference)(params, x_l, x_h)
    # The convs run on the MXU at bf16x2 (Dekker hi/lo split) precision
    # (~2^-16 relative), so the absolute tolerance is set slightly above a
    # pure-f32 VPU implementation's.
    np.testing.assert_allclose(np.asarray(x_l1), np.asarray(ref_l1),
                               rtol=1e-3, atol=5e-4)
    np.testing.assert_allclose(np.asarray(x_up), np.asarray(ref_up),
                               rtol=1e-3, atol=5e-4)
    print("KERNEL_OK")
</pallas_src>

<mosaic_0001>
module attributes {stable_mosaic.version = 11 : i64} {
  func.func @_upfrg3_kernel(%arg0: i32, %arg1: memref<1x4x256xf32, #tpu.memory_space<vmem>>, %arg2: memref<1x4x16x16xf32, #tpu.memory_space<vmem>>, %arg3: memref<1x4x16x16xf32, #tpu.memory_space<vmem>>, %arg4: memref<1x4x16x16xf32, #tpu.memory_space<vmem>>, %arg5: memref<2x2x4x37xf32, #tpu.memory_space<vmem>>, %arg6: memref<3x37xf32, #tpu.memory_space<vmem>>, %arg7: memref<16x32xf32, #tpu.memory_space<vmem>>, %arg8: memref<16x32xf32, #tpu.memory_space<vmem>>, %arg9: memref<128x64xf32, #tpu.memory_space<vmem>>, %arg10: memref<128x64xf32, #tpu.memory_space<vmem>>, %arg11: memref<1x128x32xf32, #tpu.memory_space<vmem>>, %arg12: memref<1x3x256xf32, #tpu.memory_space<vmem>>) attributes {dimension_semantics = [#tpu.dimension_semantics<parallel>], iteration_bounds = array<i64: 2>, scalar_prefetch = 0 : i64, scratch_operands = 0 : i64, tpu.core_type = #tpu.core_type<tc>, window_params = [{transform_indices = @transform_0, window_bounds = array<i64: 1, 4, 256>}, {transform_indices = @transform_1, window_bounds = array<i64: 1, 4, 16, 16>}, {transform_indices = @transform_2, window_bounds = array<i64: 1, 4, 16, 16>}, {transform_indices = @transform_3, window_bounds = array<i64: 1, 4, 16, 16>}, {pipeline_mode = #tpu.pipeline_mode<synchronous>, transform_indices = @transform_4, window_bounds = array<i64: 2, 2, 4, 37>}, {pipeline_mode = #tpu.pipeline_mode<synchronous>, transform_indices = @transform_5, window_bounds = array<i64: 3, 37>}, {pipeline_mode = #tpu.pipeline_mode<synchronous>, transform_indices = @transform_6, window_bounds = array<i64: 16, 32>}, {pipeline_mode = #tpu.pipeline_mode<synchronous>, transform_indices = @transform_7, window_bounds = array<i64: 16, 32>}, {pipeline_mode = #tpu.pipeline_mode<synchronous>, transform_indices = @transform_8, window_bounds = array<i64: 128, 64>}, {pipeline_mode = #tpu.pipeline_mode<synchronous>, transform_indices = @transform_9, window_bounds = array<i64: 128, 64>}, {transform_indices = @transform_10, window_bounds = array<i64: 1, 128, 32>}, {transform_indices = @transform_11, window_bounds = array<i64: 1, 3, 256>}]} {
    %c0 = arith.constant 0 : index
    %c0_0 = arith.constant 0 : index
    %c0_1 = arith.constant 0 : index
    %0 = vector.load %arg1[%c0, %c0_0, %c0_1] : memref<1x4x256xf32, #tpu.memory_space<vmem>>, vector<1x4x256xf32>
    %1 = vector.shape_cast %0 : vector<1x4x256xf32> to vector<4x256xf32>
    %2 = tpu.iota {dimensions = array<i32: 1>} : vector<1x256xi32>
    %c16_i32 = arith.constant 16 : i32
    %c0_i32 = arith.constant 0 : i32
    %3 = arith.cmpi eq, %c16_i32, %c0_i32 : i32
    %c1_i32 = arith.constant 1 : i32
    %4 = arith.select %3, %c1_i32, %c16_i32 : i32
    %5 = vector.broadcast %4 : i32 to vector<1x256xi32>
    %6 = arith.remsi %2, %5 : vector<1x256xi32>
    %c0_i32_2 = arith.constant 0 : i32
    %7 = vector.broadcast %c0_i32_2 : i32 to vector<1x256xi32>
    %8 = arith.cmpi ne, %6, %7 : vector<1x256xi32>
    %c0_i32_3 = arith.constant 0 : i32
    %9 = vector.broadcast %c0_i32_3 : i32 to vector<1x256xi32>
    %10 = arith.cmpi slt, %6, %9 : vector<1x256xi32>
    %c0_i32_4 = arith.constant 0 : i32
    %11 = arith.cmpi slt, %4, %c0_i32_4 : i32
    %12 = vector.broadcast %11 : i1 to vector<1x256xi1>
    %13 = vector.broadcast %12 : vector<1x256xi1> to vector<1x256xi1>
    %14 = arith.xori %10, %13 : vector<1x256xi1>
    %15 = arith.andi %14, %8 : vector<1x256xi1>
    %16 = vector.broadcast %4 : i32 to vector<1x256xi32>
    %17 = arith.addi %6, %16 : vector<1x256xi32>
    %18 = arith.select %15, %17, %6 : vector<1x256xi1>, vector<1x256xi32>
    %c1_i32_5 = arith.constant 1 : i32
    %19 = vector.broadcast %c1_i32_5 : i32 to vector<1x256xi32>
    %20 = arith.cmpi sge, %18, %19 : vector<1x256xi32>
    %c15_i32 = arith.constant 15 : i32
    %21 = vector.broadcast %c15_i32 : i32 to vector<1x256xi32>
    %22 = arith.cmpi slt, %18, %21 : vector<1x256xi32>
    %cst = arith.constant 1.000000e+00 : f32
    %23 = vector.broadcast %cst : f32 to vector<1x256xf32>
    %c0_6 = arith.constant 0 : index
    %c0_7 = arith.constant 0 : index
    %c0_8 = arith.constant 0 : index
    %c0_9 = arith.constant 0 : index
    %24 = vector.load %arg5[%c0_6, %c0_7, %c0_8, %c0_9] : memref<2x2x4x37xf32, #tpu.memory_space<vmem>>, vector<1x1x4x37xf32>
    %25 = vector.shape_cast %24 : vector<1x1x4x37xf32> to vector<4x37xf32>
    %cst_10 = arith.constant 0.000000e+00 : f32
    %26 = vector.broadcast %cst_10 : f32 to vector<4x17xf32>
    %27 = vector.extract_strided_slice %1 {offsets = [0, 0], sizes = [4, 239], strides = [1, 1]} : vector<4x256xf32> to vector<4x239xf32>
    %28 = tpu.concatenate %26, %27 in 1 : vector<4x17xf32>, vector<4x239xf32> -> vector<4x256xf32>
    %cst_11 = arith.constant 0.000000e+00 : f32
    %29 = vector.shape_cast %20 : vector<1x256xi1> to vector<1x256xi1>
    %30 = vector.broadcast %29 : vector<1x256xi1> to vector<4x256xi1>
    %31 = vector.broadcast %cst_11 : f32 to vector<4x256xf32>
    %32 = arith.select %30, %28, %31 : vector<4x256xi1>, vector<4x256xf32>
    %cst_12 = arith.constant 0.000000e+00 : f32
    %33 = vector.broadcast %cst_12 : f32 to vector<4x16xf32>
    %34 = vector.extract_strided_slice %1 {offsets = [0, 0], sizes = [4, 240], strides = [1, 1]} : vector<4x256xf32> to vector<4x240xf32>
    %35 = tpu.concatenate %33, %34 in 1 : vector<4x16xf32>, vector<4x240xf32> -> vector<4x256xf32>
    %cst_13 = arith.constant 0.000000e+00 : f32
    %36 = vector.broadcast %cst_13 : f32 to vector<4x15xf32>
    %37 = vector.extract_strided_slice %1 {offsets = [0, 0], sizes = [4, 241], strides = [1, 1]} : vector<4x256xf32> to vector<4x241xf32>
    %38 = tpu.concatenate %36, %37 in 1 : vector<4x15xf32>, vector<4x241xf32> -> vector<4x256xf32>
    %cst_14 = arith.constant 0.000000e+00 : f32
    %39 = vector.shape_cast %22 : vector<1x256xi1> to vector<1x256xi1>
    %40 = vector.broadcast %39 : vector<1x256xi1> to vector<4x256xi1>
    %41 = vector.broadcast %cst_14 : f32 to vector<4x256xf32>
    %42 = arith.select %40, %38, %41 : vector<4x256xi1>, vector<4x256xf32>
    %cst_15 = arith.constant 0.000000e+00 : f32
    %43 = vector.broadcast %cst_15 : f32 to vector<4x1xf32>
    %44 = vector.extract_strided_slice %1 {offsets = [0, 0], sizes = [4, 255], strides = [1, 1]} : vector<4x256xf32> to vector<4x255xf32>
    %45 = tpu.concatenate %43, %44 in 1 : vector<4x1xf32>, vector<4x255xf32> -> vector<4x256xf32>
    %cst_16 = arith.constant 0.000000e+00 : f32
    %46 = vector.shape_cast %20 : vector<1x256xi1> to vector<1x256xi1>
    %47 = vector.broadcast %46 : vector<1x256xi1> to vector<4x256xi1>
    %48 = vector.broadcast %cst_16 : f32 to vector<4x256xf32>
    %49 = arith.select %47, %45, %48 : vector<4x256xi1>, vector<4x256xf32>
    %cst_17 = arith.constant 0.000000e+00 : f32
    %50 = vector.broadcast %cst_17 : f32 to vector<4x1xf32>
    %51 = vector.extract_strided_slice %1 {offsets = [0, 1], sizes = [4, 255], strides = [1, 1]} : vector<4x256xf32> to vector<4x255xf32>
    %52 = tpu.concatenate %51, %50 in 1 : vector<4x255xf32>, vector<4x1xf32> -> vector<4x256xf32>
    %cst_18 = arith.constant 0.000000e+00 : f32
    %53 = vector.shape_cast %22 : vector<1x256xi1> to vector<1x256xi1>
    %54 = vector.broadcast %53 : vector<1x256xi1> to vector<4x256xi1>
    %55 = vector.broadcast %cst_18 : f32 to vector<4x256xf32>
    %56 = arith.select %54, %52, %55 : vector<4x256xi1>, vector<4x256xf32>
    %cst_19 = arith.constant 0.000000e+00 : f32
    %57 = vector.broadcast %cst_19 : f32 to vector<4x15xf32>
    %58 = vector.extract_strided_slice %1 {offsets = [0, 15], sizes = [4, 241], strides = [1, 1]} : vector<4x256xf32> to vector<4x241xf32>
    %59 = tpu.concatenate %58, %57 in 1 : vector<4x241xf32>, vector<4x15xf32> -> vector<4x256xf32>
    %cst_20 = arith.constant 0.000000e+00 : f32
    %60 = vector.shape_cast %20 : vector<1x256xi1> to vector<1x256xi1>
    %61 = vector.broadcast %60 : vector<1x256xi1> to vector<4x256xi1>
    %62 = vector.broadcast %cst_20 : f32 to vector<4x256xf32>
    %63 = arith.select %61, %59, %62 : vector<4x256xi1>, vector<4x256xf32>
    %cst_21 = arith.constant 0.000000e+00 : f32
    %64 = vector.broadcast %cst_21 : f32 to vector<4x16xf32>
    %65 = vector.extract_strided_slice %1 {offsets = [0, 16], sizes = [4, 240], strides = [1, 1]} : vector<4x256xf32> to vector<4x240xf32>
    %66 = tpu.concatenate %65, %64 in 1 : vector<4x240xf32>, vector<4x16xf32> -> vector<4x256xf32>
    %cst_22 = arith.constant 0.000000e+00 : f32
    %67 = vector.broadcast %cst_22 : f32 to vector<4x17xf32>
    %68 = vector.extract_strided_slice %1 {offsets = [0, 17], sizes = [4, 239], strides = [1, 1]} : vector<4x256xf32> to vector<4x239xf32>
    %69 = tpu.concatenate %68, %67 in 1 : vector<4x239xf32>, vector<4x17xf32> -> vector<4x256xf32>
    %cst_23 = arith.constant 0.000000e+00 : f32
    %70 = vector.shape_cast %22 : vector<1x256xi1> to vector<1x256xi1>
    %71 = vector.broadcast %70 : vector<1x256xi1> to vector<4x256xi1>
    %72 = vector.broadcast %cst_23 : f32 to vector<4x256xf32>
    %73 = arith.select %71, %69, %72 : vector<4x256xi1>, vector<4x256xf32>
    %74 = tpu.concatenate %32, %35, %42, %49, %1, %56, %63, %66, %73, %23 in 0 : vector<4x256xf32>, vector<4x256xf32>, vector<4x256xf32>, vector<4x256xf32>, vector<4x256xf32>, vector<4x256xf32>, vector<4x256xf32>, vector<4x256xf32>, vector<4x256xf32>, vector<1x256xf32> -> vector<37x256xf32>
    %75 = arith.truncf %25 : vector<4x37xf32> to vector<4x37xbf16>
    %76 = arith.extf %75 : vector<4x37xbf16> to vector<4x37xf32>
    %77 = arith.subf %25, %76 : vector<4x37xf32>
    %78 = arith.truncf %74 : vector<37x256xf32> to vector<37x256xbf16>
    %79 = arith.extf %78 : vector<37x256xbf16> to vector<37x256xf32>
    %80 = arith.subf %74, %79 : vector<37x256xf32>
    %cst_24 = arith.constant dense<0.000000e+00> : vector<4x256xf32>
    %81 = tpu.matmul %76, %79, %cst_24 {dimension_numbers = #tpu.dot_dimension_numbers<[1], [0], [0], [1], [0, 0, 1, 1], [], []>} : vector<4x37xf32>, vector<37x256xf32>, vector<4x256xf32> -> vector<4x256xf32>
    %cst_25 = arith.constant dense<0.000000e+00> : vector<4x256xf32>
    %82 = tpu.matmul %77, %79, %cst_25 {dimension_numbers = #tpu.dot_dimension_numbers<[1], [0], [0], [1], [0, 0, 1, 1], [], []>} : vector<4x37xf32>, vector<37x256xf32>, vector<4x256xf32> -> vector<4x256xf32>
    %83 = arith.addf %81, %82 : vector<4x256xf32>
    %cst_26 = arith.constant dense<0.000000e+00> : vector<4x256xf32>
    %84 = tpu.matmul %76, %80, %cst_26 {dimension_numbers = #tpu.dot_dimension_numbers<[1], [0], [0], [1], [0, 0, 1, 1], [], []>} : vector<4x37xf32>, vector<37x256xf32>, vector<4x256xf32> -> vector<4x256xf32>
    %85 = arith.addf %83, %84 : vector<4x256xf32>
    %cst_27 = arith.constant 0.000000e+00 : f32
    %86 = vector.broadcast %cst_27 : f32 to vector<4x256xf32>
    %87 = arith.cmpf ogt, %85, %86 : vector<4x256xf32>
    %cst_28 = arith.constant 2.000000e-01 : f32
    %88 = vector.broadcast %cst_28 : f32 to vector<4x256xf32>
    %89 = arith.mulf %88, %85 : vector<4x256xf32>
    %90 = arith.select %87, %85, %89 : vector<4x256xi1>, vector<4x256xf32>
    %c0_29 = arith.constant 0 : index
    %c1 = arith.constant 1 : index
    %c0_30 = arith.constant 0 : index
    %c0_31 = arith.constant 0 : index
    %91 = vector.load %arg5[%c0_29, %c1, %c0_30, %c0_31] : memref<2x2x4x37xf32, #tpu.memory_space<vmem>>, vector<1x1x4x37xf32>
    %92 = vector.shape_cast %91 : vector<1x1x4x37xf32> to vector<4x37xf32>
    %cst_32 = arith.constant 0.000000e+00 : f32
    %93 = vector.broadcast %cst_32 : f32 to vector<4x17xf32>
    %94 = vector.extract_strided_slice %90 {offsets = [0, 0], sizes = [4, 239], strides = [1, 1]} : vector<4x256xf32> to vector<4x239xf32>
    %95 = tpu.concatenate %93, %94 in 1 : vector<4x17xf32>, vector<4x239xf32> -> vector<4x256xf32>
    %cst_33 = arith.constant 0.000000e+00 : f32
    %96 = vector.shape_cast %20 : vector<1x256xi1> to vector<1x256xi1>
    %97 = vector.broadcast %96 : vector<1x256xi1> to vector<4x256xi1>
    %98 = vector.broadcast %cst_33 : f32 to vector<4x256xf32>
    %99 = arith.select %97, %95, %98 : vector<4x256xi1>, vector<4x256xf32>
    %cst_34 = arith.constant 0.000000e+00 : f32
    %100 = vector.broadcast %cst_34 : f32 to vector<4x16xf32>
    %101 = vector.extract_strided_slice %90 {offsets = [0, 0], sizes = [4, 240], strides = [1, 1]} : vector<4x256xf32> to vector<4x240xf32>
    %102 = tpu.concatenate %100, %101 in 1 : vector<4x16xf32>, vector<4x240xf32> -> vector<4x256xf32>
    %cst_35 = arith.constant 0.000000e+00 : f32
    %103 = vector.broadcast %cst_35 : f32 to vector<4x15xf32>
    %104 = vector.extract_strided_slice %90 {offsets = [0, 0], sizes = [4, 241], strides = [1, 1]} : vector<4x256xf32> to vector<4x241xf32>
    %105 = tpu.concatenate %103, %104 in 1 : vector<4x15xf32>, vector<4x241xf32> -> vector<4x256xf32>
    %cst_36 = arith.constant 0.000000e+00 : f32
    %106 = vector.shape_cast %22 : vector<1x256xi1> to vector<1x256xi1>
    %107 = vector.broadcast %106 : vector<1x256xi1> to vector<4x256xi1>
    %108 = vector.broadcast %cst_36 : f32 to vector<4x256xf32>
    %109 = arith.select %107, %105, %108 : vector<4x256xi1>, vector<4x256xf32>
    %cst_37 = arith.constant 0.000000e+00 : f32
    %110 = vector.broadcast %cst_37 : f32 to vector<4x1xf32>
    %111 = vector.extract_strided_slice %90 {offsets = [0, 0], sizes = [4, 255], strides = [1, 1]} : vector<4x256xf32> to vector<4x255xf32>
    %112 = tpu.concatenate %110, %111 in 1 : vector<4x1xf32>, vector<4x255xf32> -> vector<4x256xf32>
    %cst_38 = arith.constant 0.000000e+00 : f32
    %113 = vector.shape_cast %20 : vector<1x256xi1> to vector<1x256xi1>
    %114 = vector.broadcast %113 : vector<1x256xi1> to vector<4x256xi1>
    %115 = vector.broadcast %cst_38 : f32 to vector<4x256xf32>
    %116 = arith.select %114, %112, %115 : vector<4x256xi1>, vector<4x256xf32>
    %cst_39 = arith.constant 0.000000e+00 : f32
    %117 = vector.broadcast %cst_39 : f32 to vector<4x1xf32>
    %118 = vector.extract_strided_slice %90 {offsets = [0, 1], sizes = [4, 255], strides = [1, 1]} : vector<4x256xf32> to vector<4x255xf32>
    %119 = tpu.concatenate %118, %117 in 1 : vector<4x255xf32>, vector<4x1xf32> -> vector<4x256xf32>
    %cst_40 = arith.constant 0.000000e+00 : f32
    %120 = vector.shape_cast %22 : vector<1x256xi1> to vector<1x256xi1>
    %121 = vector.broadcast %120 : vector<1x256xi1> to vector<4x256xi1>
    %122 = vector.broadcast %cst_40 : f32 to vector<4x256xf32>
    %123 = arith.select %121, %119, %122 : vector<4x256xi1>, vector<4x256xf32>
    %cst_41 = arith.constant 0.000000e+00 : f32
    %124 = vector.broadcast %cst_41 : f32 to vector<4x15xf32>
    %125 = vector.extract_strided_slice %90 {offsets = [0, 15], sizes = [4, 241], strides = [1, 1]} : vector<4x256xf32> to vector<4x241xf32>
    %126 = tpu.concatenate %125, %124 in 1 : vector<4x241xf32>, vector<4x15xf32> -> vector<4x256xf32>
    %cst_42 = arith.constant 0.000000e+00 : f32
    %127 = vector.shape_cast %20 : vector<1x256xi1> to vector<1x256xi1>
    %128 = vector.broadcast %127 : vector<1x256xi1> to vector<4x256xi1>
    %129 = vector.broadcast %cst_42 : f32 to vector<4x256xf32>
    %130 = arith.select %128, %126, %129 : vector<4x256xi1>, vector<4x256xf32>
    %cst_43 = arith.constant 0.000000e+00 : f32
    %131 = vector.broadcast %cst_43 : f32 to vector<4x16xf32>
    %132 = vector.extract_strided_slice %90 {offsets = [0, 16], sizes = [4, 240], strides = [1, 1]} : vector<4x256xf32> to vector<4x240xf32>
    %133 = tpu.concatenate %132, %131 in 1 : vector<4x240xf32>, vector<4x16xf32> -> vector<4x256xf32>
    %cst_44 = arith.constant 0.000000e+00 : f32
    %134 = vector.broadcast %cst_44 : f32 to vector<4x17xf32>
    %135 = vector.extract_strided_slice %90 {offsets = [0, 17], sizes = [4, 239], strides = [1, 1]} : vector<4x256xf32> to vector<4x239xf32>
    %136 = tpu.concatenate %135, %134 in 1 : vector<4x239xf32>, vector<4x17xf32> -> vector<4x256xf32>
    %cst_45 = arith.constant 0.000000e+00 : f32
    %137 = vector.shape_cast %22 : vector<1x256xi1> to vector<1x256xi1>
    %138 = vector.broadcast %137 : vector<1x256xi1> to vector<4x256xi1>
    %139 = vector.broadcast %cst_45 : f32 to vector<4x256xf32>
    %140 = arith.select %138, %136, %139 : vector<4x256xi1>, vector<4x256xf32>
    %141 = tpu.concatenate %99, %102, %109, %116, %90, %123, %130, %133, %140, %23 in 0 : vector<4x256xf32>, vector<4x256xf32>, vector<4x256xf32>, vector<4x256xf32>, vector<4x256xf32>, vector<4x256xf32>, vector<4x256xf32>, vector<4x256xf32>, vector<4x256xf32>, vector<1x256xf32> -> vector<37x256xf32>
    %142 = arith.truncf %92 : vector<4x37xf32> to vector<4x37xbf16>
    %143 = arith.extf %142 : vector<4x37xbf16> to vector<4x37xf32>
    %144 = arith.subf %92, %143 : vector<4x37xf32>
    %145 = arith.truncf %141 : vector<37x256xf32> to vector<37x256xbf16>
    %146 = arith.extf %145 : vector<37x256xbf16> to vector<37x256xf32>
    %147 = arith.subf %141, %146 : vector<37x256xf32>
    %cst_46 = arith.constant dense<0.000000e+00> : vector<4x256xf32>
    %148 = tpu.matmul %143, %146, %cst_46 {dimension_numbers = #tpu.dot_dimension_numbers<[1], [0], [0], [1], [0, 0, 1, 1], [], []>} : vector<4x37xf32>, vector<37x256xf32>, vector<4x256xf32> -> vector<4x256xf32>
    %cst_47 = arith.constant dense<0.000000e+00> : vector<4x256xf32>
    %149 = tpu.matmul %144, %146, %cst_47 {dimension_numbers = #tpu.dot_dimension_numbers<[1], [0], [0], [1], [0, 0, 1, 1], [], []>} : vector<4x37xf32>, vector<37x256xf32>, vector<4x256xf32> -> vector<4x256xf32>
    %150 = arith.addf %148, %149 : vector<4x256xf32>
    %cst_48 = arith.constant dense<0.000000e+00> : vector<4x256xf32>
    %151 = tpu.matmul %143, %147, %cst_48 {dimension_numbers = #tpu.dot_dimension_numbers<[1], [0], [0], [1], [0, 0, 1, 1], [], []>} : vector<4x37xf32>, vector<37x256xf32>, vector<4x256xf32> -> vector<4x256xf32>
    %152 = arith.addf %150, %151 : vector<4x256xf32>
    %153 = arith.addf %1, %152 : vector<4x256xf32>
    %c1_49 = arith.constant 1 : index
    %c0_50 = arith.constant 0 : index
    %c0_51 = arith.constant 0 : index
    %c0_52 = arith.constant 0 : index
    %154 = vector.load %arg5[%c1_49, %c0_50, %c0_51, %c0_52] : memref<2x2x4x37xf32, #tpu.memory_space<vmem>>, vector<1x1x4x37xf32>
    %155 = vector.shape_cast %154 : vector<1x1x4x37xf32> to vector<4x37xf32>
    %cst_53 = arith.constant 0.000000e+00 : f32
    %156 = vector.broadcast %cst_53 : f32 to vector<4x17xf32>
    %157 = vector.extract_strided_slice %153 {offsets = [0, 0], sizes = [4, 239], strides = [1, 1]} : vector<4x256xf32> to vector<4x239xf32>
    %158 = tpu.concatenate %156, %157 in 1 : vector<4x17xf32>, vector<4x239xf32> -> vector<4x256xf32>
    %cst_54 = arith.constant 0.000000e+00 : f32
    %159 = vector.shape_cast %20 : vector<1x256xi1> to vector<1x256xi1>
    %160 = vector.broadcast %159 : vector<1x256xi1> to vector<4x256xi1>
    %161 = vector.broadcast %cst_54 : f32 to vector<4x256xf32>
    %162 = arith.select %160, %158, %161 : vector<4x256xi1>, vector<4x256xf32>
    %cst_55 = arith.constant 0.000000e+00 : f32
    %163 = vector.broadcast %cst_55 : f32 to vector<4x16xf32>
    %164 = vector.extract_strided_slice %153 {offsets = [0, 0], sizes = [4, 240], strides = [1, 1]} : vector<4x256xf32> to vector<4x240xf32>
    %165 = tpu.concatenate %163, %164 in 1 : vector<4x16xf32>, vector<4x240xf32> -> vector<4x256xf32>
    %cst_56 = arith.constant 0.000000e+00 : f32
    %166 = vector.broadcast %cst_56 : f32 to vector<4x15xf32>
    %167 = vector.extract_strided_slice %153 {offsets = [0, 0], sizes = [4, 241], strides = [1, 1]} : vector<4x256xf32> to vector<4x241xf32>
    %168 = tpu.concatenate %166, %167 in 1 : vector<4x15xf32>, vector<4x241xf32> -> vector<4x256xf32>
    %cst_57 = arith.constant 0.000000e+00 : f32
    %169 = vector.shape_cast %22 : vector<1x256xi1> to vector<1x256xi1>
    %170 = vector.broadcast %169 : vector<1x256xi1> to vector<4x256xi1>
    %171 = vector.broadcast %cst_57 : f32 to vector<4x256xf32>
    %172 = arith.select %170, %168, %171 : vector<4x256xi1>, vector<4x256xf32>
    %cst_58 = arith.constant 0.000000e+00 : f32
    %173 = vector.broadcast %cst_58 : f32 to vector<4x1xf32>
    %174 = vector.extract_strided_slice %153 {offsets = [0, 0], sizes = [4, 255], strides = [1, 1]} : vector<4x256xf32> to vector<4x255xf32>
    %175 = tpu.concatenate %173, %174 in 1 : vector<4x1xf32>, vector<4x255xf32> -> vector<4x256xf32>
    %cst_59 = arith.constant 0.000000e+00 : f32
    %176 = vector.shape_cast %20 : vector<1x256xi1> to vector<1x256xi1>
    %177 = vector.broadcast %176 : vector<1x256xi1> to vector<4x256xi1>
    %178 = vector.broadcast %cst_59 : f32 to vector<4x256xf32>
    %179 = arith.select %177, %175, %178 : vector<4x256xi1>, vector<4x256xf32>
    %cst_60 = arith.constant 0.000000e+00 : f32
    %180 = vector.broadcast %cst_60 : f32 to vector<4x1xf32>
    %181 = vector.extract_strided_slice %153 {offsets = [0, 1], sizes = [4, 255], strides = [1, 1]} : vector<4x256xf32> to vector<4x255xf32>
    %182 = tpu.concatenate %181, %180 in 1 : vector<4x255xf32>, vector<4x1xf32> -> vector<4x256xf32>
    %cst_61 = arith.constant 0.000000e+00 : f32
    %183 = vector.shape_cast %22 : vector<1x256xi1> to vector<1x256xi1>
    %184 = vector.broadcast %183 : vector<1x256xi1> to vector<4x256xi1>
    %185 = vector.broadcast %cst_61 : f32 to vector<4x256xf32>
    %186 = arith.select %184, %182, %185 : vector<4x256xi1>, vector<4x256xf32>
    %cst_62 = arith.constant 0.000000e+00 : f32
    %187 = vector.broadcast %cst_62 : f32 to vector<4x15xf32>
    %188 = vector.extract_strided_slice %153 {offsets = [0, 15], sizes = [4, 241], strides = [1, 1]} : vector<4x256xf32> to vector<4x241xf32>
    %189 = tpu.concatenate %188, %187 in 1 : vector<4x241xf32>, vector<4x15xf32> -> vector<4x256xf32>
    %cst_63 = arith.constant 0.000000e+00 : f32
    %190 = vector.shape_cast %20 : vector<1x256xi1> to vector<1x256xi1>
    %191 = vector.broadcast %190 : vector<1x256xi1> to vector<4x256xi1>
    %192 = vector.broadcast %cst_63 : f32 to vector<4x256xf32>
    %193 = arith.select %191, %189, %192 : vector<4x256xi1>, vector<4x256xf32>
    %cst_64 = arith.constant 0.000000e+00 : f32
    %194 = vector.broadcast %cst_64 : f32 to vector<4x16xf32>
    %195 = vector.extract_strided_slice %153 {offsets = [0, 16], sizes = [4, 240], strides = [1, 1]} : vector<4x256xf32> to vector<4x240xf32>
    %196 = tpu.concatenate %195, %194 in 1 : vector<4x240xf32>, vector<4x16xf32> -> vector<4x256xf32>
    %cst_65 = arith.constant 0.000000e+00 : f32
    %197 = vector.broadcast %cst_65 : f32 to vector<4x17xf32>
    %198 = vector.extract_strided_slice %153 {offsets = [0, 17], sizes = [4, 239], strides = [1, 1]} : vector<4x256xf32> to vector<4x239xf32>
    %199 = tpu.concatenate %198, %197 in 1 : vector<4x239xf32>, vector<4x17xf32> -> vector<4x256xf32>
    %cst_66 = arith.constant 0.000000e+00 : f32
    %200 = vector.shape_cast %22 : vector<1x256xi1> to vector<1x256xi1>
    %201 = vector.broadcast %200 : vector<1x256xi1> to vector<4x256xi1>
    %202 = vector.broadcast %cst_66 : f32 to vector<4x256xf32>
    %203 = arith.select %201, %199, %202 : vector<4x256xi1>, vector<4x256xf32>
    %204 = tpu.concatenate %162, %165, %172, %179, %153, %186, %193, %196, %203, %23 in 0 : vector<4x256xf32>, vector<4x256xf32>, vector<4x256xf32>, vector<4x256xf32>, vector<4x256xf32>, vector<4x256xf32>, vector<4x256xf32>, vector<4x256xf32>, vector<4x256xf32>, vector<1x256xf32> -> vector<37x256xf32>
    %205 = arith.truncf %155 : vector<4x37xf32> to vector<4x37xbf16>
    %206 = arith.extf %205 : vector<4x37xbf16> to vector<4x37xf32>
    %207 = arith.subf %155, %206 : vector<4x37xf32>
    %208 = arith.truncf %204 : vector<37x256xf32> to vector<37x256xbf16>
    %209 = arith.extf %208 : vector<37x256xbf16> to vector<37x256xf32>
    %210 = arith.subf %204, %209 : vector<37x256xf32>
    %cst_67 = arith.constant dense<0.000000e+00> : vector<4x256xf32>
    %211 = tpu.matmul %206, %209, %cst_67 {dimension_numbers = #tpu.dot_dimension_numbers<[1], [0], [0], [1], [0, 0, 1, 1], [], []>} : vector<4x37xf32>, vector<37x256xf32>, vector<4x256xf32> -> vector<4x256xf32>
    %cst_68 = arith.constant dense<0.000000e+00> : vector<4x256xf32>
    %212 = tpu.matmul %207, %209, %cst_68 {dimension_numbers = #tpu.dot_dimension_numbers<[1], [0], [0], [1], [0, 0, 1, 1], [], []>} : vector<4x37xf32>, vector<37x256xf32>, vector<4x256xf32> -> vector<4x256xf32>
    %213 = arith.addf %211, %212 : vector<4x256xf32>
    %cst_69 = arith.constant dense<0.000000e+00> : vector<4x256xf32>
    %214 = tpu.matmul %206, %210, %cst_69 {dimension_numbers = #tpu.dot_dimension_numbers<[1], [0], [0], [1], [0, 0, 1, 1], [], []>} : vector<4x37xf32>, vector<37x256xf32>, vector<4x256xf32> -> vector<4x256xf32>
    %215 = arith.addf %213, %214 : vector<4x256xf32>
    %cst_70 = arith.constant 0.000000e+00 : f32
    %216 = vector.broadcast %cst_70 : f32 to vector<4x256xf32>
    %217 = arith.cmpf ogt, %215, %216 : vector<4x256xf32>
    %cst_71 = arith.constant 2.000000e-01 : f32
    %218 = vector.broadcast %cst_71 : f32 to vector<4x256xf32>
    %219 = arith.mulf %218, %215 : vector<4x256xf32>
    %220 = arith.select %217, %215, %219 : vector<4x256xi1>, vector<4x256xf32>
    %c1_72 = arith.constant 1 : index
    %c1_73 = arith.constant 1 : index
    %c0_74 = arith.constant 0 : index
    %c0_75 = arith.constant 0 : index
    %221 = vector.load %arg5[%c1_72, %c1_73, %c0_74, %c0_75] : memref<2x2x4x37xf32, #tpu.memory_space<vmem>>, vector<1x1x4x37xf32>
    %222 = vector.shape_cast %221 : vector<1x1x4x37xf32> to vector<4x37xf32>
    %cst_76 = arith.constant 0.000000e+00 : f32
    %223 = vector.broadcast %cst_76 : f32 to vector<4x17xf32>
    %224 = vector.extract_strided_slice %220 {offsets = [0, 0], sizes = [4, 239], strides = [1, 1]} : vector<4x256xf32> to vector<4x239xf32>
    %225 = tpu.concatenate %223, %224 in 1 : vector<4x17xf32>, vector<4x239xf32> -> vector<4x256xf32>
    %cst_77 = arith.constant 0.000000e+00 : f32
    %226 = vector.shape_cast %20 : vector<1x256xi1> to vector<1x256xi1>
    %227 = vector.broadcast %226 : vector<1x256xi1> to vector<4x256xi1>
    %228 = vector.broadcast %cst_77 : f32 to vector<4x256xf32>
    %229 = arith.select %227, %225, %228 : vector<4x256xi1>, vector<4x256xf32>
    %cst_78 = arith.constant 0.000000e+00 : f32
    %230 = vector.broadcast %cst_78 : f32 to vector<4x16xf32>
    %231 = vector.extract_strided_slice %220 {offsets = [0, 0], sizes = [4, 240], strides = [1, 1]} : vector<4x256xf32> to vector<4x240xf32>
    %232 = tpu.concatenate %230, %231 in 1 : vector<4x16xf32>, vector<4x240xf32> -> vector<4x256xf32>
    %cst_79 = arith.constant 0.000000e+00 : f32
    %233 = vector.broadcast %cst_79 : f32 to vector<4x15xf32>
    %234 = vector.extract_strided_slice %220 {offsets = [0, 0], sizes = [4, 241], strides = [1, 1]} : vector<4x256xf32> to vector<4x241xf32>
    %235 = tpu.concatenate %233, %234 in 1 : vector<4x15xf32>, vector<4x241xf32> -> vector<4x256xf32>
    %cst_80 = arith.constant 0.000000e+00 : f32
    %236 = vector.shape_cast %22 : vector<1x256xi1> to vector<1x256xi1>
    %237 = vector.broadcast %236 : vector<1x256xi1> to vector<4x256xi1>
    %238 = vector.broadcast %cst_80 : f32 to vector<4x256xf32>
    %239 = arith.select %237, %235, %238 : vector<4x256xi1>, vector<4x256xf32>
    %cst_81 = arith.constant 0.000000e+00 : f32
    %240 = vector.broadcast %cst_81 : f32 to vector<4x1xf32>
    %241 = vector.extract_strided_slice %220 {offsets = [0, 0], sizes = [4, 255], strides = [1, 1]} : vector<4x256xf32> to vector<4x255xf32>
    %242 = tpu.concatenate %240, %241 in 1 : vector<4x1xf32>, vector<4x255xf32> -> vector<4x256xf32>
    %cst_82 = arith.constant 0.000000e+00 : f32
    %243 = vector.shape_cast %20 : vector<1x256xi1> to vector<1x256xi1>
    %244 = vector.broadcast %243 : vector<1x256xi1> to vector<4x256xi1>
    %245 = vector.broadcast %cst_82 : f32 to vector<4x256xf32>
    %246 = arith.select %244, %242, %245 : vector<4x256xi1>, vector<4x256xf32>
    %cst_83 = arith.constant 0.000000e+00 : f32
    %247 = vector.broadcast %cst_83 : f32 to vector<4x1xf32>
    %248 = vector.extract_strided_slice %220 {offsets = [0, 1], sizes = [4, 255], strides = [1, 1]} : vector<4x256xf32> to vector<4x255xf32>
    %249 = tpu.concatenate %248, %247 in 1 : vector<4x255xf32>, vector<4x1xf32> -> vector<4x256xf32>
    %cst_84 = arith.constant 0.000000e+00 : f32
    %250 = vector.shape_cast %22 : vector<1x256xi1> to vector<1x256xi1>
    %251 = vector.broadcast %250 : vector<1x256xi1> to vector<4x256xi1>
    %252 = vector.broadcast %cst_84 : f32 to vector<4x256xf32>
    %253 = arith.select %251, %249, %252 : vector<4x256xi1>, vector<4x256xf32>
    %cst_85 = arith.constant 0.000000e+00 : f32
    %254 = vector.broadcast %cst_85 : f32 to vector<4x15xf32>
    %255 = vector.extract_strided_slice %220 {offsets = [0, 15], sizes = [4, 241], strides = [1, 1]} : vector<4x256xf32> to vector<4x241xf32>
    %256 = tpu.concatenate %255, %254 in 1 : vector<4x241xf32>, vector<4x15xf32> -> vector<4x256xf32>
    %cst_86 = arith.constant 0.000000e+00 : f32
    %257 = vector.shape_cast %20 : vector<1x256xi1> to vector<1x256xi1>
    %258 = vector.broadcast %257 : vector<1x256xi1> to vector<4x256xi1>
    %259 = vector.broadcast %cst_86 : f32 to vector<4x256xf32>
    %260 = arith.select %258, %256, %259 : vector<4x256xi1>, vector<4x256xf32>
    %cst_87 = arith.constant 0.000000e+00 : f32
    %261 = vector.broadcast %cst_87 : f32 to vector<4x16xf32>
    %262 = vector.extract_strided_slice %220 {offsets = [0, 16], sizes = [4, 240], strides = [1, 1]} : vector<4x256xf32> to vector<4x240xf32>
    %263 = tpu.concatenate %262, %261 in 1 : vector<4x240xf32>, vector<4x16xf32> -> vector<4x256xf32>
    %cst_88 = arith.constant 0.000000e+00 : f32
    %264 = vector.broadcast %cst_88 : f32 to vector<4x17xf32>
    %265 = vector.extract_strided_slice %220 {offsets = [0, 17], sizes = [4, 239], strides = [1, 1]} : vector<4x256xf32> to vector<4x239xf32>
    %266 = tpu.concatenate %265, %264 in 1 : vector<4x239xf32>, vector<4x17xf32> -> vector<4x256xf32>
    %cst_89 = arith.constant 0.000000e+00 : f32
    %267 = vector.shape_cast %22 : vector<1x256xi1> to vector<1x256xi1>
    %268 = vector.broadcast %267 : vector<1x256xi1> to vector<4x256xi1>
    %269 = vector.broadcast %cst_89 : f32 to vector<4x256xf32>
    %270 = arith.select %268, %266, %269 : vector<4x256xi1>, vector<4x256xf32>
    %271 = tpu.concatenate %229, %232, %239, %246, %220, %253, %260, %263, %270, %23 in 0 : vector<4x256xf32>, vector<4x256xf32>, vector<4x256xf32>, vector<4x256xf32>, vector<4x256xf32>, vector<4x256xf32>, vector<4x256xf32>, vector<4x256xf32>, vector<4x256xf32>, vector<1x256xf32> -> vector<37x256xf32>
    %272 = arith.truncf %222 : vector<4x37xf32> to vector<4x37xbf16>
    %273 = arith.extf %272 : vector<4x37xbf16> to vector<4x37xf32>
    %274 = arith.subf %222, %273 : vector<4x37xf32>
    %275 = arith.truncf %271 : vector<37x256xf32> to vector<37x256xbf16>
    %276 = arith.extf %275 : vector<37x256xbf16> to vector<37x256xf32>
    %277 = arith.subf %271, %276 : vector<37x256xf32>
    %cst_90 = arith.constant dense<0.000000e+00> : vector<4x256xf32>
    %278 = tpu.matmul %273, %276, %cst_90 {dimension_numbers = #tpu.dot_dimension_numbers<[1], [0], [0], [1], [0, 0, 1, 1], [], []>} : vector<4x37xf32>, vector<37x256xf32>, vector<4x256xf32> -> vector<4x256xf32>
    %cst_91 = arith.constant dense<0.000000e+00> : vector<4x256xf32>
    %279 = tpu.matmul %274, %276, %cst_91 {dimension_numbers = #tpu.dot_dimension_numbers<[1], [0], [0], [1], [0, 0, 1, 1], [], []>} : vector<4x37xf32>, vector<37x256xf32>, vector<4x256xf32> -> vector<4x256xf32>
    %280 = arith.addf %278, %279 : vector<4x256xf32>
    %cst_92 = arith.constant dense<0.000000e+00> : vector<4x256xf32>
    %281 = tpu.matmul %273, %277, %cst_92 {dimension_numbers = #tpu.dot_dimension_numbers<[1], [0], [0], [1], [0, 0, 1, 1], [], []>} : vector<4x37xf32>, vector<37x256xf32>, vector<4x256xf32> -> vector<4x256xf32>
    %282 = arith.addf %280, %281 : vector<4x256xf32>
    %283 = arith.addf %153, %282 : vector<4x256xf32>
    %c0_93 = arith.constant 0 : index
    %c0_94 = arith.constant 0 : index
    %284 = vector.load %arg6[%c0_93, %c0_94] : memref<3x37xf32, #tpu.memory_space<vmem>>, vector<3x37xf32>
    %cst_95 = arith.constant 0.000000e+00 : f32
    %285 = vector.broadcast %cst_95 : f32 to vector<4x17xf32>
    %286 = vector.extract_strided_slice %283 {offsets = [0, 0], sizes = [4, 239], strides = [1, 1]} : vector<4x256xf32> to vector<4x239xf32>
    %287 = tpu.concatenate %285, %286 in 1 : vector<4x17xf32>, vector<4x239xf32> -> vector<4x256xf32>
    %cst_96 = arith.constant 0.000000e+00 : f32
    %288 = vector.shape_cast %20 : vector<1x256xi1> to vector<1x256xi1>
    %289 = vector.broadcast %288 : vector<1x256xi1> to vector<4x256xi1>
    %290 = vector.broadcast %cst_96 : f32 to vector<4x256xf32>
    %291 = arith.select %289, %287, %290 : vector<4x256xi1>, vector<4x256xf32>
    %cst_97 = arith.constant 0.000000e+00 : f32
    %292 = vector.broadcast %cst_97 : f32 to vector<4x16xf32>
    %293 = vector.extract_strided_slice %283 {offsets = [0, 0], sizes = [4, 240], strides = [1, 1]} : vector<4x256xf32> to vector<4x240xf32>
    %294 = tpu.concatenate %292, %293 in 1 : vector<4x16xf32>, vector<4x240xf32> -> vector<4x256xf32>
    %cst_98 = arith.constant 0.000000e+00 : f32
    %295 = vector.broadcast %cst_98 : f32 to vector<4x15xf32>
    %296 = vector.extract_strided_slice %283 {offsets = [0, 0], sizes = [4, 241], strides = [1, 1]} : vector<4x256xf32> to vector<4x241xf32>
    %297 = tpu.concatenate %295, %296 in 1 : vector<4x15xf32>, vector<4x241xf32> -> vector<4x256xf32>
    %cst_99 = arith.constant 0.000000e+00 : f32
    %298 = vector.shape_cast %22 : vector<1x256xi1> to vector<1x256xi1>
    %299 = vector.broadcast %298 : vector<1x256xi1> to vector<4x256xi1>
    %300 = vector.broadcast %cst_99 : f32 to vector<4x256xf32>
    %301 = arith.select %299, %297, %300 : vector<4x256xi1>, vector<4x256xf32>
    %cst_100 = arith.constant 0.000000e+00 : f32
    %302 = vector.broadcast %cst_100 : f32 to vector<4x1xf32>
    %303 = vector.extract_strided_slice %283 {offsets = [0, 0], sizes = [4, 255], strides = [1, 1]} : vector<4x256xf32> to vector<4x255xf32>
    %304 = tpu.concatenate %302, %303 in 1 : vector<4x1xf32>, vector<4x255xf32> -> vector<4x256xf32>
    %cst_101 = arith.constant 0.000000e+00 : f32
    %305 = vector.shape_cast %20 : vector<1x256xi1> to vector<1x256xi1>
    %306 = vector.broadcast %305 : vector<1x256xi1> to vector<4x256xi1>
    %307 = vector.broadcast %cst_101 : f32 to vector<4x256xf32>
    %308 = arith.select %306, %304, %307 : vector<4x256xi1>, vector<4x256xf32>
    %cst_102 = arith.constant 0.000000e+00 : f32
    %309 = vector.broadcast %cst_102 : f32 to vector<4x1xf32>
    %310 = vector.extract_strided_slice %283 {offsets = [0, 1], sizes = [4, 255], strides = [1, 1]} : vector<4x256xf32> to vector<4x255xf32>
    %311 = tpu.concatenate %310, %309 in 1 : vector<4x255xf32>, vector<4x1xf32> -> vector<4x256xf32>
    %cst_103 = arith.constant 0.000000e+00 : f32
    %312 = vector.shape_cast %22 : vector<1x256xi1> to vector<1x256xi1>
    %313 = vector.broadcast %312 : vector<1x256xi1> to vector<4x256xi1>
    %314 = vector.broadcast %cst_103 : f32 to vector<4x256xf32>
    %315 = arith.select %313, %311, %314 : vector<4x256xi1>, vector<4x256xf32>
    %cst_104 = arith.constant 0.000000e+00 : f32
    %316 = vector.broadcast %cst_104 : f32 to vector<4x15xf32>
    %317 = vector.extract_strided_slice %283 {offsets = [0, 15], sizes = [4, 241], strides = [1, 1]} : vector<4x256xf32> to vector<4x241xf32>
    %318 = tpu.concatenate %317, %316 in 1 : vector<4x241xf32>, vector<4x15xf32> -> vector<4x256xf32>
    %cst_105 = arith.constant 0.000000e+00 : f32
    %319 = vector.shape_cast %20 : vector<1x256xi1> to vector<1x256xi1>
    %320 = vector.broadcast %319 : vector<1x256xi1> to vector<4x256xi1>
    %321 = vector.broadcast %cst_105 : f32 to vector<4x256xf32>
    %322 = arith.select %320, %318, %321 : vector<4x256xi1>, vector<4x256xf32>
    %cst_106 = arith.constant 0.000000e+00 : f32
    %323 = vector.broadcast %cst_106 : f32 to vector<4x16xf32>
    %324 = vector.extract_strided_slice %283 {offsets = [0, 16], sizes = [4, 240], strides = [1, 1]} : vector<4x256xf32> to vector<4x240xf32>
    %325 = tpu.concatenate %324, %323 in 1 : vector<4x240xf32>, vector<4x16xf32> -> vector<4x256xf32>
    %cst_107 = arith.constant 0.000000e+00 : f32
    %326 = vector.broadcast %cst_107 : f32 to vector<4x17xf32>
    %327 = vector.extract_strided_slice %283 {offsets = [0, 17], sizes = [4, 239], strides = [1, 1]} : vector<4x256xf32> to vector<4x239xf32>
    %328 = tpu.concatenate %327, %326 in 1 : vector<4x239xf32>, vector<4x17xf32> -> vector<4x256xf32>
    %cst_108 = arith.constant 0.000000e+00 : f32
    %329 = vector.shape_cast %22 : vector<1x256xi1> to vector<1x256xi1>
    %330 = vector.broadcast %329 : vector<1x256xi1> to vector<4x256xi1>
    %331 = vector.broadcast %cst_108 : f32 to vector<4x256xf32>
    %332 = arith.select %330, %328, %331 : vector<4x256xi1>, vector<4x256xf32>
    %333 = tpu.concatenate %291, %294, %301, %308, %283, %315, %322, %325, %332, %23 in 0 : vector<4x256xf32>, vector<4x256xf32>, vector<4x256xf32>, vector<4x256xf32>, vector<4x256xf32>, vector<4x256xf32>, vector<4x256xf32>, vector<4x256xf32>, vector<4x256xf32>, vector<1x256xf32> -> vector<37x256xf32>
    %334 = arith.truncf %284 : vector<3x37xf32> to vector<3x37xbf16>
    %335 = arith.extf %334 : vector<3x37xbf16> to vector<3x37xf32>
    %336 = arith.subf %284, %335 : vector<3x37xf32>
    %337 = arith.truncf %333 : vector<37x256xf32> to vector<37x256xbf16>
    %338 = arith.extf %337 : vector<37x256xbf16> to vector<37x256xf32>
    %339 = arith.subf %333, %338 : vector<37x256xf32>
    %cst_109 = arith.constant dense<0.000000e+00> : vector<3x256xf32>
    %340 = tpu.matmul %335, %338, %cst_109 {dimension_numbers = #tpu.dot_dimension_numbers<[1], [0], [0], [1], [0, 0, 1, 1], [], []>} : vector<3x37xf32>, vector<37x256xf32>, vector<3x256xf32> -> vector<3x256xf32>
    %cst_110 = arith.constant dense<0.000000e+00> : vector<3x256xf32>
    %341 = tpu.matmul %336, %338, %cst_110 {dimension_numbers = #tpu.dot_dimension_numbers<[1], [0], [0], [1], [0, 0, 1, 1], [], []>} : vector<3x37xf32>, vector<37x256xf32>, vector<3x256xf32> -> vector<3x256xf32>
    %342 = arith.addf %340, %341 : vector<3x256xf32>
    %cst_111 = arith.constant dense<0.000000e+00> : vector<3x256xf32>
    %343 = tpu.matmul %335, %339, %cst_111 {dimension_numbers = #tpu.dot_dimension_numbers<[1], [0], [0], [1], [0, 0, 1, 1], [], []>} : vector<3x37xf32>, vector<37x256xf32>, vector<3x256xf32> -> vector<3x256xf32>
    %344 = arith.addf %342, %343 : vector<3x256xf32>
    %c0_112 = arith.constant 0 : index
    %c0_113 = arith.constant 0 : index
    %c0_114 = arith.constant 0 : index
    %345 = vector.load %arg12[%c0_112, %c0_113, %c0_114] : memref<1x3x256xf32, #tpu.memory_space<vmem>>, vector<1x3x256xf32>
    %346 = vector.shape_cast %345 : vector<1x3x256xf32> to vector<3x256xf32>
    %347 = vector.shape_cast %344 : vector<3x256xf32> to vector<1x3x256xf32>
    tpu.vector_store %arg12[%c0_112, %c0_113, %c0_114], %347 {strides = array<i32>} : memref<1x3x256xf32, #tpu.memory_space<vmem>>, vector<1x3x256xf32>,
    %348 = vector.extract_strided_slice %283 {offsets = [0, 0], sizes = [4, 16], strides = [1, 1]} : vector<4x256xf32> to vector<4x16xf32>
    %349 = vector.extract_strided_slice %283 {offsets = [0, 16], sizes = [4, 16], strides = [1, 1]} : vector<4x256xf32> to vector<4x16xf32>
    %350 = vector.extract_strided_slice %283 {offsets = [0, 32], sizes = [4, 16], strides = [1, 1]} : vector<4x256xf32> to vector<4x16xf32>
    %351 = vector.extract_strided_slice %283 {offsets = [0, 48], sizes = [4, 16], strides = [1, 1]} : vector<4x256xf32> to vector<4x16xf32>
    %352 = vector.extract_strided_slice %283 {offsets = [0, 64], sizes = [4, 16], strides = [1, 1]} : vector<4x256xf32> to vector<4x16xf32>
    %353 = vector.extract_strided_slice %283 {offsets = [0, 80], sizes = [4, 16], strides = [1, 1]} : vector<4x256xf32> to vector<4x16xf32>
    %354 = vector.extract_strided_slice %283 {offsets = [0, 96], sizes = [4, 16], strides = [1, 1]} : vector<4x256xf32> to vector<4x16xf32>
    %355 = vector.extract_strided_slice %283 {offsets = [0, 112], sizes = [4, 16], strides = [1, 1]} : vector<4x256xf32> to vector<4x16xf32>
    %356 = vector.extract_strided_slice %283 {offsets = [0, 128], sizes = [4, 16], strides = [1, 1]} : vector<4x256xf32> to vector<4x16xf32>
    %357 = vector.extract_strided_slice %283 {offsets = [0, 144], sizes = [4, 16], strides = [1, 1]} : vector<4x256xf32> to vector<4x16xf32>
    %358 = vector.extract_strided_slice %283 {offsets = [0, 160], sizes = [4, 16], strides = [1, 1]} : vector<4x256xf32> to vector<4x16xf32>
    %359 = vector.extract_strided_slice %283 {offsets = [0, 176], sizes = [4, 16], strides = [1, 1]} : vector<4x256xf32> to vector<4x16xf32>
    %360 = vector.extract_strided_slice %283 {offsets = [0, 192], sizes = [4, 16], strides = [1, 1]} : vector<4x256xf32> to vector<4x16xf32>
    %361 = vector.extract_strided_slice %283 {offsets = [0, 208], sizes = [4, 16], strides = [1, 1]} : vector<4x256xf32> to vector<4x16xf32>
    %362 = vector.extract_strided_slice %283 {offsets = [0, 224], sizes = [4, 16], strides = [1, 1]} : vector<4x256xf32> to vector<4x16xf32>
    %363 = vector.extract_strided_slice %283 {offsets = [0, 240], sizes = [4, 16], strides = [1, 1]} : vector<4x256xf32> to vector<4x16xf32>
    %364 = vector.shape_cast %348 : vector<4x16xf32> to vector<4x1x16xf32>
    %365 = vector.shape_cast %349 : vector<4x16xf32> to vector<4x1x16xf32>
    %366 = vector.shape_cast %350 : vector<4x16xf32> to vector<4x1x16xf32>
    %367 = vector.shape_cast %351 : vector<4x16xf32> to vector<4x1x16xf32>
    %368 = vector.shape_cast %352 : vector<4x16xf32> to vector<4x1x16xf32>
    %369 = vector.shape_cast %353 : vector<4x16xf32> to vector<4x1x16xf32>
    %370 = vector.shape_cast %354 : vector<4x16xf32> to vector<4x1x16xf32>
    %371 = vector.shape_cast %355 : vector<4x16xf32> to vector<4x1x16xf32>
    %372 = vector.shape_cast %356 : vector<4x16xf32> to vector<4x1x16xf32>
    %373 = vector.shape_cast %357 : vector<4x16xf32> to vector<4x1x16xf32>
    %374 = vector.shape_cast %358 : vector<4x16xf32> to vector<4x1x16xf32>
    %375 = vector.shape_cast %359 : vector<4x16xf32> to vector<4x1x16xf32>
    %376 = vector.shape_cast %360 : vector<4x16xf32> to vector<4x1x16xf32>
    %377 = vector.shape_cast %361 : vector<4x16xf32> to vector<4x1x16xf32>
    %378 = vector.shape_cast %362 : vector<4x16xf32> to vector<4x1x16xf32>
    %379 = vector.shape_cast %363 : vector<4x16xf32> to vector<4x1x16xf32>
    %380 = tpu.concatenate %364, %365, %366, %367, %368, %369, %370, %371, %372, %373, %374, %375, %376, %377, %378, %379 in 1 : vector<4x1x16xf32>, vector<4x1x16xf32>, vector<4x1x16xf32>, vector<4x1x16xf32>, vector<4x1x16xf32>, vector<4x1x16xf32>, vector<4x1x16xf32>, vector<4x1x16xf32>, vector<4x1x16xf32>, vector<4x1x16xf32>, vector<4x1x16xf32>, vector<4x1x16xf32>, vector<4x1x16xf32>, vector<4x1x16xf32>, vector<4x1x16xf32>, vector<4x1x16xf32> -> vector<4x16x16xf32>
    %381 = vector.shape_cast %380 : vector<4x16x16xf32> to vector<64x16xf32>
    %c0_115 = arith.constant 0 : index
    %c0_116 = arith.constant 0 : index
    %c0_117 = arith.constant 0 : index
    %c0_118 = arith.constant 0 : index
    %382 = vector.load %arg2[%c0_115, %c0_116, %c0_117, %c0_118] : memref<1x4x16x16xf32, #tpu.memory_space<vmem>>, vector<1x4x16x16xf32>
    %383 = vector.shape_cast %382 : vector<1x4x16x16xf32> to vector<4x16x16xf32>
    %384 = vector.shape_cast %383 : vector<4x16x16xf32> to vector<64x16xf32>
    %c0_119 = arith.constant 0 : index
    %c0_120 = arith.constant 0 : index
    %c0_121 = arith.constant 0 : index
    %c0_122 = arith.constant 0 : index
    %385 = vector.load %arg3[%c0_119, %c0_120, %c0_121, %c0_122] : memref<1x4x16x16xf32, #tpu.memory_space<vmem>>, vector<1x4x16x16xf32>
    %386 = vector.shape_cast %385 : vector<1x4x16x16xf32> to vector<4x16x16xf32>
    %387 = vector.shape_cast %386 : vector<4x16x16xf32> to vector<64x16xf32>
    %c0_123 = arith.constant 0 : index
    %c0_124 = arith.constant 0 : index
    %c0_125 = arith.constant 0 : index
    %c0_126 = arith.constant 0 : index
    %388 = vector.load %arg4[%c0_123, %c0_124, %c0_125, %c0_126] : memref<1x4x16x16xf32, #tpu.memory_space<vmem>>, vector<1x4x16x16xf32>
    %389 = vector.shape_cast %388 : vector<1x4x16x16xf32> to vector<4x16x16xf32>
    %390 = vector.shape_cast %389 : vector<4x16x16xf32> to vector<64x16xf32>
    %391 = arith.subf %381, %384 : vector<64x16xf32>
    %392 = arith.subf %391, %387 : vector<64x16xf32>
    %393 = arith.addf %392, %390 : vector<64x16xf32>
    %394 = arith.subf %381, %384 : vector<64x16xf32>
    %395 = arith.addf %394, %387 : vector<64x16xf32>
    %396 = arith.subf %395, %390 : vector<64x16xf32>
    %397 = arith.addf %381, %384 : vector<64x16xf32>
    %398 = arith.subf %397, %387 : vector<64x16xf32>
    %399 = arith.subf %398, %390 : vector<64x16xf32>
    %400 = arith.addf %381, %384 : vector<64x16xf32>
    %401 = arith.addf %400, %387 : vector<64x16xf32>
    %402 = arith.addf %401, %390 : vector<64x16xf32>
    %c0_127 = arith.constant 0 : index
    %c0_128 = arith.constant 0 : index
    %403 = vector.load %arg7[%c0_127, %c0_128] : memref<16x32xf32, #tpu.memory_space<vmem>>, vector<16x32xf32>
    %c0_129 = arith.constant 0 : index
    %c0_130 = arith.constant 0 : index
    %404 = vector.load %arg8[%c0_129, %c0_130] : memref<16x32xf32, #tpu.memory_space<vmem>>, vector<16x32xf32>
    %405 = arith.truncf %393 : vector<64x16xf32> to vector<64x16xbf16>
    %406 = arith.extf %405 : vector<64x16xbf16> to vector<64x16xf32>
    %407 = arith.subf %393, %406 : vector<64x16xf32>
    %cst_131 = arith.constant dense<0.000000e+00> : vector<64x32xf32>
    %408 = tpu.matmul %406, %403, %cst_131 {dimension_numbers = #tpu.dot_dimension_numbers<[1], [0], [0], [1], [0, 0, 1, 1], [], []>} : vector<64x16xf32>, vector<16x32xf32>, vector<64x32xf32> -> vector<64x32xf32>
    %cst_132 = arith.constant dense<0.000000e+00> : vector<64x32xf32>
    %409 = tpu.matmul %407, %403, %cst_132 {dimension_numbers = #tpu.dot_dimension_numbers<[1], [0], [0], [1], [0, 0, 1, 1], [], []>} : vector<64x16xf32>, vector<16x32xf32>, vector<64x32xf32> -> vector<64x32xf32>
    %410 = arith.addf %408, %409 : vector<64x32xf32>
    %411 = arith.truncf %399 : vector<64x16xf32> to vector<64x16xbf16>
    %412 = arith.extf %411 : vector<64x16xbf16> to vector<64x16xf32>
    %413 = arith.subf %399, %412 : vector<64x16xf32>
    %cst_133 = arith.constant dense<0.000000e+00> : vector<64x32xf32>
    %414 = tpu.matmul %412, %404, %cst_133 {dimension_numbers = #tpu.dot_dimension_numbers<[1], [0], [0], [1], [0, 0, 1, 1], [], []>} : vector<64x16xf32>, vector<16x32xf32>, vector<64x32xf32> -> vector<64x32xf32>
    %cst_134 = arith.constant dense<0.000000e+00> : vector<64x32xf32>
    %415 = tpu.matmul %413, %404, %cst_134 {dimension_numbers = #tpu.dot_dimension_numbers<[1], [0], [0], [1], [0, 0, 1, 1], [], []>} : vector<64x16xf32>, vector<16x32xf32>, vector<64x32xf32> -> vector<64x32xf32>
    %416 = arith.addf %414, %415 : vector<64x32xf32>
    %417 = arith.addf %410, %416 : vector<64x32xf32>
    %418 = arith.truncf %396 : vector<64x16xf32> to vector<64x16xbf16>
    %419 = arith.extf %418 : vector<64x16xbf16> to vector<64x16xf32>
    %420 = arith.subf %396, %419 : vector<64x16xf32>
    %cst_135 = arith.constant dense<0.000000e+00> : vector<64x32xf32>
    %421 = tpu.matmul %419, %403, %cst_135 {dimension_numbers = #tpu.dot_dimension_numbers<[1], [0], [0], [1], [0, 0, 1, 1], [], []>} : vector<64x16xf32>, vector<16x32xf32>, vector<64x32xf32> -> vector<64x32xf32>
    %cst_136 = arith.constant dense<0.000000e+00> : vector<64x32xf32>
    %422 = tpu.matmul %420, %403, %cst_136 {dimension_numbers = #tpu.dot_dimension_numbers<[1], [0], [0], [1], [0, 0, 1, 1], [], []>} : vector<64x16xf32>, vector<16x32xf32>, vector<64x32xf32> -> vector<64x32xf32>
    %423 = arith.addf %421, %422 : vector<64x32xf32>
    %424 = arith.truncf %402 : vector<64x16xf32> to vector<64x16xbf16>
    %425 = arith.extf %424 : vector<64x16xbf16> to vector<64x16xf32>
    %426 = arith.subf %402, %425 : vector<64x16xf32>
    %cst_137 = arith.constant dense<0.000000e+00> : vector<64x32xf32>
    %427 = tpu.matmul %425, %404, %cst_137 {dimension_numbers = #tpu.dot_dimension_numbers<[1], [0], [0], [1], [0, 0, 1, 1], [], []>} : vector<64x16xf32>, vector<16x32xf32>, vector<64x32xf32> -> vector<64x32xf32>
    %cst_138 = arith.constant dense<0.000000e+00> : vector<64x32xf32>
    %428 = tpu.matmul %426, %404, %cst_138 {dimension_numbers = #tpu.dot_dimension_numbers<[1], [0], [0], [1], [0, 0, 1, 1], [], []>} : vector<64x16xf32>, vector<16x32xf32>, vector<64x32xf32> -> vector<64x32xf32>
    %429 = arith.addf %427, %428 : vector<64x32xf32>
    %430 = arith.addf %423, %429 : vector<64x32xf32>
    %c0_139 = arith.constant 0 : index
    %c0_140 = arith.constant 0 : index
    %431 = vector.load %arg9[%c0_139, %c0_140] : memref<128x64xf32, #tpu.memory_space<vmem>>, vector<128x64xf32>
    %432 = arith.truncf %417 : vector<64x32xf32> to vector<64x32xbf16>
    %433 = arith.extf %432 : vector<64x32xbf16> to vector<64x32xf32>
    %434 = arith.subf %417, %433 : vector<64x32xf32>
    %cst_141 = arith.constant dense<0.000000e+00> : vector<128x32xf32>
    %435 = tpu.matmul %431, %433, %cst_141 {dimension_numbers = #tpu.dot_dimension_numbers<[1], [0], [0], [1], [0, 0, 1, 1], [], []>} : vector<128x64xf32>, vector<64x32xf32>, vector<128x32xf32> -> vector<128x32xf32>
    %cst_142 = arith.constant dense<0.000000e+00> : vector<128x32xf32>
    %436 = tpu.matmul %431, %434, %cst_142 {dimension_numbers = #tpu.dot_dimension_numbers<[1], [0], [0], [1], [0, 0, 1, 1], [], []>} : vector<128x64xf32>, vector<64x32xf32>, vector<128x32xf32> -> vector<128x32xf32>
    %437 = arith.addf %435, %436 : vector<128x32xf32>
    %c0_143 = arith.constant 0 : index
    %c0_144 = arith.constant 0 : index
    %438 = vector.load %arg10[%c0_143, %c0_144] : memref<128x64xf32, #tpu.memory_space<vmem>>, vector<128x64xf32>
    %439 = arith.truncf %430 : vector<64x32xf32> to vector<64x32xbf16>
    %440 = arith.extf %439 : vector<64x32xbf16> to vector<64x32xf32>
    %441 = arith.subf %430, %440 : vector<64x32xf32>
    %cst_145 = arith.constant dense<0.000000e+00> : vector<128x32xf32>
    %442 = tpu.matmul %438, %440, %cst_145 {dimension_numbers = #tpu.dot_dimension_numbers<[1], [0], [0], [1], [0, 0, 1, 1], [], []>} : vector<128x64xf32>, vector<64x32xf32>, vector<128x32xf32> -> vector<128x32xf32>
    %cst_146 = arith.constant dense<0.000000e+00> : vector<128x32xf32>
    %443 = tpu.matmul %438, %441, %cst_146 {dimension_numbers = #tpu.dot_dimension_numbers<[1], [0], [0], [1], [0, 0, 1, 1], [], []>} : vector<128x64xf32>, vector<64x32xf32>, vector<128x32xf32> -> vector<128x32xf32>
    %444 = arith.addf %442, %443 : vector<128x32xf32>
    %445 = arith.addf %437, %444 : vector<128x32xf32>
    %c0_147 = arith.constant 0 : index
    %c0_148 = arith.constant 0 : index
    %c0_149 = arith.constant 0 : index
    %446 = vector.load %arg11[%c0_147, %c0_148, %c0_149] : memref<1x128x32xf32, #tpu.memory_space<vmem>>, vector<1x128x32xf32>
    %447 = vector.shape_cast %446 : vector<1x128x32xf32> to vector<128x32xf32>
    %448 = vector.shape_cast %445 : vector<128x32xf32> to vector<1x128x32xf32>
    tpu.vector_store %arg11[%c0_147, %c0_148, %c0_149], %448 {strides = array<i32>} : memref<1x128x32xf32, #tpu.memory_space<vmem>>, vector<1x128x32xf32>,
    return
  }
  func.func @transform_0(%arg0: i32) -> (i32, i32, i32) {
    %c0_i32 = arith.constant 0 : i32
    %c0_i32_0 = arith.constant 0 : i32
    %c0_i32_1 = arith.constant 0 : i32
    return %arg0, %c0_i32, %c0_i32_0 : i32, i32, i32
  }
  func.func @transform_1(%arg0: i32) -> (i32, i32, i32, i32) {
    %c0_i32 = arith.constant 0 : i32
    %c0_i32_0 = arith.constant 0 : i32
    %c0_i32_1 = arith.constant 0 : i32
    %c0_i32_2 = arith.constant 0 : i32
    return %arg0, %c0_i32, %c0_i32_0, %c0_i32_1 : i32, i32, i32, i32
  }
  func.func @transform_2(%arg0: i32) -> (i32, i32, i32, i32) {
    %c2_i32 = arith.constant 2 : i32
    %0 = arith.addi %arg0, %c2_i32 : i32
    %c0_i32 = arith.constant 0 : i32
    %c0_i32_0 = arith.constant 0 : i32
    %c0_i32_1 = arith.constant 0 : i32
    %c0_i32_2 = arith.constant 0 : i32
    return %0, %c0_i32, %c0_i32_0, %c0_i32_1 : i32, i32, i32, i32
  }
  func.func @transform_3(%arg0: i32) -> (i32, i32, i32, i32) {
    %c4_i32 = arith.constant 4 : i32
    %0 = arith.addi %arg0, %c4_i32 : i32
    %c0_i32 = arith.constant 0 : i32
    %c0_i32_0 = arith.constant 0 : i32
    %c0_i32_1 = arith.constant 0 : i32
    %c0_i32_2 = arith.constant 0 : i32
    return %0, %c0_i32, %c0_i32_0, %c0_i32_1 : i32, i32, i32, i32
  }
  func.func @transform_4(%arg0: i32) -> (i32, i32, i32, i32) {
    %c0_i32 = arith.constant 0 : i32
    %c0_i32_0 = arith.constant 0 : i32
    %c0_i32_1 = arith.constant 0 : i32
    %c0_i32_2 = arith.constant 0 : i32
    %c0_i32_3 = arith.constant 0 : i32
    return %c0_i32, %c0_i32_0, %c0_i32_1, %c0_i32_2 : i32, i32, i32, i32
  }
  func.func @transform_5(%arg0: i32) -> (i32, i32) {
    %c0_i32 = arith.constant 0 : i32
    %c0_i32_0 = arith.constant 0 : i32
    %c0_i32_1 = arith.constant 0 : i32
    return %c0_i32, %c0_i32_0 : i32, i32
  }
  func.func @transform_6(%arg0: i32) -> (i32, i32) {
    %c0_i32 = arith.constant 0 : i32
    %c0_i32_0 = arith.constant 0 : i32
    %c0_i32_1 = arith.constant 0 : i32
    return %c0_i32, %c0_i32_0 : i32, i32
  }
  func.func @transform_7(%arg0: i32) -> (i32, i32) {
    %c0_i32 = arith.constant 0 : i32
    %c0_i32_0 = arith.constant 0 : i32
    %c0_i32_1 = arith.constant 0 : i32
    return %c0_i32, %c0_i32_0 : i32, i32
  }
  func.func @transform_8(%arg0: i32) -> (i32, i32) {
    %c0_i32 = arith.constant 0 : i32
    %c0_i32_0 = arith.constant 0 : i32
    %c0_i32_1 = arith.constant 0 : i32
    return %c0_i32, %c0_i32_0 : i32, i32
  }
  func.func @transform_9(%arg0: i32) -> (i32, i32) {
    %c0_i32 = arith.constant 0 : i32
    %c0_i32_0 = arith.constant 0 : i32
    %c0_i32_1 = arith.constant 0 : i32
    return %c0_i32, %c0_i32_0 : i32, i32
  }
  func.func @transform_10(%arg0: i32) -> (i32, i32, i32) {
    %c0_i32 = arith.constant 0 : i32
    %c0_i32_0 = arith.constant 0 : i32
    %c0_i32_1 = arith.constant 0 : i32
    return %arg0, %c0_i32, %c0_i32_0 : i32, i32, i32
  }
  func.func @transform_11(%arg0: i32) -> (i32, i32, i32) {
    %c0_i32 = arith.constant 0 : i32
    %c0_i32_0 = arith.constant 0 : i32
    %c0_i32_1 = arith.constant 0 : i32
    return %arg0, %c0_i32, %c0_i32_0 : i32, i32, i32
  }
}

</mosaic_0001>

<llo_original>
// kernel: upfrg3_forward.1
$region0: #{upfrg3_forward.1}
  #allocation0 [shape = 'u32[]', space=smem, size = 0x4, offset = 0x4, fixed_abs, tag = 'smem constant byte address 0x4 - core index']
  #allocation1 [shape = 'u32[144,128]{1,0:T(1,128)}', space=vmem, size = 0x12000, scoped, tag = 'internal scratch']
  %s0 = inlined_call_operand.vmem [shape: f32[2,4,256], index: 0, kind: input, shape index: {}]
  %s1 = inlined_call_operand.vmem [shape: f32[6,4,16,16], index: 1, kind: input, shape index: {}, may-alias: {1,2,3}]
  %s2 = inlined_call_operand.vmem [shape: f32[6,4,16,16], index: 2, kind: input, shape index: {}, may-alias: {1,2,3}]
  %s3 = inlined_call_operand.vmem [shape: f32[6,4,16,16], index: 3, kind: input, shape index: {}, may-alias: {1,2,3}]
  %s4 = inlined_call_operand.vmem [shape: f32[2,2,4,37], index: 4, kind: input, shape index: {}]
  %s5 = inlined_call_operand.vmem [shape: f32[3,37], index: 5, kind: input, shape index: {}]
  %s6 = inlined_call_operand.vmem [shape: f32[16,32], index: 6, kind: input, shape index: {}]
  %s7 = inlined_call_operand.vmem [shape: f32[16,32], index: 7, kind: input, shape index: {}]
  %s8 = inlined_call_operand.vmem [shape: f32[128,64], index: 8, kind: input, shape index: {}]
  %s9 = inlined_call_operand.vmem [shape: f32[128,64], index: 9, kind: input, shape index: {}]
  %s10 = inlined_call_operand.hbm [shape: f32[2,128,32], index: 10, kind: output, shape index: {0}]
  %s11 = inlined_call_operand.vmem [shape: f32[2,3,256], index: 11, kind: output, shape index: {1}]
  %12 = xla_tuple %s10, %s11
  %s13 = sld [smem:[#allocation0]]
  $region81: #{upfrg3_forward.1} parent=0
    _
  %s15 = ssub.s32 1, %s13
  %s16 = scalar_select 0, %s15, %s13
  $region1: #{upfrg3_forward.1} parent=0
    #allocation2 [shape = 'u8[131072]{0}', space=vmem, size = 0x20000, scoped, tag = 'output window, operand 0']
    #allocation3 [shape = 's32[2]{0}', space=sflag, size = 0x8, scoped, tag = 'scoped memory for upfrg3_forward.1']
    %17 = vsyncpa [#allocation3], 0
    %s18 = scalar_lea.sflag [#allocation3], 1
    %19 = vsyncpa %s18, 0
    loop: start=0, step=1, limit=4
    $region2: #{upfrg3_forward.1} parent=1 // loop_pre_header
      _
    $region3: #{upfrg3_forward.1} parent=1 // loop_header
      %s21 = sphi 0, %s25
      %p22 = scmp.ge.s32.totalorder %s21, 4
      %s31 = sphi 0, %s33
      %s34 = sphi 0, %s31
      %s35 = sphi 0, %s34
      %s51 = sphi 0, %s35
      %s57 = sphi 0, %s59
      %s60 = sphi 0, %s57
      %s61 = sphi 0, %s60
      %s77 = sphi 0, %s61
      %s85 = sphi 0, %s87
      %s88 = sphi 0, %s85
      %s89 = sphi 0, %s88
      %s105 = sphi 0, %s89
      %s113 = sphi 0, %s115
      %s116 = sphi 0, %s113
      %s117 = sphi 0, %s116
      %s133 = sphi 0, %s117
      %s137 = sphi 0, %s137
      %s139 = sphi 0, %s137
      %s140 = sphi 0, %s139
      %s154 = sphi 0, %s140
      %s158 = sphi 0, %s158
      %s160 = sphi 0, %s158
      %s161 = sphi 0, %s160
      %s175 = sphi 0, %s161
      %s179 = sphi 0, %s179
      %s181 = sphi 0, %s179
      %s182 = sphi 0, %s181
      %s196 = sphi 0, %s182
      %s200 = sphi 0, %s200
      %s202 = sphi 0, %s200
      %s203 = sphi 0, %s202
      %s217 = sphi 0, %s203
      %s221 = sphi 0, %s221
      %s223 = sphi 0, %s221
      %s224 = sphi 0, %s223
      %s238 = sphi 0, %s224
      %s242 = sphi 0, %s242
      %s244 = sphi 0, %s242
      %s245 = sphi 0, %s244
      %s259 = sphi 0, %s245
      %s265 = sphi 0, %s267
      %s268 = sphi 0, %s265
      %s269 = sphi 0, %s268
      %s285 = sphi 0, %s269
      %s291 = sphi 0, %s293
      %s294 = sphi 0, %s291
      %s295 = sphi 0, %s294
      %s311 = sphi 0, %s295
    $region4: #{upfrg3_forward.1} parent=1 // loop_header_branch
      %24 = sbr.rel (%p22) target = $region8
    $region5: #{upfrg3_forward.1} parent=1 // loop_body
      %s26 = ssub.s32 %s21, 1
      %s27 = ssub.s32 %s21, 2
      %s28 = sadd.s32 %s21, 1
      %s29 = ssub.s32 %s21, %s28
      %p30 = scmp.eq.s32.totalorder %s29, 0
      %s32 = sadd.s32 %s31, 1
      %s33 = scalar_select %p30, %s31, %s32
      %p36 = pneg %p30
      %p37 = scmp.eq.s32.totalorder %s21, 1
      %p38 = por %p36, %p37
      %p39 = scmp.ne.s32.totalorder %s31, %s34
      %p40 = scmp.eq.s32.totalorder %s21, 0
      %p41 = por %p39, %p40
      %p42 = scmp.ne.s32.totalorder %s31, %s34
      %p43 = scmp.eq.s32.totalorder %s26, 1
      %p44 = por %p42, %p43
      %p45 = scmp.ne.s32.totalorder %s34, %s35
      %p46 = scmp.eq.s32.totalorder %s26, 0
      %p47 = por %p45, %p46
      %p48 = scmp.ne.s32.totalorder %s34, %s35
      %p49 = scmp.eq.s32.totalorder %s27, 1
      %p50 = por %p48, %p49
      %p52 = scmp.ne.s32.totalorder %s35, %s51
      %p53 = scmp.eq.s32.totalorder %s27, 0
      %p54 = por %p52, %p53
      %s55 = ssub.s32 %s21, %s28
      %p56 = scmp.eq.s32.totalorder %s55, 0
      %s58 = sadd.s32 %s57, 1
      %s59 = scalar_select %p56, %s57, %s58
      %p62 = pneg %p56
      %p63 = scmp.eq.s32.totalorder %s21, 1
      %p64 = por %p62, %p63
      %p65 = scmp.ne.s32.totalorder %s57, %s60
      %p66 = scmp.eq.s32.totalorder %s21, 0
      %p67 = por %p65, %p66
      %p68 = scmp.ne.s32.totalorder %s57, %s60
      %p69 = scmp.eq.s32.totalorder %s26, 1
      %p70 = por %p68, %p69
      %p71 = scmp.ne.s32.totalorder %s60, %s61
      %p72 = scmp.eq.s32.totalorder %s26, 0
      %p73 = por %p71, %p72
      %p74 = scmp.ne.s32.totalorder %s60, %s61
      %p75 = scmp.eq.s32.totalorder %s27, 1
      %p76 = por %p74, %p75
      %p78 = scmp.ne.s32.totalorder %s61, %s77
      %p79 = scmp.eq.s32.totalorder %s27, 0
      %p80 = por %p78, %p79
      %s81 = sadd.s32 %s21, 2
      %s82 = sadd.s32 %s28, 2
      %s83 = ssub.s32 %s81, %s82
      %p84 = scmp.eq.s32.totalorder %s83, 0
      %s86 = sadd.s32 %s85, 1
      %s87 = scalar_select %p84, %s85, %s86
      %p90 = pneg %p84
      %p91 = scmp.eq.s32.totalorder %s21, 1
      %p92 = por %p90, %p91
      %p93 = scmp.ne.s32.totalorder %s85, %s88
      %p94 = scmp.eq.s32.totalorder %s21, 0
      %p95 = por %p93, %p94
      %p96 = scmp.ne.s32.totalorder %s85, %s88
      %p97 = scmp.eq.s32.totalorder %s26, 1
      %p98 = por %p96, %p97
      %p99 = scmp.ne.s32.totalorder %s88, %s89
      %p100 = scmp.eq.s32.totalorder %s26, 0
      %p101 = por %p99, %p100
      %p102 = scmp.ne.s32.totalorder %s88, %s89
      %p103 = scmp.eq.s32.totalorder %s27, 1
      %p104 = por %p102, %p103
      %p106 = scmp.ne.s32.totalorder %s89, %s105
      %p107 = scmp.eq.s32.totalorder %s27, 0
      %p108 = por %p106, %p107
      %s109 = sadd.s32 %s21, 4
      %s110 = sadd.s32 %s28, 4
      %s111 = ssub.s32 %s109, %s110
      %p112 = scmp.eq.s32.totalorder %s111, 0
      %s114 = sadd.s32 %s113, 1
      %s115 = scalar_select %p112, %s113, %s114
      %p118 = pneg %p112
      %p119 = scmp.eq.s32.totalorder %s21, 1
      %p120 = por %p118, %p119
      %p121 = scmp.ne.s32.totalorder %s113, %s116
      %p122 = scmp.eq.s32.totalorder %s21, 0
      %p123 = por %p121, %p122
      %p124 = scmp.ne.s32.totalorder %s113, %s116
      %p125 = scmp.eq.s32.totalorder %s26, 1
      %p126 = por %p124, %p125
      %p127 = scmp.ne.s32.totalorder %s116, %s117
      %p128 = scmp.eq.s32.totalorder %s26, 0
      %p129 = por %p127, %p128
      %p130 = scmp.ne.s32.totalorder %s116, %s117
      %p131 = scmp.eq.s32.totalorder %s27, 1
      %p132 = por %p130, %p131
      %p134 = scmp.ne.s32.totalorder %s117, %s133
      %p135 = scmp.eq.s32.totalorder %s27, 0
      %p136 = por %p134, %p135
      %s138 = sadd.s32 %s137, 1
      %p141 = scmp.eq.s32.totalorder %s21, 1
      %p142 = scmp.ne.s32.totalorder %s137, %s139
      %p143 = scmp.eq.s32.totalorder %s21, 0
      %p144 = por %p142, %p143
      %p145 = scmp.ne.s32.totalorder %s137, %s139
      %p146 = scmp.eq.s32.totalorder %s26, 1
      %p147 = por %p145, %p146
      %p148 = scmp.ne.s32.totalorder %s139, %s140
      %p149 = scmp.eq.s32.totalorder %s26, 0
      %p150 = por %p148, %p149
      %p151 = scmp.ne.s32.totalorder %s139, %s140
      %p152 = scmp.eq.s32.totalorder %s27, 1
      %p153 = por %p151, %p152
      %p155 = scmp.ne.s32.totalorder %s140, %s154
      %p156 = scmp.eq.s32.totalorder %s27, 0
      %p157 = por %p155, %p156
      %s159 = sadd.s32 %s158, 1
      %p162 = scmp.eq.s32.totalorder %s21, 1
      %p163 = scmp.ne.s32.totalorder %s158, %s160
      %p164 = scmp.eq.s32.totalorder %s21, 0
      %p165 = por %p163, %p164
      %p166 = scmp.ne.s32.totalorder %s158, %s160
      %p167 = scmp.eq.s32.totalorder %s26, 1
      %p168 = por %p166, %p167
      %p169 = scmp.ne.s32.totalorder %s160, %s161
      %p170 = scmp.eq.s32.totalorder %s26, 0
      %p171 = por %p169, %p170
      %p172 = scmp.ne.s32.totalorder %s160, %s161
      %p173 = scmp.eq.s32.totalorder %s27, 1
      %p174 = por %p172, %p173
      %p176 = scmp.ne.s32.totalorder %s161, %s175
      %p177 = scmp.eq.s32.totalorder %s27, 0
      %p178 = por %p176, %p177
      %s180 = sadd.s32 %s179, 1
      %p183 = scmp.eq.s32.totalorder %s21, 1
      %p184 = scmp.ne.s32.totalorder %s179, %s181
      %p185 = scmp.eq.s32.totalorder %s21, 0
      %p186 = por %p184, %p185
      %p187 = scmp.ne.s32.totalorder %s179, %s181
      %p188 = scmp.eq.s32.totalorder %s26, 1
      %p189 = por %p187, %p188
      %p190 = scmp.ne.s32.totalorder %s181, %s182
      %p191 = scmp.eq.s32.totalorder %s26, 0
      %p192 = por %p190, %p191
      %p193 = scmp.ne.s32.totalorder %s181, %s182
      %p194 = scmp.eq.s32.totalorder %s27, 1
      %p195 = por %p193, %p194
      %p197 = scmp.ne.s32.totalorder %s182, %s196
      %p198 = scmp.eq.s32.totalorder %s27, 0
      %p199 = por %p197, %p198
      %s201 = sadd.s32 %s200, 1
      %p204 = scmp.eq.s32.totalorder %s21, 1
      %p205 = scmp.ne.s32.totalorder %s200, %s202
      %p206 = scmp.eq.s32.totalorder %s21, 0
      %p207 = por %p205, %p206
      %p208 = scmp.ne.s32.totalorder %s200, %s202
      %p209 = scmp.eq.s32.totalorder %s26, 1
      %p210 = por %p208, %p209
      %p211 = scmp.ne.s32.totalorder %s202, %s203
      %p212 = scmp.eq.s32.totalorder %s26, 0
      %p213 = por %p211, %p212
      %p214 = scmp.ne.s32.totalorder %s202, %s203
      %p215 = scmp.eq.s32.totalorder %s27, 1
      %p216 = por %p214, %p215
      %p218 = scmp.ne.s32.totalorder %s203, %s217
      %p219 = scmp.eq.s32.totalorder %s27, 0
      %p220 = por %p218, %p219
      %s222 = sadd.s32 %s221, 1
      %p225 = scmp.eq.s32.totalorder %s21, 1
      %p226 = scmp.ne.s32.totalorder %s221, %s223
      %p227 = scmp.eq.s32.totalorder %s21, 0
      %p228 = por %p226, %p227
      %p229 = scmp.ne.s32.totalorder %s221, %s223
      %p230 = scmp.eq.s32.totalorder %s26, 1
      %p231 = por %p229, %p230
      %p232 = scmp.ne.s32.totalorder %s223, %s224
      %p233 = scmp.eq.s32.totalorder %s26, 0
      %p234 = por %p232, %p233
      %p235 = scmp.ne.s32.totalorder %s223, %s224
      %p236 = scmp.eq.s32.totalorder %s27, 1
      %p237 = por %p235, %p236
      %p239 = scmp.ne.s32.totalorder %s224, %s238
      %p240 = scmp.eq.s32.totalorder %s27, 0
      %p241 = por %p239, %p240
      %s243 = sadd.s32 %s242, 1
      %p246 = scmp.eq.s32.totalorder %s21, 1
      %p247 = scmp.ne.s32.totalorder %s242, %s244
      %p248 = scmp.eq.s32.totalorder %s21, 0
      %p249 = por %p247, %p248
      %p250 = scmp.ne.s32.totalorder %s242, %s244
      %p251 = scmp.eq.s32.totalorder %s26, 1
      %p252 = por %p250, %p251
      %p253 = scmp.ne.s32.totalorder %s244, %s245
      %p254 = scmp.eq.s32.totalorder %s26, 0
      %p255 = por %p253, %p254
      %p256 = scmp.ne.s32.totalorder %s244, %s245
      %p257 = scmp.eq.s32.totalorder %s27, 1
      %p258 = por %p256, %p257
      %p260 = scmp.ne.s32.totalorder %s245, %s259
      %p261 = scmp.eq.s32.totalorder %s27, 0
      %p262 = por %p260, %p261
      %s263 = ssub.s32 %s21, %s28
      %p264 = scmp.eq.s32.totalorder %s263, 0
      %s266 = sadd.s32 %s265, 1
      %s267 = scalar_select %p264, %s265, %s266
      %p270 = pneg %p264
      %p271 = scmp.eq.s32.totalorder %s21, 1
      %p272 = por %p270, %p271
      %p273 = scmp.ne.s32.totalorder %s265, %s268
      %p274 = scmp.eq.s32.totalorder %s21, 0
      %p275 = por %p273, %p274
      %p276 = scmp.ne.s32.totalorder %s265, %s268
      %p277 = scmp.eq.s32.totalorder %s26, 1
      %p278 = por %p276, %p277
      %p279 = scmp.ne.s32.totalorder %s268, %s269
      %p280 = scmp.eq.s32.totalorder %s26, 0
      %p281 = por %p279, %p280
      %p282 = scmp.ne.s32.totalorder %s268, %s269
      %p283 = scmp.eq.s32.totalorder %s27, 1
      %p284 = por %p282, %p283
      %p286 = scmp.ne.s32.totalorder %s269, %s285
      %p287 = scmp.eq.s32.totalorder %s27, 0
      %p288 = por %p286, %p287
      %s289 = ssub.s32 %s21, %s28
      %p290 = scmp.eq.s32.totalorder %s289, 0
      %s292 = sadd.s32 %s291, 1
      %s293 = scalar_select %p290, %s291, %s292
      %p296 = pneg %p290
      %p297 = scmp.eq.s32.totalorder %s21, 1
      %p298 = por %p296, %p297
      %p299 = scmp.ne.s32.totalorder %s291, %s294
      %p300 = scmp.eq.s32.totalorder %s21, 0
      %p301 = por %p299, %p300
      %p302 = scmp.ne.s32.totalorder %s291, %s294
      %p303 = scmp.eq.s32.totalorder %s26, 1
      %p304 = por %p302, %p303
      %p305 = scmp.ne.s32.totalorder %s294, %s295
      %p306 = scmp.eq.s32.totalorder %s26, 0
      %p307 = por %p305, %p306
      %p308 = scmp.ne.s32.totalorder %s294, %s295
      %p309 = scmp.eq.s32.totalorder %s27, 1
      %p310 = por %p308, %p309
      %p312 = scmp.ne.s32.totalorder %s295, %s311
      %p313 = scmp.eq.s32.totalorder %s27, 0
      %p314 = por %p312, %p313
      %p315 = scmp.le.s32.totalorder 1, %s21
      %p316 = scmp.lt.s32.totalorder %s21, 3
      %p317 = pnand %p315, %p316
      %p318 = pneg %p317
      // Predicated region
      $region9: #{upfrg3_forward.1} parent=5 // pred_check
        _
      $region10: #{upfrg3_forward.1} parent=5 // pred_check_branch
        %320 = sbr.rel (%p317) target = $region12
      $region11: #{upfrg3_forward.1} parent=5 // pred_region
        %s321 = ssub.s32 %s21, 1
        // Predicated region
        $region13: #{upfrg3_forward.1} parent=11 // pred_check
          %p322 = pneg %p150
        $region14: #{upfrg3_forward.1} parent=11 // pred_check_branch
          %324 = sbr.rel (%p322) target = $region16
        $region15: #{upfrg3_forward.1} parent=11 // pred_region
          _
        $region16: #{upfrg3_forward.1} parent=11 // pred_fallthru
          _
        // Predicated region
        $region17: #{upfrg3_forward.1} parent=11 // pred_check
          %p325 = pneg %p171
        $region18: #{upfrg3_forward.1} parent=11 // pred_check_branch
          %327 = sbr.rel (%p325) target = $region20
        $region19: #{upfrg3_forward.1} parent=11 // pred_region
          _
        $region20: #{upfrg3_forward.1} parent=11 // pred_fallthru
          _
        // Predicated region
        $region21: #{upfrg3_forward.1} parent=11 // pred_check
          %p328 = pneg %p192
        $region22: #{upfrg3_forward.1} parent=11 // pred_check_branch
          %330 = sbr.rel (%p328) target = $region24
        $region23: #{upfrg3_forward.1} parent=11 // pred_region
          _
        $region24: #{upfrg3_forward.1} parent=11 // pred_fallthru
          _
        // Predicated region
        $region25: #{upfrg3_forward.1} parent=11 // pred_check
          %p331 = pneg %p213
        $region26: #{upfrg3_forward.1} parent=11 // pred_check_branch
          %333 = sbr.rel (%p331) target = $region28
        $region27: #{upfrg3_forward.1} parent=11 // pred_region
          _
        $region28: #{upfrg3_forward.1} parent=11 // pred_fallthru
          _
        // Predicated region
        $region29: #{upfrg3_forward.1} parent=11 // pred_check
          %p334 = pneg %p234
        $region30: #{upfrg3_forward.1} parent=11 // pred_check_branch
          %336 = sbr.rel (%p334) target = $region32
        $region31: #{upfrg3_forward.1} parent=11 // pred_region
          _
        $region32: #{upfrg3_forward.1} parent=11 // pred_fallthru
          _
        // Predicated region
        $region33: #{upfrg3_forward.1} parent=11 // pred_check
          %p337 = pneg %p255
        $region34: #{upfrg3_forward.1} parent=11 // pred_check_branch
          %339 = sbr.rel (%p337) target = $region36
        $region35: #{upfrg3_forward.1} parent=11 // pred_region
          _
        $region36: #{upfrg3_forward.1} parent=11 // pred_fallthru
          _
      $region12: #{upfrg3_forward.1} parent=5 // pred_fallthru
        _
      %p340 = scmp.lt.s32.totalorder %s21, 2
      // Predicated region
      $region37: #{upfrg3_forward.1} parent=5 // pred_check
        %p341 = pneg %p340
      $region38: #{upfrg3_forward.1} parent=5 // pred_check_branch
        %343 = sbr.rel (%p341) target = $region40
      $region39: #{upfrg3_forward.1} parent=5 // pred_region
        // Predicated region
        $region41: #{upfrg3_forward.1} parent=39 // pred_check
          %p344 = pneg %p41
        $region42: #{upfrg3_forward.1} parent=39 // pred_check_branch
          %346 = sbr.rel (%p344) target = $region44
        $region43: #{upfrg3_forward.1} parent=39 // pred_region
          %p347 = scmp.lt.s32.totalorder %s21, 1
          %s348 = scalar_select %p347, %s21, 1
          %s349 = smul.addr %s348, 2
          %s350 = smul.addr %s349, 4
          %s351 = scalar_lea.vmem %s0, %s350
        $region44: #{upfrg3_forward.1} parent=39 // pred_fallthru
          _
        // Predicated region
        $region45: #{upfrg3_forward.1} parent=39 // pred_check
          %p352 = pneg %p67
        $region46: #{upfrg3_forward.1} parent=39 // pred_check_branch
          %354 = sbr.rel (%p352) target = $region48
        $region47: #{upfrg3_forward.1} parent=39 // pred_region
          %p355 = scmp.lt.s32.totalorder %s21, 5
          %s356 = scalar_select %p355, %s21, 5
          %s357 = smul.addr %s356, 8
          %s358 = smul.addr %s357, 8
          %s359 = scalar_lea.vmem %s1, %s358
        $region48: #{upfrg3_forward.1} parent=39 // pred_fallthru
          _
        // Predicated region
        $region49: #{upfrg3_forward.1} parent=39 // pred_check
          %p360 = pneg %p95
        $region50: #{upfrg3_forward.1} parent=39 // pred_check_branch
          %362 = sbr.rel (%p360) target = $region52
        $region51: #{upfrg3_forward.1} parent=39 // pred_region
          %s363 = sadd.s32 %s21, 2
          %p364 = scmp.lt.s32.totalorder %s363, 5
          %s365 = scalar_select %p364, %s363, 5
          %s366 = smul.addr %s365, 8
          %s367 = smul.addr %s366, 8
          %s368 = scalar_lea.vmem %s2, %s367
          %s369 = sadd.s32 %s21, 2
        $region52: #{upfrg3_forward.1} parent=39 // pred_fallthru
          _
        // Predicated region
        $region53: #{upfrg3_forward.1} parent=39 // pred_check
          %p370 = pneg %p123
        $region54: #{upfrg3_forward.1} parent=39 // pred_check_branch
          %372 = sbr.rel (%p370) target = $region56
        $region55: #{upfrg3_forward.1} parent=39 // pred_region
          %s373 = sadd.s32 %s21, 4
          %p374 = scmp.lt.s32.totalorder %s373, 5
          %s375 = scalar_select %p374, %s373, 5
          %s376 = smul.addr %s375, 8
          %s377 = smul.addr %s376, 8
          %s378 = scalar_lea.vmem %s3, %s377
          %s379 = sadd.s32 %s21, 4
        $region56: #{upfrg3_forward.1} parent=39 // pred_fallthru
          _
      $region40: #{upfrg3_forward.1} parent=5 // pred_fallthru
        _
      %p380 = scmp.le.s32.totalorder 1, %s21
      %p381 = scmp.lt.s32.totalorder %s21, 3
      %p382 = pnand %p380, %p381
      %p383 = pneg %p382
      // Predicated region
      $region57: #{upfrg3_forward.1} parent=5 // pred_check
        _
      $region58: #{upfrg3_forward.1} parent=5 // pred_check_branch
        %385 = sbr.rel (%p382) target = $region60
      $region59: #{upfrg3_forward.1} parent=5 // pred_region
        %s386 = ssub.s32 %s21, 1
        %p387 = scmp.lt.s32.totalorder %s26, 1
        %s388 = scalar_select %p387, %s26, 1
        %s389 = smul.addr %s388, 2
        %s390 = smul.addr %s389, 4
        %s391 = scalar_lea.vmem %s0, %s390
        %p392 = pneg %p47
        %p393 = pneg %p44
        %p394 = scmp.lt.s32.totalorder %s26, 5
        %s395 = scalar_select %p394, %s26, 5
        %s396 = smul.addr %s395, 8
        %s397 = smul.addr %s396, 8
        %s398 = scalar_lea.vmem %s1, %s397
        %p399 = pneg %p73
        %p400 = pneg %p70
        %s401 = sadd.s32 %s26, 2
        %p402 = scmp.lt.s32.totalorder %s401, 5
        %s403 = scalar_select %p402, %s401, 5
        %s404 = smul.addr %s403, 8
        %s405 = smul.addr %s404, 8
        %s406 = scalar_lea.vmem %s2, %s405
        %p407 = pneg %p101
        %p408 = pneg %p98
        %s409 = sadd.s32 %s26, 4
        %p410 = scmp.lt.s32.totalorder %s409, 5
        %s411 = scalar_select %p410, %s409, 5
        %s412 = smul.addr %s411, 8
        %s413 = smul.addr %s412, 8
        %s414 = scalar_lea.vmem %s3, %s413
        %p415 = pneg %p129
        %p416 = pneg %p126
        %p417 = pneg %p150
        %p418 = pneg %p147
        %p419 = pneg %p171
        %p420 = pneg %p168
        %p421 = pneg %p192
        %p422 = pneg %p189
        %p423 = pneg %p213
        %p424 = pneg %p210
        %p425 = pneg %p234
        %p426 = pneg %p231
        %p427 = pneg %p255
        %p428 = pneg %p252
        %p429 = pneg %p281
        %p430 = pneg %p278
        %s431 = sand.u32 %s268, 1
        %s432 = scalar_lea.sflag [#allocation3], %s431
        %s433 = sand.u32 %s268, 1
        %s434 = smul.addr %s433, 128
        %s435 = scalar_lea.vmem [#allocation2], %s434
        %p436 = pneg %p307
        %p437 = pneg %p304
        %p438 = scmp.lt.s32.totalorder %s26, 1
        %s439 = scalar_select %p438, %s26, 1
        %s440 = smul.addr %s439, 2
        %s441 = smul.addr %s440, 4
        %s442 = scalar_lea.vmem %s11, %s441
        %p443 = scmp.lt.s32.totalorder %s26, 1
        %s444 = scalar_select %p443, %s26, 1
        %s445 = smul.addr %s444, 2
        %s446 = smul.addr %s445, 4
        %s447 = scalar_lea.vmem %s0, %s446
        %p448 = scmp.lt.s32.totalorder %s26, 5
        %s449 = scalar_select %p448, %s26, 5
        %s450 = smul.addr %s449, 8
        %s451 = smul.addr %s450, 8
        %s452 = scalar_lea.vmem %s1, %s451
        %s453 = sadd.s32 %s26, 2
        %p454 = scmp.lt.s32.totalorder %s453, 5
        %s455 = scalar_select %p454, %s453, 5
        %s456 = smul.addr %s455, 8
        %s457 = smul.addr %s456, 8
        %s458 = scalar_lea.vmem %s2, %s457
        %s459 = sadd.s32 %s26, 2
        %s460 = sadd.s32 %s26, 4
        %p461 = scmp.lt.s32.totalorder %s460, 5
        %s462 = scalar_select %p461, %s460, 5
        %s463 = smul.addr %s462, 8
        %s464 = smul.addr %s463, 8
        %s465 = scalar_lea.vmem %s3, %s464
        %s466 = sadd.s32 %s26, 4
        %p467 = scmp.lt.s32.totalorder %s26, 1
        %s468 = scalar_select %p467, %s26, 1
        %s469 = smul.addr %s468, 2
        %s470 = smul.addr %s469, 4
        %s471 = scalar_lea.vmem %s11, %s470
        %v472 = vld [vmem:[%s447] sm:$0xff]
        %v473 = vlaneseq
        %v474 = vand.u32 %v473, 127
        %v475 = vadd.s32 %v474, 128
        %vm476 = vcmp.lt.s32.totalorder %v474, 0
        %v477 = vsub.s32 0, %v474
        %v478 = vsel %vm476, %v477, %v474
        %v479 = vshrl.u32 %v478, 4
        %v480 = vand.u32 %v478, 15
        %v481 = vsub.s32 0, %v480
        %v482 = vsel %vm476, %v481, %v480
        %vm483 = vcmp.lt.s32.totalorder %v475, 0
        %v484 = vsub.s32 0, %v475
        %v485 = vsel %vm483, %v484, %v475
        %v486 = vshrl.u32 %v485, 4
        %v487 = vand.u32 %v485, 15
        %v488 = vsub.s32 0, %v487
        %v489 = vsel %vm483, %v488, %v487
        %vm490 = vcmp.ne.s32.totalorder %v482, 0
        %vm491 = vcmp.ne.s32.totalorder %v489, 0
        %vm492 = vcmp.lt.s32.totalorder %v482, 0
        %vm493 = vcmp.lt.s32.totalorder %v489, 0
        %vm494 = vmand %vm492, %vm490
        %vm495 = vmand %vm493, %vm491
        %v496 = vadd.s32 %v482, 16
        %v497 = vadd.s32 %v489, 16
        %v498 = vsel %vm494, %v496, %v482
        %v499 = vsel %vm495, %v497, %v489
        %vm500 = vcmp.ge.s32.totalorder %v498, 1
        %vm501 = vcmp.ge.s32.totalorder %v499, 1
        %vm502 = vcmp.lt.s32.totalorder %v498, 15
        %vm503 = vcmp.lt.s32.totalorder %v499, 15
        %v504 = vld [vmem:[%s4] sm:$0xf]
        %v506 = vcombine.high %v472, %v472
        %507 = vrot.lane.b32.xlu0 %v472, 17
        %v508 = vpop.permute.xlu0 %507
        %509 = vrot.lane.b32.xlu0 %v506, 17
        %v510 = vpop.permute.xlu0 %509
        %vm511 = vcmask 138240
        %v512 = vsel %vm511, %v508, %v510
        %v515 = vsel %vm511, 0.0, %v508
        %v516 = vsel %vm500, 1, 0
        %v517 = vsel %vm501, 1, 0
        %vm518 = vcmp.eq.s32.totalorder %v516, 1
        %vm519 = vcmp.eq.s32.totalorder %v517, 1
        %v520 = vsel %vm518, %v515, 0.0
        %v521 = vsel %vm519, %v512, 0.0
        %522 = vrot.lane.b32.xlu0 %v472, 16
        %v523 = vpop.permute.xlu0 %522
        %524 = vrot.lane.b32.xlu0 %v506, 16
        %v525 = vpop.permute.xlu0 %524
        %vm526 = vcmask 130048
        %v527 = vsel %vm526, %v523, %v525
        %v529 = vsel %vm526, 0.0, %v523
        %530 = vrot.lane.b32.xlu0 %v472, 15
        %v531 = vpop.permute.xlu0 %530
        %532 = vrot.lane.b32.xlu0 %v506, 15
        %v533 = vpop.permute.xlu0 %532
        %vm534 = vcmask 121856
        %v535 = vsel %vm534, %v531, %v533
        %v538 = vsel %vm534, 0.0, %v531
        %v539 = vsel %vm502, 1, 0
        %v540 = vsel %vm503, 1, 0
        %vm541 = vcmp.eq.s32.totalorder %v539, 1
        %vm542 = vcmp.eq.s32.totalorder %v540, 1
        %v543 = vsel %vm541, %v538, 0.0
        %v544 = vsel %vm542, %v535, 0.0
        %545 = vrot.lane.b32.xlu0 %v472, 1
        %v546 = vpop.permute.xlu0 %545
        %547 = vrot.lane.b32.xlu0 %v506, 1
        %v548 = vpop.permute.xlu0 %547
        %vm549 = vcmask 7168
        %v550 = vsel %vm549, %v546, %v548
        %v553 = vsel %vm549, 0.0, %v546
        %v554 = vsel %vm518, %v553, 0.0
        %v555 = vsel %vm519, %v550, 0.0
        %556 = vrot.lane.b32.xlu0 %v472, 127
        %v557 = vpop.permute.xlu0 %556
        %558 = vrot.lane.b32.xlu0 %v506, 127
        %v559 = vpop.permute.xlu0 %558
        %vm560 = vcmask 1039360
        %v561 = vsel %vm560, %v557, %v559
        %v564 = vsel %vm560, %v559, 0.0
        %v565 = vsel %vm541, %v561, 0.0
        %v566 = vsel %vm542, %v564, 0.0
        %567 = vrot.lane.b32.xlu0 %v472, 113
        %v568 = vpop.permute.xlu0 %567
        %569 = vrot.lane.b32.xlu0 %v506, 113
        %v570 = vpop.permute.xlu0 %569
        %vm571 = vcmask 924672
        %v572 = vsel %vm571, %v568, %v570
        %v575 = vsel %vm571, %v570, 0.0
        %v576 = vsel %vm518, %v572, 0.0
        %v577 = vsel %vm519, %v575, 0.0
        %578 = vrot.lane.b32.xlu0 %v472, 112
        %v579 = vpop.permute.xlu0 %578
        %580 = vrot.lane.b32.xlu0 %v506, 112
        %v581 = vpop.permute.xlu0 %580
        %vm582 = vcmask 916480
        %v583 = vsel %vm582, %v579, %v581
        %v585 = vsel %vm582, %v581, 0.0
        %586 = vrot.lane.b32.xlu0 %v472, 111
        %v587 = vpop.permute.xlu0 %586
        %588 = vrot.lane.b32.xlu0 %v506, 111
        %v589 = vpop.permute.xlu0 %588
        %vm590 = vcmask 908288
        %v591 = vsel %vm590, %v587, %v589
        %v594 = vsel %vm590, %v589, 0.0
        %v595 = vsel %vm541, %v591, 0.0
        %v596 = vsel %vm542, %v594, 0.0
        %v598 = vrot.slane %v529, 4
        %v599 = vrot.slane %v527, 4
        %v604 = vrot.slane %v554, 4
        %v605 = vrot.slane %v555, 4
        %v611 = vrot.slane %v565, 4
        %v612 = vrot.slane %v566, 4
        %v616 = vrot.slane %v583, 4
        %v617 = vrot.slane %v585, 4
        %vm620 = vcmask 1043456
        %v621 = vsel %vm620, %v520, %v598
        %v622 = vsel %vm620, %v521, %v599
        %v623 = vsel %vm620, %v543, %v604
        %v624 = vsel %vm620, %v544, %v605
        %v625 = vsel %vm620, %v472, %v611
        %v626 = vsel %vm620, %v506, %v612
        %v627 = vsel %vm620, %v576, %v616
        %v628 = vsel %vm620, %v577, %v617
        %v629 = vsel %vm620, %v595, 1.0
        %v630 = vsel %vm620, %v596, 1.0
        %v631 = vpack.c.bf16 %v504, %v504
        %v632 = vunpack.c.l.bf16 %v631
        %v633 = vsub.f32 %v504, %v632
        %v634 = vpack.c.bf16 %v623, %v621
        %v635 = vpack.c.bf16 %v624, %v622
        %v636 = vpack.c.bf16 %v627, %v625
        %v637 = vpack.c.bf16 %v628, %v626
        %v638 = vpack.c.bf16 %v629, %v629
        %v639 = vpack.c.bf16 %v630, %v630
        %v640 = vunpack.c.l.bf16 %v634
        %v641 = vunpack.c.l.bf16 %v635
        %v642 = vunpack.c.h.bf16 %v634
        %v643 = vunpack.c.h.bf16 %v635
        %v644 = vunpack.c.l.bf16 %v636
        %v645 = vunpack.c.l.bf16 %v637
        %v646 = vunpack.c.h.bf16 %v636
        %v647 = vunpack.c.h.bf16 %v637
        %v648 = vunpack.c.l.bf16 %v638
        %v649 = vunpack.c.l.bf16 %v639
        %v650 = vsub.f32 %v621, %v640
        %v651 = vsub.f32 %v622, %v641
        %v652 = vsub.f32 %v623, %v642
        %v653 = vsub.f32 %v624, %v643
        %v654 = vsub.f32 %v625, %v644
        %v655 = vsub.f32 %v626, %v645
        %v656 = vsub.f32 %v627, %v646
        %v657 = vsub.f32 %v628, %v647
        %v658 = vsub.f32 %v629, %v648
        %v659 = vsub.f32 %v630, %v649
        %vm660 = vcmask 302080
        %v662 = vsel %vm660, %v633, 0
        %vm664 = vcmask 1044480
        %v666 = vsel %vm664, %v648, 0
        %v669 = vsel %vm664, %v649, 0
        %671 = vmatprep.subr.mxu0 %v641
        %672 = vmatpush1.msra.mxu0 %v640
        %673 = vmatprep.subr.mxu0 %v643
        %674 = vmatpush1.msra.mxu0 %v642
        %675 = vmatprep.subr.mxu0 %v645
        %676 = vmatpush1.msra.mxu0 %v644
        %677 = vmatprep.subr.mxu0 %v647
        %678 = vmatpush1.msra.mxu0 %v646
        %679 = vmatprep.subr.mxu0 %v669
        %680 = vmatpush1.msra.mxu0 %v666
        %681 = vmatprep.subr.mxu0 0.0
        %682 = vmatpush1.msra.mxu0 0.0
        %683 = vmatprep.subr.mxu0 0.0
        %684 = vmatpush1.msra.mxu0 0.0
        %685 = vmatprep.subr.mxu0 0.0
        %686 = vmatpush1.msra.mxu0 0.0
        %687 = vmatprep.subr.mxu0 0.0
        %688 = vmatpush1.msra.mxu0 0.0
        %689 = vmatprep.subr.mxu0 0.0
        %690 = vmatpush1.msra.mxu0 0.0
        %691 = vmatprep.subr.mxu0 0.0
        %692 = vmatpush1.msra.mxu0 0.0
        %693 = vmatprep.subr.mxu0 0.0
        %694 = vmatpush1.msra.mxu0 0.0
        %695 = vmatprep.subr.mxu0 0.0
        %696 = vmatpush1.msra.mxu0 0.0
        %697 = vmatprep.subr.mxu0 0.0
        %698 = vmatpush1.msra.mxu0 0.0
        %699 = vmatprep.subr.mxu0 0.0
        %700 = vmatpush1.msra.mxu0 0.0
        %701 = vmatprep.subr.mxu0 0.0
        %702 = vmatpush1.msra.mxu0 0.0
        %703 = vmatprep.subr.mxu0 0.0
        %704 = vmatpush1.msra.mxu0 0.0
        %705 = vmatprep.subr.mxu0 0.0
        %706 = vmatpush1.msra.mxu0 0.0
        %707 = vmatprep.subr.mxu0 0.0
        %708 = vmatpush1.msra.mxu0 0.0
        %709 = vmatprep.subr.mxu0 0.0
        %710 = vmatpush1.msra.mxu0 0.0
        %711 = vmatprep.subr.mxu0 0.0
        %712 = vmatpush1.msra.mxu0 0.0
        %713 = vmatprep.subr.mxu0 0.0
        %714 = vmatpush1.msra.mxu0 0.0
        %715 = vmatprep.subr.mxu0 0.0
        %716 = vmatpush1.msra.mxu0 0.0
        %717 = vmatprep.subr.mxu0 0.0
        %718 = vmatpush1.msra.mxu0 0.0
        %719 = vmatprep.subr.mxu0 0.0
        %720 = vmatpush1.msra.mxu0 0.0
        %721 = vmatprep.subr.mxu0 0.0
        %722 = vmatpush1.msra.mxu0 0.0
        %723 = vmatprep.subr.mxu0 0.0
        %724 = vmatpush1.msra.mxu0 0.0
        %725 = vmatprep.subr.mxu0 0.0
        %726 = vmatpush1.msra.mxu0 0.0
        %727 = vmatprep.subr.mxu0 0.0
        %728 = vmatpush1.msra.mxu0 0.0
        %729 = vmatprep.subr.mxu0 0.0
        %730 = vmatpush1.msra.mxu0 0.0
        %731 = vmatprep.subr.mxu0 0.0
        %732 = vmatpush1.msra.mxu0 0.0
        %733 = vmatprep.subr.mxu0 0.0
        %734 = vmatpush1.msra.mxu0 0.0
        %735 = vmatprep.mubr.f32.mxu0 0.0
        %736 = vmatmul.mubr.f32.gmra.mrb[0].mxu0 %v662
        %v737 = vpop.f32.mrb[0].mxu0
        %v738 = vadd.f32 0.0, %v737
        %v739 = vpop.f32.mrb[0].mxu0
        %v740 = vadd.f32 0.0, %v739
        %741 = vdwg.mxu0
        %v743 = vsel %vm660, %v632, 0
        %745 = vmatprep.subr.mxu0 %v641
        %746 = vmatpush1.msra.mxu0 %v640
        %747 = vmatprep.subr.mxu0 %v643
        %748 = vmatpush1.msra.mxu0 %v642
        %749 = vmatprep.subr.mxu0 %v645
        %750 = vmatpush1.msra.mxu0 %v644
        %751 = vmatprep.subr.mxu0 %v647
        %752 = vmatpush1.msra.mxu0 %v646
        %753 = vmatprep.subr.mxu0 %v669
        %754 = vmatpush1.msra.mxu0 %v666
        %755 = vmatprep.subr.mxu0 0.0
        %756 = vmatpush1.msra.mxu0 0.0
        %757 = vmatprep.subr.mxu0 0.0
        %758 = vmatpush1.msra.mxu0 0.0
        %759 = vmatprep.subr.mxu0 0.0
        %760 = vmatpush1.msra.mxu0 0.0
        %761 = vmatprep.subr.mxu0 0.0
        %762 = vmatpush1.msra.mxu0 0.0
        %763 = vmatprep.subr.mxu0 0.0
        %764 = vmatpush1.msra.mxu0 0.0
        %765 = vmatprep.subr.mxu0 0.0
        %766 = vmatpush1.msra.mxu0 0.0
        %767 = vmatprep.subr.mxu0 0.0
        %768 = vmatpush1.msra.mxu0 0.0
        %769 = vmatprep.subr.mxu0 0.0
        %770 = vmatpush1.msra.mxu0 0.0
        %771 = vmatprep.subr.mxu0 0.0
        %772 = vmatpush1.msra.mxu0 0.0
        %773 = vmatprep.subr.mxu0 0.0
        %774 = vmatpush1.msra.mxu0 0.0
        %775 = vmatprep.subr.mxu0 0.0
        %776 = vmatpush1.msra.mxu0 0.0
        %777 = vmatprep.subr.mxu0 0.0
        %778 = vmatpush1.msra.mxu0 0.0
        %779 = vmatprep.subr.mxu0 0.0
        %780 = vmatpush1.msra.mxu0 0.0
        %781 = vmatprep.subr.mxu0 0.0
        %782 = vmatpush1.msra.mxu0 0.0
        %783 = vmatprep.subr.mxu0 0.0
        %784 = vmatpush1.msra.mxu0 0.0
        %785 = vmatprep.subr.mxu0 0.0
        %786 = vmatpush1.msra.mxu0 0.0
        %787 = vmatprep.subr.mxu0 0.0
        %788 = vmatpush1.msra.mxu0 0.0
        %789 = vmatprep.subr.mxu0 0.0
        %790 = vmatpush1.msra.mxu0 0.0
        %791 = vmatprep.subr.mxu0 0.0
        %792 = vmatpush1.msra.mxu0 0.0
        %793 = vmatprep.subr.mxu0 0.0
        %794 = vmatpush1.msra.mxu0 0.0
        %795 = vmatprep.subr.mxu0 0.0
        %796 = vmatpush1.msra.mxu0 0.0
        %797 = vmatprep.subr.mxu0 0.0
        %798 = vmatpush1.msra.mxu0 0.0
        %799 = vmatprep.subr.mxu0 0.0
        %800 = vmatpush1.msra.mxu0 0.0
        %801 = vmatprep.subr.mxu0 0.0
        %802 = vmatpush1.msra.mxu0 0.0
        %803 = vmatprep.subr.mxu0 0.0
        %804 = vmatpush1.msra.mxu0 0.0
        %805 = vmatprep.subr.mxu0 0.0
        %806 = vmatpush1.msra.mxu0 0.0
        %807 = vmatprep.subr.mxu0 0.0
        %808 = vmatpush1.msra.mxu0 0.0
        %809 = vmatprep.mubr.f32.mxu0 0.0
        %810 = vmatmul.mubr.f32.gmra.mrb[0].mxu0 %v743
        %v811 = vpop.f32.mrb[0].mxu0
        %v812 = vadd.f32 %v738, %v811
        %v813 = vpop.f32.mrb[0].mxu0
        %v814 = vadd.f32 %v740, %v813
        %815 = vdwg.mxu0
        %v817 = vsel %vm664, %v658, 0
        %v820 = vsel %vm664, %v659, 0
        %822 = vmatprep.subr.mxu0 %v651
        %823 = vmatpush1.msra.mxu0 %v650
        %824 = vmatprep.subr.mxu0 %v653
        %825 = vmatpush1.msra.mxu0 %v652
        %826 = vmatprep.subr.mxu0 %v655
        %827 = vmatpush1.msra.mxu0 %v654
        %828 = vmatprep.subr.mxu0 %v657
        %829 = vmatpush1.msra.mxu0 %v656
        %830 = vmatprep.subr.mxu0 %v820
        %831 = vmatpush1.msra.mxu0 %v817
        %832 = vmatprep.subr.mxu0 0.0
        %833 = vmatpush1.msra.mxu0 0.0
        %834 = vmatprep.subr.mxu0 0.0
        %835 = vmatpush1.msra.mxu0 0.0
        %836 = vmatprep.subr.mxu0 0.0
        %837 = vmatpush1.msra.mxu0 0.0
        %838 = vmatprep.subr.mxu0 0.0
        %839 = vmatpush1.msra.mxu0 0.0
        %840 = vmatprep.subr.mxu0 0.0
        %841 = vmatpush1.msra.mxu0 0.0
        %842 = vmatprep.subr.mxu0 0.0
        %843 = vmatpush1.msra.mxu0 0.0
        %844 = vmatprep.subr.mxu0 0.0
        %845 = vmatpush1.msra.mxu0 0.0
        %846 = vmatprep.subr.mxu0 0.0
        %847 = vmatpush1.msra.mxu0 0.0
        %848 = vmatprep.subr.mxu0 0.0
        %849 = vmatpush1.msra.mxu0 0.0
        %850 = vmatprep.subr.mxu0 0.0
        %851 = vmatpush1.msra.mxu0 0.0
        %852 = vmatprep.subr.mxu0 0.0
        %853 = vmatpush1.msra.mxu0 0.0
        %854 = vmatprep.subr.mxu0 0.0
        %855 = vmatpush1.msra.mxu0 0.0
        %856 = vmatprep.subr.mxu0 0.0
        %857 = vmatpush1.msra.mxu0 0.0
        %858 = vmatprep.subr.mxu0 0.0
        %859 = vmatpush1.msra.mxu0 0.0
        %860 = vmatprep.subr.mxu0 0.0
        %861 = vmatpush1.msra.mxu0 0.0
        %862 = vmatprep.subr.mxu0 0.0
        %863 = vmatpush1.msra.mxu0 0.0
        %864 = vmatprep.subr.mxu0 0.0
        %865 = vmatpush1.msra.mxu0 0.0
        %866 = vmatprep.subr.mxu0 0.0
        %867 = vmatpush1.msra.mxu0 0.0
        %868 = vmatprep.subr.mxu0 0.0
        %869 = vmatpush1.msra.mxu0 0.0
        %870 = vmatprep.subr.mxu0 0.0
        %871 = vmatpush1.msra.mxu0 0.0
        %872 = vmatprep.subr.mxu0 0.0
        %873 = vmatpush1.msra.mxu0 0.0
        %874 = vmatprep.subr.mxu0 0.0
        %875 = vmatpush1.msra.mxu0 0.0
        %876 = vmatprep.subr.mxu0 0.0
        %877 = vmatpush1.msra.mxu0 0.0
        %878 = vmatprep.subr.mxu0 0.0
        %879 = vmatpush1.msra.mxu0 0.0
        %880 = vmatprep.subr.mxu0 0.0
        %881 = vmatpush1.msra.mxu0 0.0
        %882 = vmatprep.subr.mxu0 0.0
        %883 = vmatpush1.msra.mxu0 0.0
        %884 = vmatprep.subr.mxu0 0.0
        %885 = vmatpush1.msra.mxu0 0.0
        %886 = vmatprep.mubr.f32.mxu0 0.0
        %887 = vmatmul.mubr.f32.gmra.mrb[0].mxu0 %v743
        %v888 = vpop.f32.mrb[0].mxu0
        %v889 = vadd.f32 0.0, %v888
        %v890 = vpop.f32.mrb[0].mxu0
        %v891 = vadd.f32 0.0, %v890
        %892 = vdwg.mxu0
        %v893 = vadd.f32 %v812, %v889
        %v894 = vadd.f32 %v814, %v891
        %vm895 = vcmp.gt.f32.partialorder %v893, 0.0
        %vm896 = vcmp.gt.f32.partialorder %v894, 0.0
        %v897 = vmul.f32 %v893, 0.2
        %v898 = vmul.f32 %v894, 0.2
        %v899 = vsel %vm895, %v893, %v897
        %v900 = vsel %vm896, %v894, %v898
        %s901 = scalar_lea.vmem %s4, 4
        %v902 = vld [vmem:[%s901] sm:$0xf]
        %905 = vrot.lane.b32.xlu0 %v899, 17
        %v906 = vpop.permute.xlu0 %905
        %907 = vrot.lane.b32.xlu0 %v900, 17
        %v908 = vpop.permute.xlu0 %907
        %v909 = vsel %vm511, %v906, %v908
        %v912 = vsel %vm511, 0.0, %v906
        %v913 = vsel %vm518, %v912, 0.0
        %v914 = vsel %vm519, %v909, 0.0
        %915 = vrot.lane.b32.xlu0 %v899, 16
        %v916 = vpop.permute.xlu0 %915
        %917 = vrot.lane.b32.xlu0 %v900, 16
        %v918 = vpop.permute.xlu0 %917
        %v919 = vsel %vm526, %v916, %v918
        %v921 = vsel %vm526, 0.0, %v916
        %922 = vrot.lane.b32.xlu0 %v899, 15
        %v923 = vpop.permute.xlu0 %922
        %924 = vrot.lane.b32.xlu0 %v900, 15
        %v925 = vpop.permute.xlu0 %924
        %v926 = vsel %vm534, %v923, %v925
        %v929 = vsel %vm534, 0.0, %v923
        %v930 = vsel %vm541, %v929, 0.0
        %v931 = vsel %vm542, %v926, 0.0
        %932 = vrot.lane.b32.xlu0 %v899, 1
        %v933 = vpop.permute.xlu0 %932
        %934 = vrot.lane.b32.xlu0 %v900, 1
        %v935 = vpop.permute.xlu0 %934
        %v936 = vsel %vm549, %v933, %v935
        %v939 = vsel %vm549, 0.0, %v933
        %v940 = vsel %vm518, %v939, 0.0
        %v941 = vsel %vm519, %v936, 0.0
        %942 = vrot.lane.b32.xlu0 %v899, 127
        %v943 = vpop.permute.xlu0 %942
        %944 = vrot.lane.b32.xlu0 %v900, 127
        %v945 = vpop.permute.xlu0 %944
        %v946 = vsel %vm560, %v943, %v945
        %v949 = vsel %vm560, %v945, 0.0
        %v950 = vsel %vm541, %v946, 0.0
        %v951 = vsel %vm542, %v949, 0.0
        %952 = vrot.lane.b32.xlu0 %v899, 113
        %v953 = vpop.permute.xlu0 %952
        %954 = vrot.lane.b32.xlu0 %v900, 113
        %v955 = vpop.permute.xlu0 %954
        %v956 = vsel %vm571, %v953, %v955
        %v959 = vsel %vm571, %v955, 0.0
        %v960 = vsel %vm518, %v956, 0.0
        %v961 = vsel %vm519, %v959, 0.0
        %962 = vrot.lane.b32.xlu0 %v899, 112
        %v963 = vpop.permute.xlu0 %962
        %964 = vrot.lane.b32.xlu0 %v900, 112
        %v965 = vpop.permute.xlu0 %964
        %v966 = vsel %vm582, %v963, %v965
        %v968 = vsel %vm582, %v965, 0.0
        %969 = vrot.lane.b32.xlu0 %v899, 111
        %v970 = vpop.permute.xlu0 %969
        %971 = vrot.lane.b32.xlu0 %v900, 111
        %v972 = vpop.permute.xlu0 %971
        %v973 = vsel %vm590, %v970, %v972
        %v976 = vsel %vm590, %v972, 0.0
        %v977 = vsel %vm541, %v973, 0.0
        %v978 = vsel %vm542, %v976, 0.0
        %v980 = vrot.slane %v921, 4
        %v981 = vrot.slane %v919, 4
        %v986 = vrot.slane %v940, 4
        %v987 = vrot.slane %v941, 4
        %v992 = vrot.slane %v950, 4
        %v993 = vrot.slane %v951, 4
        %v997 = vrot.slane %v966, 4
        %v998 = vrot.slane %v968, 4
        %v1001 = vsel %vm620, %v913, %v980
        %v1002 = vsel %vm620, %v914, %v981
        %v1003 = vsel %vm620, %v930, %v986
        %v1004 = vsel %vm620, %v931, %v987
        %v1005 = vsel %vm620, %v899, %v992
        %v1006 = vsel %vm620, %v900, %v993
        %v1007 = vsel %vm620, %v960, %v997
        %v1008 = vsel %vm620, %v961, %v998
        %v1009 = vsel %vm620, %v977, 1.0
        %v1010 = vsel %vm620, %v978, 1.0
        %v1011 = vpack.c.bf16 %v902, %v902
        %v1012 = vunpack.c.l.bf16 %v1011
        %v1013 = vsub.f32 %v902, %v1012
        %v1014 = vpack.c.bf16 %v1003, %v1001
        %v1015 = vpack.c.bf16 %v1004, %v1002
        %v1016 = vpack.c.bf16 %v1007, %v1005
        %v1017 = vpack.c.bf16 %v1008, %v1006
        %v1018 = vpack.c.bf16 %v1009, %v1009
        %v1019 = vpack.c.bf16 %v1010, %v1010
        %v1020 = vunpack.c.l.bf16 %v1014
        %v1021 = vunpack.c.l.bf16 %v1015
        %v1022 = vunpack.c.h.bf16 %v1014
        %v1023 = vunpack.c.h.bf16 %v1015
        %v1024 = vunpack.c.l.bf16 %v1016
        %v1025 = vunpack.c.l.bf16 %v1017
        %v1026 = vunpack.c.h.bf16 %v1016
        %v1027 = vunpack.c.h.bf16 %v1017
        %v1028 = vunpack.c.l.bf16 %v1018
        %v1029 = vunpack.c.l.bf16 %v1019
        %v1030 = vsub.f32 %v1001, %v1020
        %v1031 = vsub.f32 %v1002, %v1021
        %v1032 = vsub.f32 %v1003, %v1022
        %v1033 = vsub.f32 %v1004, %v1023
        %v1034 = vsub.f32 %v1005, %v1024
        %v1035 = vsub.f32 %v1006, %v1025
        %v1036 = vsub.f32 %v1007, %v1026
        %v1037 = vsub.f32 %v1008, %v1027
        %v1038 = vsub.f32 %v1009, %v1028
        %v1039 = vsub.f32 %v1010, %v1029
        %v1041 = vsel %vm660, %v1013, 0
        %v1044 = vsel %vm664, %v1028, 0
        %v1047 = vsel %vm664, %v1029, 0
        %1049 = vmatprep.subr.mxu0 %v1021
        %1050 = vmatpush1.msra.mxu0 %v1020
        %1051 = vmatprep.subr.mxu0 %v1023
        %1052 = vmatpush1.msra.mxu0 %v1022
        %1053 = vmatprep.subr.mxu0 %v1025
        %1054 = vmatpush1.msra.mxu0 %v1024
        %1055 = vmatprep.subr.mxu0 %v1027
        %1056 = vmatpush1.msra.mxu0 %v1026
        %1057 = vmatprep.subr.mxu0 %v1047
        %1058 = vmatpush1.msra.mxu0 %v1044
        %1059 = vmatprep.subr.mxu0 0.0
        %1060 = vmatpush1.msra.mxu0 0.0
        %1061 = vmatprep.subr.mxu0 0.0
        %1062 = vmatpush1.msra.mxu0 0.0
        %1063 = vmatprep.subr.mxu0 0.0
        %1064 = vmatpush1.msra.mxu0 0.0
        %1065 = vmatprep.subr.mxu0 0.0
        %1066 = vmatpush1.msra.mxu0 0.0
        %1067 = vmatprep.subr.mxu0 0.0
        %1068 = vmatpush1.msra.mxu0 0.0
        %1069 = vmatprep.subr.mxu0 0.0
        %1070 = vmatpush1.msra.mxu0 0.0
        %1071 = vmatprep.subr.mxu0 0.0
        %1072 = vmatpush1.msra.mxu0 0.0
        %1073 = vmatprep.subr.mxu0 0.0
        %1074 = vmatpush1.msra.mxu0 0.0
        %1075 = vmatprep.subr.mxu0 0.0
        %1076 = vmatpush1.msra.mxu0 0.0
        %1077 = vmatprep.subr.mxu0 0.0
        %1078 = vmatpush1.msra.mxu0 0.0
        %1079 = vmatprep.subr.mxu0 0.0
        %1080 = vmatpush1.msra.mxu0 0.0
        %1081 = vmatprep.subr.mxu0 0.0
        %1082 = vmatpush1.msra.mxu0 0.0
        %1083 = vmatprep.subr.mxu0 0.0
        %1084 = vmatpush1.msra.mxu0 0.0
        %1085 = vmatprep.subr.mxu0 0.0
        %1086 = vmatpush1.msra.mxu0 0.0
        %1087 = vmatprep.subr.mxu0 0.0
        %1088 = vmatpush1.msra.mxu0 0.0
        %1089 = vmatprep.subr.mxu0 0.0
        %1090 = vmatpush1.msra.mxu0 0.0
        %1091 = vmatprep.subr.mxu0 0.0
        %1092 = vmatpush1.msra.mxu0 0.0
        %1093 = vmatprep.subr.mxu0 0.0
        %1094 = vmatpush1.msra.mxu0 0.0
        %1095 = vmatprep.subr.mxu0 0.0
        %1096 = vmatpush1.msra.mxu0 0.0
        %1097 = vmatprep.subr.mxu0 0.0
        %1098 = vmatpush1.msra.mxu0 0.0
        %1099 = vmatprep.subr.mxu0 0.0
        %1100 = vmatpush1.msra.mxu0 0.0
        %1101 = vmatprep.subr.mxu0 0.0
        %1102 = vmatpush1.msra.mxu0 0.0
        %1103 = vmatprep.subr.mxu0 0.0
        %1104 = vmatpush1.msra.mxu0 0.0
        %1105 = vmatprep.subr.mxu0 0.0
        %1106 = vmatpush1.msra.mxu0 0.0
        %1107 = vmatprep.subr.mxu0 0.0
        %1108 = vmatpush1.msra.mxu0 0.0
        %1109 = vmatprep.subr.mxu0 0.0
        %1110 = vmatpush1.msra.mxu0 0.0
        %1111 = vmatprep.subr.mxu0 0.0
        %1112 = vmatpush1.msra.mxu0 0.0
        %1113 = vmatprep.mubr.f32.mxu0 0.0
        %1114 = vmatmul.mubr.f32.gmra.mrb[0].mxu0 %v1041
        %v1115 = vpop.f32.mrb[0].mxu0
        %v1116 = vadd.f32 0.0, %v1115
        %v1117 = vpop.f32.mrb[0].mxu0
        %v1118 = vadd.f32 0.0, %v1117
        %1119 = vdwg.mxu0
        %v1121 = vsel %vm660, %v1012, 0
        %1123 = vmatprep.subr.mxu0 %v1021
        %1124 = vmatpush1.msra.mxu0 %v1020
        %1125 = vmatprep.subr.mxu0 %v1023
        %1126 = vmatpush1.msra.mxu0 %v1022
        %1127 = vmatprep.subr.mxu0 %v1025
        %1128 = vmatpush1.msra.mxu0 %v1024
        %1129 = vmatprep.subr.mxu0 %v1027
        %1130 = vmatpush1.msra.mxu0 %v1026
        %1131 = vmatprep.subr.mxu0 %v1047
        %1132 = vmatpush1.msra.mxu0 %v1044
        %1133 = vmatprep.subr.mxu0 0.0
        %1134 = vmatpush1.msra.mxu0 0.0
        %1135 = vmatprep.subr.mxu0 0.0
        %1136 = vmatpush1.msra.mxu0 0.0
        %1137 = vmatprep.subr.mxu0 0.0
        %1138 = vmatpush1.msra.mxu0 0.0
        %1139 = vmatprep.subr.mxu0 0.0
        %1140 = vmatpush1.msra.mxu0 0.0
        %1141 = vmatprep.subr.mxu0 0.0
        %1142 = vmatpush1.msra.mxu0 0.0
        %1143 = vmatprep.subr.mxu0 0.0
        %1144 = vmatpush1.msra.mxu0 0.0
        %1145 = vmatprep.subr.mxu0 0.0
        %1146 = vmatpush1.msra.mxu0 0.0
        %1147 = vmatprep.subr.mxu0 0.0
        %1148 = vmatpush1.msra.mxu0 0.0
        %1149 = vmatprep.subr.mxu0 0.0
        %1150 = vmatpush1.msra.mxu0 0.0
        %1151 = vmatprep.subr.mxu0 0.0
        %1152 = vmatpush1.msra.mxu0 0.0
        %1153 = vmatprep.subr.mxu0 0.0
        %1154 = vmatpush1.msra.mxu0 0.0
        %1155 = vmatprep.subr.mxu0 0.0
        %1156 = vmatpush1.msra.mxu0 0.0
        %1157 = vmatprep.subr.mxu0 0.0
        %1158 = vmatpush1.msra.mxu0 0.0
        %1159 = vmatprep.subr.mxu0 0.0
        %1160 = vmatpush1.msra.mxu0 0.0
        %1161 = vmatprep.subr.mxu0 0.0
        %1162 = vmatpush1.msra.mxu0 0.0
        %1163 = vmatprep.subr.mxu0 0.0
        %1164 = vmatpush1.msra.mxu0 0.0
        %1165 = vmatprep.subr.mxu0 0.0
        %1166 = vmatpush1.msra.mxu0 0.0
        %1167 = vmatprep.subr.mxu0 0.0
        %1168 = vmatpush1.msra.mxu0 0.0
        %1169 = vmatprep.subr.mxu0 0.0
        %1170 = vmatpush1.msra.mxu0 0.0
        %1171 = vmatprep.subr.mxu0 0.0
        %1172 = vmatpush1.msra.mxu0 0.0
        %1173 = vmatprep.subr.mxu0 0.0
        %1174 = vmatpush1.msra.mxu0 0.0
        %1175 = vmatprep.subr.mxu0 0.0
        %1176 = vmatpush1.msra.mxu0 0.0
        %1177 = vmatprep.subr.mxu0 0.0
        %1178 = vmatpush1.msra.mxu0 0.0
        %1179 = vmatprep.subr.mxu0 0.0
        %1180 = vmatpush1.msra.mxu0 0.0
        %1181 = vmatprep.subr.mxu0 0.0
        %1182 = vmatpush1.msra.mxu0 0.0
        %1183 = vmatprep.subr.mxu0 0.0
        %1184 = vmatpush1.msra.mxu0 0.0
        %1185 = vmatprep.subr.mxu0 0.0
        %1186 = vmatpush1.msra.mxu0 0.0
        %1187 = vmatprep.mubr.f32.mxu0 0.0
        %1188 = vmatmul.mubr.f32.gmra.mrb[0].mxu0 %v1121
        %v1189 = vpop.f32.mrb[0].mxu0
        %v1190 = vadd.f32 %v1116, %v1189
        %v1191 = vpop.f32.mrb[0].mxu0
        %v1192 = vadd.f32 %v1118, %v1191
        %1193 = vdwg.mxu0
        %v1195 = vsel %vm664, %v1038, 0
        %v1198 = vsel %vm664, %v1039, 0
        %1200 = vmatprep.subr.mxu0 %v1031
        %1201 = vmatpush1.msra.mxu0 %v1030
        %1202 = vmatprep.subr.mxu0 %v1033
        %1203 = vmatpush1.msra.mxu0 %v1032
        %1204 = vmatprep.subr.mxu0 %v1035
        %1205 = vmatpush1.msra.mxu0 %v1034
        %1206 = vmatprep.subr.mxu0 %v1037
        %1207 = vmatpush1.msra.mxu0 %v1036
        %1208 = vmatprep.subr.mxu0 %v1198
        %1209 = vmatpush1.msra.mxu0 %v1195
        %1210 = vmatprep.subr.mxu0 0.0
        %1211 = vmatpush1.msra.mxu0 0.0
        %1212 = vmatprep.subr.mxu0 0.0
        %1213 = vmatpush1.msra.mxu0 0.0
        %1214 = vmatprep.subr.mxu0 0.0
        %1215 = vmatpush1.msra.mxu0 0.0
        %1216 = vmatprep.subr.mxu0 0.0
        %1217 = vmatpush1.msra.mxu0 0.0
        %1218 = vmatprep.subr.mxu0 0.0
        %1219 = vmatpush1.msra.mxu0 0.0
        %1220 = vmatprep.subr.mxu0 0.0
        %1221 = vmatpush1.msra.mxu0 0.0
        %1222 = vmatprep.subr.mxu0 0.0
        %1223 = vmatpush1.msra.mxu0 0.0
        %1224 = vmatprep.subr.mxu0 0.0
        %1225 = vmatpush1.msra.mxu0 0.0
        %1226 = vmatprep.subr.mxu0 0.0
        %1227 = vmatpush1.msra.mxu0 0.0
        %1228 = vmatprep.subr.mxu0 0.0
        %1229 = vmatpush1.msra.mxu0 0.0
        %1230 = vmatprep.subr.mxu0 0.0
        %1231 = vmatpush1.msra.mxu0 0.0
        %1232 = vmatprep.subr.mxu0 0.0
        %1233 = vmatpush1.msra.mxu0 0.0
        %1234 = vmatprep.subr.mxu0 0.0
        %1235 = vmatpush1.msra.mxu0 0.0
        %1236 = vmatprep.subr.mxu0 0.0
        %1237 = vmatpush1.msra.mxu0 0.0
        %1238 = vmatprep.subr.mxu0 0.0
        %1239 = vmatpush1.msra.mxu0 0.0
        %1240 = vmatprep.subr.mxu0 0.0
        %1241 = vmatpush1.msra.mxu0 0.0
        %1242 = vmatprep.subr.mxu0 0.0
        %1243 = vmatpush1.msra.mxu0 0.0
        %1244 = vmatprep.subr.mxu0 0.0
        %1245 = vmatpush1.msra.mxu0 0.0
        %1246 = vmatprep.subr.mxu0 0.0
        %1247 = vmatpush1.msra.mxu0 0.0
        %1248 = vmatprep.subr.mxu0 0.0
        %1249 = vmatpush1.msra.mxu0 0.0
        %1250 = vmatprep.subr.mxu0 0.0
        %1251 = vmatpush1.msra.mxu0 0.0
        %1252 = vmatprep.subr.mxu0 0.0
        %1253 = vmatpush1.msra.mxu0 0.0
        %1254 = vmatprep.subr.mxu0 0.0
        %1255 = vmatpush1.msra.mxu0 0.0
        %1256 = vmatprep.subr.mxu0 0.0
        %1257 = vmatpush1.msra.mxu0 0.0
        %1258 = vmatprep.subr.mxu0 0.0
        %1259 = vmatpush1.msra.mxu0 0.0
        %1260 = vmatprep.subr.mxu0 0.0
        %1261 = vmatpush1.msra.mxu0 0.0
        %1262 = vmatprep.subr.mxu0 0.0
        %1263 = vmatpush1.msra.mxu0 0.0
        %1264 = vmatprep.mubr.f32.mxu0 0.0
        %1265 = vmatmul.mubr.f32.gmra.mrb[0].mxu0 %v1121
        %v1266 = vpop.f32.mrb[0].mxu0
        %v1267 = vadd.f32 0.0, %v1266
        %v1268 = vpop.f32.mrb[0].mxu0
        %v1269 = vadd.f32 0.0, %v1268
        %1270 = vdwg.mxu0
        %v1271 = vadd.f32 %v1190, %v1267
        %v1272 = vadd.f32 %v1192, %v1269
        %v1275 = vcombine.low %v1271, %v1272
        %v1277 = vadd.f32 %v472, %v1275
        %s1278 = scalar_lea.vmem %s4, 8
        %v1279 = vld [vmem:[%s1278] sm:$0xf]
        %v1281 = vcombine.high %v1277, %v1277
        %1282 = vrot.lane.b32.xlu0 %v1277, 17
        %v1283 = vpop.permute.xlu0 %1282
        %1284 = vrot.lane.b32.xlu0 %v1281, 17
        %v1285 = vpop.permute.xlu0 %1284
        %v1286 = vsel %vm511, %v1283, %v1285
        %v1289 = vsel %vm511, 0.0, %v1283
        %v1290 = vsel %vm518, %v1289, 0.0
        %v1291 = vsel %vm519, %v1286, 0.0
        %1292 = vrot.lane.b32.xlu0 %v1277, 16
        %v1293 = vpop.permute.xlu0 %1292
        %1294 = vrot.lane.b32.xlu0 %v1281, 16
        %v1295 = vpop.permute.xlu0 %1294
        %v1296 = vsel %vm526, %v1293, %v1295
        %v1298 = vsel %vm526, 0.0, %v1293
        %1299 = vrot.lane.b32.xlu0 %v1277, 15
        %v1300 = vpop.permute.xlu0 %1299
        %1301 = vrot.lane.b32.xlu0 %v1281, 15
        %v1302 = vpop.permute.xlu0 %1301
        %v1303 = vsel %vm534, %v1300, %v1302
        %v1306 = vsel %vm534, 0.0, %v1300
        %v1307 = vsel %vm541, %v1306, 0.0
        %v1308 = vsel %vm542, %v1303, 0.0
        %1309 = vrot.lane.b32.xlu0 %v1277, 1
        %v1310 = vpop.permute.xlu0 %1309
        %1311 = vrot.lane.b32.xlu0 %v1281, 1
        %v1312 = vpop.permute.xlu0 %1311
        %v1313 = vsel %vm549, %v1310, %v1312
        %v1316 = vsel %vm549, 0.0, %v1310
        %v1317 = vsel %vm518, %v1316, 0.0
        %v1318 = vsel %vm519, %v1313, 0.0
        %1319 = vrot.lane.b32.xlu0 %v1277, 127
        %v1320 = vpop.permute.xlu0 %1319
        %1321 = vrot.lane.b32.xlu0 %v1281, 127
        %v1322 = vpop.permute.xlu0 %1321
        %v1323 = vsel %vm560, %v1320, %v1322
        %v1326 = vsel %vm560, %v1322, 0.0
        %v1327 = vsel %vm541, %v1323, 0.0
        %v1328 = vsel %vm542, %v1326, 0.0
        %1329 = vrot.lane.b32.xlu0 %v1277, 113
        %v1330 = vpop.permute.xlu0 %1329
        %1331 = vrot.lane.b32.xlu0 %v1281, 113
        %v1332 = vpop.permute.xlu0 %1331
        %v1333 = vsel %vm571, %v1330, %v1332
        %v1336 = vsel %vm571, %v1332, 0.0
        %v1337 = vsel %vm518, %v1333, 0.0
        %v1338 = vsel %vm519, %v1336, 0.0
        %1339 = vrot.lane.b32.xlu0 %v1277, 112
        %v1340 = vpop.permute.xlu0 %1339
        %1341 = vrot.lane.b32.xlu0 %v1281, 112
        %v1342 = vpop.permute.xlu0 %1341
        %v1343 = vsel %vm582, %v1340, %v1342
        %v1345 = vsel %vm582, %v1342, 0.0
        %1346 = vrot.lane.b32.xlu0 %v1277, 111
        %v1347 = vpop.permute.xlu0 %1346
        %1348 = vrot.lane.b32.xlu0 %v1281, 111
        %v1349 = vpop.permute.xlu0 %1348
        %v1350 = vsel %vm590, %v1347, %v1349
        %v1353 = vsel %vm590, %v1349, 0.0
        %v1354 = vsel %vm541, %v1350, 0.0
        %v1355 = vsel %vm542, %v1353, 0.0
        %v1357 = vrot.slane %v1298, 4
        %v1358 = vrot.slane %v1296, 4
        %v1363 = vrot.slane %v1317, 4
        %v1364 = vrot.slane %v1318, 4
        %v1370 = vrot.slane %v1327, 4
        %v1371 = vrot.slane %v1328, 4
        %v1375 = vrot.slane %v1343, 4
        %v1376 = vrot.slane %v1345, 4
        %v1379 = vsel %vm620, %v1290, %v1357
        %v1380 = vsel %vm620, %v1291, %v1358
        %v1381 = vsel %vm620, %v1307, %v1363
        %v1382 = vsel %vm620, %v1308, %v1364
        %v1383 = vsel %vm620, %v1277, %v1370
        %v1384 = vsel %vm620, %v1281, %v1371
        %v1385 = vsel %vm620, %v1337, %v1375
        %v1386 = vsel %vm620, %v1338, %v1376
        %v1387 = vsel %vm620, %v1354, 1.0
        %v1388 = vsel %vm620, %v1355, 1.0
        %v1389 = vpack.c.bf16 %v1279, %v1279
        %v1390 = vunpack.c.l.bf16 %v1389
        %v1391 = vsub.f32 %v1279, %v1390
        %v1392 = vpack.c.bf16 %v1381, %v1379
        %v1393 = vpack.c.bf16 %v1382, %v1380
        %v1394 = vpack.c.bf16 %v1385, %v1383
        %v1395 = vpack.c.bf16 %v1386, %v1384
        %v1396 = vpack.c.bf16 %v1387, %v1387
        %v1397 = vpack.c.bf16 %v1388, %v1388
        %v1398 = vunpack.c.l.bf16 %v1392
        %v1399 = vunpack.c.l.bf16 %v1393
        %v1400 = vunpack.c.h.bf16 %v1392
        %v1401 = vunpack.c.h.bf16 %v1393
        %v1402 = vunpack.c.l.bf16 %v1394
        %v1403 = vunpack.c.l.bf16 %v1395
        %v1404 = vunpack.c.h.bf16 %v1394
        %v1405 = vunpack.c.h.bf16 %v1395
        %v1406 = vunpack.c.l.bf16 %v1396
        %v1407 = vunpack.c.l.bf16 %v1397
        %v1408 = vsub.f32 %v1379, %v1398
        %v1409 = vsub.f32 %v1380, %v1399
        %v1410 = vsub.f32 %v1381, %v1400
        %v1411 = vsub.f32 %v1382, %v1401
        %v1412 = vsub.f32 %v1383, %v1402
        %v1413 = vsub.f32 %v1384, %v1403
        %v1414 = vsub.f32 %v1385, %v1404
        %v1415 = vsub.f32 %v1386, %v1405
        %v1416 = vsub.f32 %v1387, %v1406
        %v1417 = vsub.f32 %v1388, %v1407
        %v1419 = vsel %vm660, %v1391, 0
        %v1422 = vsel %vm664, %v1406, 0
        %v1425 = vsel %vm664, %v1407, 0
        %1427 = vmatprep.subr.mxu0 %v1399
        %1428 = vmatpush1.msra.mxu0 %v1398
        %1429 = vmatprep.subr.mxu0 %v1401
        %1430 = vmatpush1.msra.mxu0 %v1400
        %1431 = vmatprep.subr.mxu0 %v1403
        %1432 = vmatpush1.msra.mxu0 %v1402
        %1433 = vmatprep.subr.mxu0 %v1405
        %1434 = vmatpush1.msra.mxu0 %v1404
        %1435 = vmatprep.subr.mxu0 %v1425
        %1436 = vmatpush1.msra.mxu0 %v1422
        %1437 = vmatprep.subr.mxu0 0.0
        %1438 = vmatpush1.msra.mxu0 0.0
        %1439 = vmatprep.subr.mxu0 0.0
        %1440 = vmatpush1.msra.mxu0 0.0
        %1441 = vmatprep.subr.mxu0 0.0
        %1442 = vmatpush1.msra.mxu0 0.0
        %1443 = vmatprep.subr.mxu0 0.0
        %1444 = vmatpush1.msra.mxu0 0.0
        %1445 = vmatprep.subr.mxu0 0.0
        %1446 = vmatpush1.msra.mxu0 0.0
        %1447 = vmatprep.subr.mxu0 0.0
        %1448 = vmatpush1.msra.mxu0 0.0
        %1449 = vmatprep.subr.mxu0 0.0
        %1450 = vmatpush1.msra.mxu0 0.0
        %1451 = vmatprep.subr.mxu0 0.0
        %1452 = vmatpush1.msra.mxu0 0.0
        %1453 = vmatprep.subr.mxu0 0.0
        %1454 = vmatpush1.msra.mxu0 0.0
        %1455 = vmatprep.subr.mxu0 0.0
        %1456 = vmatpush1.msra.mxu0 0.0
        %1457 = vmatprep.subr.mxu0 0.0
        %1458 = vmatpush1.msra.mxu0 0.0
        %1459 = vmatprep.subr.mxu0 0.0
        %1460 = vmatpush1.msra.mxu0 0.0
        %1461 = vmatprep.subr.mxu0 0.0
        %1462 = vmatpush1.msra.mxu0 0.0
        %1463 = vmatprep.subr.mxu0 0.0
        %1464 = vmatpush1.msra.mxu0 0.0
        %1465 = vmatprep.subr.mxu0 0.0
        %1466 = vmatpush1.msra.mxu0 0.0
        %1467 = vmatprep.subr.mxu0 0.0
        %1468 = vmatpush1.msra.mxu0 0.0
        %1469 = vmatprep.subr.mxu0 0.0
        %1470 = vmatpush1.msra.mxu0 0.0
        %1471 = vmatprep.subr.mxu0 0.0
        %1472 = vmatpush1.msra.mxu0 0.0
        %1473 = vmatprep.subr.mxu0 0.0
        %1474 = vmatpush1.msra.mxu0 0.0
        %1475 = vmatprep.subr.mxu0 0.0
        %1476 = vmatpush1.msra.mxu0 0.0
        %1477 = vmatprep.subr.mxu0 0.0
        %1478 = vmatpush1.msra.mxu0 0.0
        %1479 = vmatprep.subr.mxu0 0.0
        %1480 = vmatpush1.msra.mxu0 0.0
        %1481 = vmatprep.subr.mxu0 0.0
        %1482 = vmatpush1.msra.mxu0 0.0
        %1483 = vmatprep.subr.mxu0 0.0
        %1484 = vmatpush1.msra.mxu0 0.0
        %1485 = vmatprep.subr.mxu0 0.0
        %1486 = vmatpush1.msra.mxu0 0.0
        %1487 = vmatprep.subr.mxu0 0.0
        %1488 = vmatpush1.msra.mxu0 0.0
        %1489 = vmatprep.subr.mxu0 0.0
        %1490 = vmatpush1.msra.mxu0 0.0
        %1491 = vmatprep.mubr.f32.mxu0 0.0
        %1492 = vmatmul.mubr.f32.gmra.mrb[0].mxu0 %v1419
        %v1493 = vpop.f32.mrb[0].mxu0
        %v1494 = vadd.f32 0.0, %v1493
        %v1495 = vpop.f32.mrb[0].mxu0
        %v1496 = vadd.f32 0.0, %v1495
        %1497 = vdwg.mxu0
        %v1499 = vsel %vm660, %v1390, 0
        %1501 = vmatprep.subr.mxu0 %v1399
        %1502 = vmatpush1.msra.mxu0 %v1398
        %1503 = vmatprep.subr.mxu0 %v1401
        %1504 = vmatpush1.msra.mxu0 %v1400
        %1505 = vmatprep.subr.mxu0 %v1403
        %1506 = vmatpush1.msra.mxu0 %v1402
        %1507 = vmatprep.subr.mxu0 %v1405
        %1508 = vmatpush1.msra.mxu0 %v1404
        %1509 = vmatprep.subr.mxu0 %v1425
        %1510 = vmatpush1.msra.mxu0 %v1422
        %1511 = vmatprep.subr.mxu0 0.0
        %1512 = vmatpush1.msra.mxu0 0.0
        %1513 = vmatprep.subr.mxu0 0.0
        %1514 = vmatpush1.msra.mxu0 0.0
        %1515 = vmatprep.subr.mxu0 0.0
        %1516 = vmatpush1.msra.mxu0 0.0
        %1517 = vmatprep.subr.mxu0 0.0
        %1518 = vmatpush1.msra.mxu0 0.0
        %1519 = vmatprep.subr.mxu0 0.0
        %1520 = vmatpush1.msra.mxu0 0.0
        %1521 = vmatprep.subr.mxu0 0.0
        %1522 = vmatpush1.msra.mxu0 0.0
        %1523 = vmatprep.subr.mxu0 0.0
        %1524 = vmatpush1.msra.mxu0 0.0
        %1525 = vmatprep.subr.mxu0 0.0
        %1526 = vmatpush1.msra.mxu0 0.0
        %1527 = vmatprep.subr.mxu0 0.0
        %1528 = vmatpush1.msra.mxu0 0.0
        %1529 = vmatprep.subr.mxu0 0.0
        %1530 = vmatpush1.msra.mxu0 0.0
        %1531 = vmatprep.subr.mxu0 0.0
        %1532 = vmatpush1.msra.mxu0 0.0
        %1533 = vmatprep.subr.mxu0 0.0
        %1534 = vmatpush1.msra.mxu0 0.0
        %1535 = vmatprep.subr.mxu0 0.0
        %1536 = vmatpush1.msra.mxu0 0.0
        %1537 = vmatprep.subr.mxu0 0.0
        %1538 = vmatpush1.msra.mxu0 0.0
        %1539 = vmatprep.subr.mxu0 0.0
        %1540 = vmatpush1.msra.mxu0 0.0
        %1541 = vmatprep.subr.mxu0 0.0
        %1542 = vmatpush1.msra.mxu0 0.0
        %1543 = vmatprep.subr.mxu0 0.0
        %1544 = vmatpush1.msra.mxu0 0.0
        %1545 = vmatprep.subr.mxu0 0.0
        %1546 = vmatpush1.msra.mxu0 0.0
        %1547 = vmatprep.subr.mxu0 0.0
        %1548 = vmatpush1.msra.mxu0 0.0
        %1549 = vmatprep.subr.mxu0 0.0
        %1550 = vmatpush1.msra.mxu0 0.0
        %1551 = vmatprep.subr.mxu0 0.0
        %1552 = vmatpush1.msra.mxu0 0.0
        %1553 = vmatprep.subr.mxu0 0.0
        %1554 = vmatpush1.msra.mxu0 0.0
        %1555 = vmatprep.subr.mxu0 0.0
        %1556 = vmatpush1.msra.mxu0 0.0
        %1557 = vmatprep.subr.mxu0 0.0
        %1558 = vmatpush1.msra.mxu0 0.0
        %1559 = vmatprep.subr.mxu0 0.0
        %1560 = vmatpush1.msra.mxu0 0.0
        %1561 = vmatprep.subr.mxu0 0.0
        %1562 = vmatpush1.msra.mxu0 0.0
        %1563 = vmatprep.subr.mxu0 0.0
        %1564 = vmatpush1.msra.mxu0 0.0
        %1565 = vmatprep.mubr.f32.mxu0 0.0
        %1566 = vmatmul.mubr.f32.gmra.mrb[0].mxu0 %v1499
        %v1567 = vpop.f32.mrb[0].mxu0
        %v1568 = vadd.f32 %v1494, %v1567
        %v1569 = vpop.f32.mrb[0].mxu0
        %v1570 = vadd.f32 %v1496, %v1569
        %1571 = vdwg.mxu0
        %v1573 = vsel %vm664, %v1416, 0
        %v1576 = vsel %vm664, %v1417, 0
        %1578 = vmatprep.subr.mxu0 %v1409
        %1579 = vmatpush1.msra.mxu0 %v1408
        %1580 = vmatprep.subr.mxu0 %v1411
        %1581 = vmatpush1.msra.mxu0 %v1410
        %1582 = vmatprep.subr.mxu0 %v1413
        %1583 = vmatpush1.msra.mxu0 %v1412
        %1584 = vmatprep.subr.mxu0 %v1415
        %1585 = vmatpush1.msra.mxu0 %v1414
        %1586 = vmatprep.subr.mxu0 %v1576
        %1587 = vmatpush1.msra.mxu0 %v1573
        %1588 = vmatprep.subr.mxu0 0.0
        %1589 = vmatpush1.msra.mxu0 0.0
        %1590 = vmatprep.subr.mxu0 0.0
        %1591 = vmatpush1.msra.mxu0 0.0
        %1592 = vmatprep.subr.mxu0 0.0
        %1593 = vmatpush1.msra.mxu0 0.0
        %1594 = vmatprep.subr.mxu0 0.0
        %1595 = vmatpush1.msra.mxu0 0.0
        %1596 = vmatprep.subr.mxu0 0.0
        %1597 = vmatpush1.msra.mxu0 0.0
        %1598 = vmatprep.subr.mxu0 0.0
        %1599 = vmatpush1.msra.mxu0 0.0
        %1600 = vmatprep.subr.mxu0 0.0
        %1601 = vmatpush1.msra.mxu0 0.0
        %1602 = vmatprep.subr.mxu0 0.0
        %1603 = vmatpush1.msra.mxu0 0.0
        %1604 = vmatprep.subr.mxu0 0.0
        %1605 = vmatpush1.msra.mxu0 0.0
        %1606 = vmatprep.subr.mxu0 0.0
        %1607 = vmatpush1.msra.mxu0 0.0
        %1608 = vmatprep.subr.mxu0 0.0
        %1609 = vmatpush1.msra.mxu0 0.0
        %1610 = vmatprep.subr.mxu0 0.0
        %1611 = vmatpush1.msra.mxu0 0.0
        %1612 = vmatprep.subr.mxu0 0.0
        %1613 = vmatpush1.msra.mxu0 0.0
        %1614 = vmatprep.subr.mxu0 0.0
        %1615 = vmatpush1.msra.mxu0 0.0
        %1616 = vmatprep.subr.mxu0 0.0
        %1617 = vmatpush1.msra.mxu0 0.0
        %1618 = vmatprep.subr.mxu0 0.0
        %1619 = vmatpush1.msra.mxu0 0.0
        %1620 = vmatprep.subr.mxu0 0.0
        %1621 = vmatpush1.msra.mxu0 0.0
        %1622 = vmatprep.subr.mxu0 0.0
        %1623 = vmatpush1.msra.mxu0 0.0
        %1624 = vmatprep.subr.mxu0 0.0
        %1625 = vmatpush1.msra.mxu0 0.0
        %1626 = vmatprep.subr.mxu0 0.0
        %1627 = vmatpush1.msra.mxu0 0.0
        %1628 = vmatprep.subr.mxu0 0.0
        %1629 = vmatpush1.msra.mxu0 0.0
        %1630 = vmatprep.subr.mxu0 0.0
        %1631 = vmatpush1.msra.mxu0 0.0
        %1632 = vmatprep.subr.mxu0 0.0
        %1633 = vmatpush1.msra.mxu0 0.0
        %1634 = vmatprep.subr.mxu0 0.0
        %1635 = vmatpush1.msra.mxu0 0.0
        %1636 = vmatprep.subr.mxu0 0.0
        %1637 = vmatpush1.msra.mxu0 0.0
        %1638 = vmatprep.subr.mxu0 0.0
        %1639 = vmatpush1.msra.mxu0 0.0
        %1640 = vmatprep.subr.mxu0 0.0
        %1641 = vmatpush1.msra.mxu0 0.0
        %1642 = vmatprep.mubr.f32.mxu0 0.0
        %1643 = vmatmul.mubr.f32.gmra.mrb[0].mxu0 %v1499
        %v1644 = vpop.f32.mrb[0].mxu0
        %v1645 = vadd.f32 0.0, %v1644
        %v1646 = vpop.f32.mrb[0].mxu0
        %v1647 = vadd.f32 0.0, %v1646
        %1648 = vdwg.mxu0
        %v1649 = vadd.f32 %v1568, %v1645
        %v1650 = vadd.f32 %v1570, %v1647
        %vm1651 = vcmp.gt.f32.partialorder %v1649, 0.0
        %vm1652 = vcmp.gt.f32.partialorder %v1650, 0.0
        %v1653 = vmul.f32 %v1649, 0.2
        %v1654 = vmul.f32 %v1650, 0.2
        %v1655 = vsel %vm1651, %v1649, %v1653
        %v1656 = vsel %vm1652, %v1650, %v1654
        %s1657 = scalar_lea.vmem %s4, 12
        %v1658 = vld [vmem:[%s1657] sm:$0xf]
        %1661 = vrot.lane.b32.xlu0 %v1655, 17
        %v1662 = vpop.permute.xlu0 %1661
        %1663 = vrot.lane.b32.xlu0 %v1656, 17
        %v1664 = vpop.permute.xlu0 %1663
        %v1665 = vsel %vm511, %v1662, %v1664
        %v1668 = vsel %vm511, 0.0, %v1662
        %v1669 = vsel %vm518, %v1668, 0.0
        %v1670 = vsel %vm519, %v1665, 0.0
        %1671 = vrot.lane.b32.xlu0 %v1655, 16
        %v1672 = vpop.permute.xlu0 %1671
        %1673 = vrot.lane.b32.xlu0 %v1656, 16
        %v1674 = vpop.permute.xlu0 %1673
        %v1675 = vsel %vm526, %v1672, %v1674
        %v1677 = vsel %vm526, 0.0, %v1672
        %1678 = vrot.lane.b32.xlu0 %v1655, 15
        %v1679 = vpop.permute.xlu0 %1678
        %1680 = vrot.lane.b32.xlu0 %v1656, 15
        %v1681 = vpop.permute.xlu0 %1680
        %v1682 = vsel %vm534, %v1679, %v1681
        %v1685 = vsel %vm534, 0.0, %v1679
        %v1686 = vsel %vm541, %v1685, 0.0
        %v1687 = vsel %vm542, %v1682, 0.0
        %1688 = vrot.lane.b32.xlu0 %v1655, 1
        %v1689 = vpop.permute.xlu0 %1688
        %1690 = vrot.lane.b32.xlu0 %v1656, 1
        %v1691 = vpop.permute.xlu0 %1690
        %v1692 = vsel %vm549, %v1689, %v1691
        %v1695 = vsel %vm549, 0.0, %v1689
        %v1696 = vsel %vm518, %v1695, 0.0
        %v1697 = vsel %vm519, %v1692, 0.0
        %1698 = vrot.lane.b32.xlu0 %v1655, 127
        %v1699 = vpop.permute.xlu0 %1698
        %1700 = vrot.lane.b32.xlu0 %v1656, 127
        %v1701 = vpop.permute.xlu0 %1700
        %v1702 = vsel %vm560, %v1699, %v1701
        %v1705 = vsel %vm560, %v1701, 0.0
        %v1706 = vsel %vm541, %v1702, 0.0
        %v1707 = vsel %vm542, %v1705, 0.0
        %1708 = vrot.lane.b32.xlu0 %v1655, 113
        %v1709 = vpop.permute.xlu0 %1708
        %1710 = vrot.lane.b32.xlu0 %v1656, 113
        %v1711 = vpop.permute.xlu0 %1710
        %v1712 = vsel %vm571, %v1709, %v1711
        %v1715 = vsel %vm571, %v1711, 0.0
        %v1716 = vsel %vm518, %v1712, 0.0
        %v1717 = vsel %vm519, %v1715, 0.0
        %1718 = vrot.lane.b32.xlu0 %v1655, 112
        %v1719 = vpop.permute.xlu0 %1718
        %1720 = vrot.lane.b32.xlu0 %v1656, 112
        %v1721 = vpop.permute.xlu0 %1720
        %v1722 = vsel %vm582, %v1719, %v1721
        %v1724 = vsel %vm582, %v1721, 0.0
        %1725 = vrot.lane.b32.xlu0 %v1655, 111
        %v1726 = vpop.permute.xlu0 %1725
        %1727 = vrot.lane.b32.xlu0 %v1656, 111
        %v1728 = vpop.permute.xlu0 %1727
        %v1729 = vsel %vm590, %v1726, %v1728
        %v1732 = vsel %vm590, %v1728, 0.0
        %v1733 = vsel %vm541, %v1729, 0.0
        %v1734 = vsel %vm542, %v1732, 0.0
        %v1736 = vrot.slane %v1677, 4
        %v1737 = vrot.slane %v1675, 4
        %v1742 = vrot.slane %v1696, 4
        %v1743 = vrot.slane %v1697, 4
        %v1748 = vrot.slane %v1706, 4
        %v1749 = vrot.slane %v1707, 4
        %v1753 = vrot.slane %v1722, 4
        %v1754 = vrot.slane %v1724, 4
        %v1757 = vsel %vm620, %v1669, %v1736
        %v1758 = vsel %vm620, %v1670, %v1737
        %v1759 = vsel %vm620, %v1686, %v1742
        %v1760 = vsel %vm620, %v1687, %v1743
        %v1761 = vsel %vm620, %v1655, %v1748
        %v1762 = vsel %vm620, %v1656, %v1749
        %v1763 = vsel %vm620, %v1716, %v1753
        %v1764 = vsel %vm620, %v1717, %v1754
        %v1765 = vsel %vm620, %v1733, 1.0
        %v1766 = vsel %vm620, %v1734, 1.0
        %v1767 = vpack.c.bf16 %v1658, %v1658
        %v1768 = vunpack.c.l.bf16 %v1767
        %v1769 = vsub.f32 %v1658, %v1768
        %v1770 = vpack.c.bf16 %v1759, %v1757
        %v1771 = vpack.c.bf16 %v1760, %v1758
        %v1772 = vpack.c.bf16 %v1763, %v1761
        %v1773 = vpack.c.bf16 %v1764, %v1762
        %v1774 = vpack.c.bf16 %v1765, %v1765
        %v1775 = vpack.c.bf16 %v1766, %v1766
        %v1776 = vunpack.c.l.bf16 %v1770
        %v1777 = vunpack.c.l.bf16 %v1771
        %v1778 = vunpack.c.h.bf16 %v1770
        %v1779 = vunpack.c.h.bf16 %v1771
        %v1780 = vunpack.c.l.bf16 %v1772
        %v1781 = vunpack.c.l.bf16 %v1773
        %v1782 = vunpack.c.h.bf16 %v1772
        %v1783 = vunpack.c.h.bf16 %v1773
        %v1784 = vunpack.c.l.bf16 %v1774
        %v1785 = vunpack.c.l.bf16 %v1775
        %v1786 = vsub.f32 %v1757, %v1776
        %v1787 = vsub.f32 %v1758, %v1777
        %v1788 = vsub.f32 %v1759, %v1778
        %v1789 = vsub.f32 %v1760, %v1779
        %v1790 = vsub.f32 %v1761, %v1780
        %v1791 = vsub.f32 %v1762, %v1781
        %v1792 = vsub.f32 %v1763, %v1782
        %v1793 = vsub.f32 %v1764, %v1783
        %v1794 = vsub.f32 %v1765, %v1784
        %v1795 = vsub.f32 %v1766, %v1785
        %v1797 = vsel %vm660, %v1769, 0
        %v1800 = vsel %vm664, %v1784, 0
        %v1803 = vsel %vm664, %v1785, 0
        %1805 = vmatprep.subr.mxu0 %v1777
        %1806 = vmatpush1.msra.mxu0 %v1776
        %1807 = vmatprep.subr.mxu0 %v1779
        %1808 = vmatpush1.msra.mxu0 %v1778
        %1809 = vmatprep.subr.mxu0 %v1781
        %1810 = vmatpush1.msra.mxu0 %v1780
        %1811 = vmatprep.subr.mxu0 %v1783
        %1812 = vmatpush1.msra.mxu0 %v1782
        %1813 = vmatprep.subr.mxu0 %v1803
        %1814 = vmatpush1.msra.mxu0 %v1800
        %1815 = vmatprep.subr.mxu0 0.0
        %1816 = vmatpush1.msra.mxu0 0.0
        %1817 = vmatprep.subr.mxu0 0.0
        %1818 = vmatpush1.msra.mxu0 0.0
        %1819 = vmatprep.subr.mxu0 0.0
        %1820 = vmatpush1.msra.mxu0 0.0
        %1821 = vmatprep.subr.mxu0 0.0
        %1822 = vmatpush1.msra.mxu0 0.0
        %1823 = vmatprep.subr.mxu0 0.0
        %1824 = vmatpush1.msra.mxu0 0.0
        %1825 = vmatprep.subr.mxu0 0.0
        %1826 = vmatpush1.msra.mxu0 0.0
        %1827 = vmatprep.subr.mxu0 0.0
        %1828 = vmatpush1.msra.mxu0 0.0
        %1829 = vmatprep.subr.mxu0 0.0
        %1830 = vmatpush1.msra.mxu0 0.0
        %1831 = vmatprep.subr.mxu0 0.0
        %1832 = vmatpush1.msra.mxu0 0.0
        %1833 = vmatprep.subr.mxu0 0.0
        %1834 = vmatpush1.msra.mxu0 0.0
        %1835 = vmatprep.subr.mxu0 0.0
        %1836 = vmatpush1.msra.mxu0 0.0
        %1837 = vmatprep.subr.mxu0 0.0
        %1838 = vmatpush1.msra.mxu0 0.0
        %1839 = vmatprep.subr.mxu0 0.0
        %1840 = vmatpush1.msra.mxu0 0.0
        %1841 = vmatprep.subr.mxu0 0.0
        %1842 = vmatpush1.msra.mxu0 0.0
        %1843 = vmatprep.subr.mxu0 0.0
        %1844 = vmatpush1.msra.mxu0 0.0
        %1845 = vmatprep.subr.mxu0 0.0
        %1846 = vmatpush1.msra.mxu0 0.0
        %1847 = vmatprep.subr.mxu0 0.0
        %1848 = vmatpush1.msra.mxu0 0.0
        %1849 = vmatprep.subr.mxu0 0.0
        %1850 = vmatpush1.msra.mxu0 0.0
        %1851 = vmatprep.subr.mxu0 0.0
        %1852 = vmatpush1.msra.mxu0 0.0
        %1853 = vmatprep.subr.mxu0 0.0
        %1854 = vmatpush1.msra.mxu0 0.0
        %1855 = vmatprep.subr.mxu0 0.0
        %1856 = vmatpush1.msra.mxu0 0.0
        %1857 = vmatprep.subr.mxu0 0.0
        %1858 = vmatpush1.msra.mxu0 0.0
        %1859 = vmatprep.subr.mxu0 0.0
        %1860 = vmatpush1.msra.mxu0 0.0
        %1861 = vmatprep.subr.mxu0 0.0
        %1862 = vmatpush1.msra.mxu0 0.0
        %1863 = vmatprep.subr.mxu0 0.0
        %1864 = vmatpush1.msra.mxu0 0.0
        %1865 = vmatprep.subr.mxu0 0.0
        %1866 = vmatpush1.msra.mxu0 0.0
        %1867 = vmatprep.subr.mxu0 0.0
        %1868 = vmatpush1.msra.mxu0 0.0
        %1869 = vmatprep.mubr.f32.mxu0 0.0
        %1870 = vmatmul.mubr.f32.gmra.mrb[0].mxu0 %v1797
        %v1871 = vpop.f32.mrb[0].mxu0
        %v1872 = vadd.f32 0.0, %v1871
        %v1873 = vpop.f32.mrb[0].mxu0
        %v1874 = vadd.f32 0.0, %v1873
        %1875 = vdwg.mxu0
        %v1877 = vsel %vm660, %v1768, 0
        %1879 = vmatprep.subr.mxu0 %v1777
        %1880 = vmatpush1.msra.mxu0 %v1776
        %1881 = vmatprep.subr.mxu0 %v1779
        %1882 = vmatpush1.msra.mxu0 %v1778
        %1883 = vmatprep.subr.mxu0 %v1781
        %1884 = vmatpush1.msra.mxu0 %v1780
        %1885 = vmatprep.subr.mxu0 %v1783
        %1886 = vmatpush1.msra.mxu0 %v1782
        %1887 = vmatprep.subr.mxu0 %v1803
        %1888 = vmatpush1.msra.mxu0 %v1800
        %1889 = vmatprep.subr.mxu0 0.0
        %1890 = vmatpush1.msra.mxu0 0.0
        %1891 = vmatprep.subr.mxu0 0.0
        %1892 = vmatpush1.msra.mxu0 0.0
        %1893 = vmatprep.subr.mxu0 0.0
        %1894 = vmatpush1.msra.mxu0 0.0
        %1895 = vmatprep.subr.mxu0 0.0
        %1896 = vmatpush1.msra.mxu0 0.0
        %1897 = vmatprep.subr.mxu0 0.0
        %1898 = vmatpush1.msra.mxu0 0.0
        %1899 = vmatprep.subr.mxu0 0.0
        %1900 = vmatpush1.msra.mxu0 0.0
        %1901 = vmatprep.subr.mxu0 0.0
        %1902 = vmatpush1.msra.mxu0 0.0
        %1903 = vmatprep.subr.mxu0 0.0
        %1904 = vmatpush1.msra.mxu0 0.0
        %1905 = vmatprep.subr.mxu0 0.0
        %1906 = vmatpush1.msra.mxu0 0.0
        %1907 = vmatprep.subr.mxu0 0.0
        %1908 = vmatpush1.msra.mxu0 0.0
        %1909 = vmatprep.subr.mxu0 0.0
        %1910 = vmatpush1.msra.mxu0 0.0
        %1911 = vmatprep.subr.mxu0 0.0
        %1912 = vmatpush1.msra.mxu0 0.0
        %1913 = vmatprep.subr.mxu0 0.0
        %1914 = vmatpush1.msra.mxu0 0.0
        %1915 = vmatprep.subr.mxu0 0.0
        %1916 = vmatpush1.msra.mxu0 0.0
        %1917 = vmatprep.subr.mxu0 0.0
        %1918 = vmatpush1.msra.mxu0 0.0
        %1919 = vmatprep.subr.mxu0 0.0
        %1920 = vmatpush1.msra.mxu0 0.0
        %1921 = vmatprep.subr.mxu0 0.0
        %1922 = vmatpush1.msra.mxu0 0.0
        %1923 = vmatprep.subr.mxu0 0.0
        %1924 = vmatpush1.msra.mxu0 0.0
        %1925 = vmatprep.subr.mxu0 0.0
        %1926 = vmatpush1.msra.mxu0 0.0
        %1927 = vmatprep.subr.mxu0 0.0
        %1928 = vmatpush1.msra.mxu0 0.0
        %1929 = vmatprep.subr.mxu0 0.0
        %1930 = vmatpush1.msra.mxu0 0.0
        %1931 = vmatprep.subr.mxu0 0.0
        %1932 = vmatpush1.msra.mxu0 0.0
        %1933 = vmatprep.subr.mxu0 0.0
        %1934 = vmatpush1.msra.mxu0 0.0
        %1935 = vmatprep.subr.mxu0 0.0
        %1936 = vmatpush1.msra.mxu0 0.0
        %1937 = vmatprep.subr.mxu0 0.0
        %1938 = vmatpush1.msra.mxu0 0.0
        %1939 = vmatprep.subr.mxu0 0.0
        %1940 = vmatpush1.msra.mxu0 0.0
        %1941 = vmatprep.subr.mxu0 0.0
        %1942 = vmatpush1.msra.mxu0 0.0
        %1943 = vmatprep.mubr.f32.mxu0 0.0
        %1944 = vmatmul.mubr.f32.gmra.mrb[0].mxu0 %v1877
        %v1945 = vpop.f32.mrb[0].mxu0
        %v1946 = vadd.f32 %v1872, %v1945
        %v1947 = vpop.f32.mrb[0].mxu0
        %v1948 = vadd.f32 %v1874, %v1947
        %1949 = vdwg.mxu0
        %v1951 = vsel %vm664, %v1794, 0
        %v1954 = vsel %vm664, %v1795, 0
        %1956 = vmatprep.subr.mxu0 %v1787
        %1957 = vmatpush1.msra.mxu0 %v1786
        %1958 = vmatprep.subr.mxu0 %v1789
        %1959 = vmatpush1.msra.mxu0 %v1788
        %1960 = vmatprep.subr.mxu0 %v1791
        %1961 = vmatpush1.msra.mxu0 %v1790
        %1962 = vmatprep.subr.mxu0 %v1793
        %1963 = vmatpush1.msra.mxu0 %v1792
        %1964 = vmatprep.subr.mxu0 %v1954
        %1965 = vmatpush1.msra.mxu0 %v1951
        %1966 = vmatprep.subr.mxu0 0.0
        %1967 = vmatpush1.msra.mxu0 0.0
        %1968 = vmatprep.subr.mxu0 0.0
        %1969 = vmatpush1.msra.mxu0 0.0
        %1970 = vmatprep.subr.mxu0 0.0
        %1971 = vmatpush1.msra.mxu0 0.0
        %1972 = vmatprep.subr.mxu0 0.0
        %1973 = vmatpush1.msra.mxu0 0.0
        %1974 = vmatprep.subr.mxu0 0.0
        %1975 = vmatpush1.msra.mxu0 0.0
        %1976 = vmatprep.subr.mxu0 0.0
        %1977 = vmatpush1.msra.mxu0 0.0
        %1978 = vmatprep.subr.mxu0 0.0
        %1979 = vmatpush1.msra.mxu0 0.0
        %1980 = vmatprep.subr.mxu0 0.0
        %1981 = vmatpush1.msra.mxu0 0.0
        %1982 = vmatprep.subr.mxu0 0.0
        %1983 = vmatpush1.msra.mxu0 0.0
        %1984 = vmatprep.subr.mxu0 0.0
        %1985 = vmatpush1.msra.mxu0 0.0
        %1986 = vmatprep.subr.mxu0 0.0
        %1987 = vmatpush1.msra.mxu0 0.0
        %1988 = vmatprep.subr.mxu0 0.0
        %1989 = vmatpush1.msra.mxu0 0.0
        %1990 = vmatprep.subr.mxu0 0.0
        %1991 = vmatpush1.msra.mxu0 0.0
        %1992 = vmatprep.subr.mxu0 0.0
        %1993 = vmatpush1.msra.mxu0 0.0
        %1994 = vmatprep.subr.mxu0 0.0
        %1995 = vmatpush1.msra.mxu0 0.0
        %1996 = vmatprep.subr.mxu0 0.0
        %1997 = vmatpush1.msra.mxu0 0.0
        %1998 = vmatprep.subr.mxu0 0.0
        %1999 = vmatpush1.msra.mxu0 0.0
        %2000 = vmatprep.subr.mxu0 0.0
        %2001 = vmatpush1.msra.mxu0 0.0
        %2002 = vmatprep.subr.mxu0 0.0
        %2003 = vmatpush1.msra.mxu0 0.0
        %2004 = vmatprep.subr.mxu0 0.0
        %2005 = vmatpush1.msra.mxu0 0.0
        %2006 = vmatprep.subr.mxu0 0.0
        %2007 = vmatpush1.msra.mxu0 0.0
        %2008 = vmatprep.subr.mxu0 0.0
        %2009 = vmatpush1.msra.mxu0 0.0
        %2010 = vmatprep.subr.mxu0 0.0
        %2011 = vmatpush1.msra.mxu0 0.0
        %2012 = vmatprep.subr.mxu0 0.0
        %2013 = vmatpush1.msra.mxu0 0.0
        %2014 = vmatprep.subr.mxu0 0.0
        %2015 = vmatpush1.msra.mxu0 0.0
        %2016 = vmatprep.subr.mxu0 0.0
        %2017 = vmatpush1.msra.mxu0 0.0
        %2018 = vmatprep.subr.mxu0 0.0
        %2019 = vmatpush1.msra.mxu0 0.0
        %2020 = vmatprep.mubr.f32.mxu0 0.0
        %2021 = vmatmul.mubr.f32.gmra.mrb[0].mxu0 %v1877
        %v2022 = vpop.f32.mrb[0].mxu0
        %v2023 = vadd.f32 0.0, %v2022
        %v2024 = vpop.f32.mrb[0].mxu0
        %v2025 = vadd.f32 0.0, %v2024
        %2026 = vdwg.mxu0
        %v2027 = vadd.f32 %v1946, %v2023
        %v2028 = vadd.f32 %v1948, %v2025
        %v2031 = vcombine.low %v2027, %v2028
        %v2033 = vadd.f32 %v1277, %v2031
        %v2034 = vld [vmem:[%s5] sm:$0x7]
        %v2036 = vcombine.high %v2033, %v2033
        %2037 = vrot.lane.b32.xlu0 %v2033, 17
        %v2038 = vpop.permute.xlu0 %2037
        %2039 = vrot.lane.b32.xlu0 %v2036, 17
        %v2040 = vpop.permute.xlu0 %2039
        %v2041 = vsel %vm511, %v2038, %v2040
        %v2044 = vsel %vm511, 0.0, %v2038
        %v2045 = vsel %vm518, %v2044, 0.0
        %v2046 = vsel %vm519, %v2041, 0.0
        %2047 = vrot.lane.b32.xlu0 %v2033, 16
        %v2048 = vpop.permute.xlu0 %2047
        %2049 = vrot.lane.b32.xlu0 %v2036, 16
        %v2050 = vpop.permute.xlu0 %2049
        %v2051 = vsel %vm526, %v2048, %v2050
        %v2053 = vsel %vm526, 0.0, %v2048
        %2054 = vrot.lane.b32.xlu0 %v2033, 15
        %v2055 = vpop.permute.xlu0 %2054
        %2056 = vrot.lane.b32.xlu0 %v2036, 15
        %v2057 = vpop.permute.xlu0 %2056
        %v2058 = vsel %vm534, %v2055, %v2057
        %v2061 = vsel %vm534, 0.0, %v2055
        %v2062 = vsel %vm541, %v2061, 0.0
        %v2063 = vsel %vm542, %v2058, 0.0
        %2064 = vrot.lane.b32.xlu0 %v2033, 1
        %v2065 = vpop.permute.xlu0 %2064
        %2066 = vrot.lane.b32.xlu0 %v2036, 1
        %v2067 = vpop.permute.xlu0 %2066
        %v2068 = vsel %vm549, %v2065, %v2067
        %v2071 = vsel %vm549, 0.0, %v2065
        %v2072 = vsel %vm518, %v2071, 0.0
        %v2073 = vsel %vm519, %v2068, 0.0
        %2074 = vrot.lane.b32.xlu0 %v2033, 127
        %v2075 = vpop.permute.xlu0 %2074
        %2076 = vrot.lane.b32.xlu0 %v2036, 127
        %v2077 = vpop.permute.xlu0 %2076
        %v2078 = vsel %vm560, %v2075, %v2077
        %v2081 = vsel %vm560, %v2077, 0.0
        %v2082 = vsel %vm541, %v2078, 0.0
        %v2083 = vsel %vm542, %v2081, 0.0
        %2084 = vrot.lane.b32.xlu0 %v2033, 113
        %v2085 = vpop.permute.xlu0 %2084
        %2086 = vrot.lane.b32.xlu0 %v2036, 113
        %v2087 = vpop.permute.xlu0 %2086
        %v2088 = vsel %vm571, %v2085, %v2087
        %v2091 = vsel %vm571, %v2087, 0.0
        %v2092 = vsel %vm518, %v2088, 0.0
        %v2093 = vsel %vm519, %v2091, 0.0
        %2094 = vrot.lane.b32.xlu0 %v2033, 112
        %v2095 = vpop.permute.xlu0 %2094
        %2096 = vrot.lane.b32.xlu0 %v2036, 112
        %v2097 = vpop.permute.xlu0 %2096
        %v2098 = vsel %vm582, %v2095, %v2097
        %v2100 = vsel %vm582, %v2097, 0.0
        %2101 = vrot.lane.b32.xlu0 %v2033, 111
        %v2102 = vpop.permute.xlu0 %2101
        %2103 = vrot.lane.b32.xlu0 %v2036, 111
        %v2104 = vpop.permute.xlu0 %2103
        %v2105 = vsel %vm590, %v2102, %v2104
        %v2108 = vsel %vm590, %v2104, 0.0
        %v2109 = vsel %vm541, %v2105, 0.0
        %v2110 = vsel %vm542, %v2108, 0.0
        %v2112 = vrot.slane %v2053, 4
        %v2113 = vrot.slane %v2051, 4
        %v2118 = vrot.slane %v2072, 4
        %v2119 = vrot.slane %v2073, 4
        %v2125 = vrot.slane %v2082, 4
        %v2126 = vrot.slane %v2083, 4
        %v2130 = vrot.slane %v2098, 4
        %v2131 = vrot.slane %v2100, 4
        %v2134 = vsel %vm620, %v2045, %v2112
        %v2135 = vsel %vm620, %v2046, %v2113
        %v2136 = vsel %vm620, %v2062, %v2118
        %v2137 = vsel %vm620, %v2063, %v2119
        %v2138 = vsel %vm620, %v2033, %v2125
        %v2139 = vsel %vm620, %v2036, %v2126
        %v2140 = vsel %vm620, %v2092, %v2130
        %v2141 = vsel %vm620, %v2093, %v2131
        %v2142 = vsel %vm620, %v2109, 1.0
        %v2143 = vsel %vm620, %v2110, 1.0
        %v2144 = vpack.c.bf16 %v2034, %v2034
        %v2145 = vunpack.c.l.bf16 %v2144
        %v2146 = vsub.f32 %v2034, %v2145
        %v2147 = vpack.c.bf16 %v2136, %v2134
        %v2148 = vpack.c.bf16 %v2137, %v2135
        %v2149 = vpack.c.bf16 %v2140, %v2138
        %v2150 = vpack.c.bf16 %v2141, %v2139
        %v2151 = vpack.c.bf16 %v2142, %v2142
        %v2152 = vpack.c.bf16 %v2143, %v2143
        %v2153 = vunpack.c.l.bf16 %v2147
        %v2154 = vunpack.c.l.bf16 %v2148
        %v2155 = vunpack.c.h.bf16 %v2147
        %v2156 = vunpack.c.h.bf16 %v2148
        %v2157 = vunpack.c.l.bf16 %v2149
        %v2158 = vunpack.c.l.bf16 %v2150
        %v2159 = vunpack.c.h.bf16 %v2149
        %v2160 = vunpack.c.h.bf16 %v2150
        %v2161 = vunpack.c.l.bf16 %v2151
        %v2162 = vunpack.c.l.bf16 %v2152
        %v2163 = vsub.f32 %v2134, %v2153
        %v2164 = vsub.f32 %v2135, %v2154
        %v2165 = vsub.f32 %v2136, %v2155
        %v2166 = vsub.f32 %v2137, %v2156
        %v2167 = vsub.f32 %v2138, %v2157
        %v2168 = vsub.f32 %v2139, %v2158
        %v2169 = vsub.f32 %v2140, %v2159
        %v2170 = vsub.f32 %v2141, %v2160
        %v2171 = vsub.f32 %v2142, %v2161
        %v2172 = vsub.f32 %v2143, %v2162
        %v2174 = vsel %vm660, %v2146, 0
        %v2177 = vsel %vm664, %v2161, 0
        %v2180 = vsel %vm664, %v2162, 0
        %2182 = vmatprep.subr.mxu0 %v2154
        %2183 = vmatpush1.msra.mxu0 %v2153
        %2184 = vmatprep.subr.mxu0 %v2156
        %2185 = vmatpush1.msra.mxu0 %v2155
        %2186 = vmatprep.subr.mxu0 %v2158
        %2187 = vmatpush1.msra.mxu0 %v2157
        %2188 = vmatprep.subr.mxu0 %v2160
        %2189 = vmatpush1.msra.mxu0 %v2159
        %2190 = vmatprep.subr.mxu0 %v2180
        %2191 = vmatpush1.msra.mxu0 %v2177
        %2192 = vmatprep.subr.mxu0 0.0
        %2193 = vmatpush1.msra.mxu0 0.0
        %2194 = vmatprep.subr.mxu0 0.0
        %2195 = vmatpush1.msra.mxu0 0.0
        %2196 = vmatprep.subr.mxu0 0.0
        %2197 = vmatpush1.msra.mxu0 0.0
        %2198 = vmatprep.subr.mxu0 0.0
        %2199 = vmatpush1.msra.mxu0 0.0
        %2200 = vmatprep.subr.mxu0 0.0
        %2201 = vmatpush1.msra.mxu0 0.0
        %2202 = vmatprep.subr.mxu0 0.0
        %2203 = vmatpush1.msra.mxu0 0.0
        %2204 = vmatprep.subr.mxu0 0.0
        %2205 = vmatpush1.msra.mxu0 0.0
        %2206 = vmatprep.subr.mxu0 0.0
        %2207 = vmatpush1.msra.mxu0 0.0
        %2208 = vmatprep.subr.mxu0 0.0
        %2209 = vmatpush1.msra.mxu0 0.0
        %2210 = vmatprep.subr.mxu0 0.0
        %2211 = vmatpush1.msra.mxu0 0.0
        %2212 = vmatprep.subr.mxu0 0.0
        %2213 = vmatpush1.msra.mxu0 0.0
        %2214 = vmatprep.subr.mxu0 0.0
        %2215 = vmatpush1.msra.mxu0 0.0
        %2216 = vmatprep.subr.mxu0 0.0
        %2217 = vmatpush1.msra.mxu0 0.0
        %2218 = vmatprep.subr.mxu0 0.0
        %2219 = vmatpush1.msra.mxu0 0.0
        %2220 = vmatprep.subr.mxu0 0.0
        %2221 = vmatpush1.msra.mxu0 0.0
        %2222 = vmatprep.subr.mxu0 0.0
        %2223 = vmatpush1.msra.mxu0 0.0
        %2224 = vmatprep.subr.mxu0 0.0
        %2225 = vmatpush1.msra.mxu0 0.0
        %2226 = vmatprep.subr.mxu0 0.0
        %2227 = vmatpush1.msra.mxu0 0.0
        %2228 = vmatprep.subr.mxu0 0.0
        %2229 = vmatpush1.msra.mxu0 0.0
        %2230 = vmatprep.subr.mxu0 0.0
        %2231 = vmatpush1.msra.mxu0 0.0
        %2232 = vmatprep.subr.mxu0 0.0
        %2233 = vmatpush1.msra.mxu0 0.0
        %2234 = vmatprep.subr.mxu0 0.0
        %2235 = vmatpush1.msra.mxu0 0.0
        %2236 = vmatprep.subr.mxu0 0.0
        %2237 = vmatpush1.msra.mxu0 0.0
        %2238 = vmatprep.subr.mxu0 0.0
        %2239 = vmatpush1.msra.mxu0 0.0
        %2240 = vmatprep.subr.mxu0 0.0
        %2241 = vmatpush1.msra.mxu0 0.0
        %2242 = vmatprep.subr.mxu0 0.0
        %2243 = vmatpush1.msra.mxu0 0.0
        %2244 = vmatprep.subr.mxu0 0.0
        %2245 = vmatpush1.msra.mxu0 0.0
        %2246 = vmatprep.mubr.f32.mxu0 0.0
        %2247 = vmatmul.mubr.f32.gmra.mrb[0].mxu0 %v2174
        %v2248 = vpop.f32.mrb[0].mxu0
        %v2249 = vadd.f32 0.0, %v2248
        %v2250 = vpop.f32.mrb[0].mxu0
        %v2251 = vadd.f32 0.0, %v2250
        %2252 = vdwg.mxu0
        %v2254 = vsel %vm660, %v2145, 0
        %2256 = vmatprep.subr.mxu0 %v2154
        %2257 = vmatpush1.msra.mxu0 %v2153
        %2258 = vmatprep.subr.mxu0 %v2156
        %2259 = vmatpush1.msra.mxu0 %v2155
        %2260 = vmatprep.subr.mxu0 %v2158
        %2261 = vmatpush1.msra.mxu0 %v2157
        %2262 = vmatprep.subr.mxu0 %v2160
        %2263 = vmatpush1.msra.mxu0 %v2159
        %2264 = vmatprep.subr.mxu0 %v2180
        %2265 = vmatpush1.msra.mxu0 %v2177
        %2266 = vmatprep.subr.mxu0 0.0
        %2267 = vmatpush1.msra.mxu0 0.0
        %2268 = vmatprep.subr.mxu0 0.0
        %2269 = vmatpush1.msra.mxu0 0.0
        %2270 = vmatprep.subr.mxu0 0.0
        %2271 = vmatpush1.msra.mxu0 0.0
        %2272 = vmatprep.subr.mxu0 0.0
        %2273 = vmatpush1.msra.mxu0 0.0
        %2274 = vmatprep.subr.mxu0 0.0
        %2275 = vmatpush1.msra.mxu0 0.0
        %2276 = vmatprep.subr.mxu0 0.0
        %2277 = vmatpush1.msra.mxu0 0.0
        %2278 = vmatprep.subr.mxu0 0.0
        %2279 = vmatpush1.msra.mxu0 0.0
        %2280 = vmatprep.subr.mxu0 0.0
        %2281 = vmatpush1.msra.mxu0 0.0
        %2282 = vmatprep.subr.mxu0 0.0
        %2283 = vmatpush1.msra.mxu0 0.0
        %2284 = vmatprep.subr.mxu0 0.0
        %2285 = vmatpush1.msra.mxu0 0.0
        %2286 = vmatprep.subr.mxu0 0.0
        %2287 = vmatpush1.msra.mxu0 0.0
        %2288 = vmatprep.subr.mxu0 0.0
        %2289 = vmatpush1.msra.mxu0 0.0
        %2290 = vmatprep.subr.mxu0 0.0
        %2291 = vmatpush1.msra.mxu0 0.0
        %2292 = vmatprep.subr.mxu0 0.0
        %2293 = vmatpush1.msra.mxu0 0.0
        %2294 = vmatprep.subr.mxu0 0.0
        %2295 = vmatpush1.msra.mxu0 0.0
        %2296 = vmatprep.subr.mxu0 0.0
        %2297 = vmatpush1.msra.mxu0 0.0
        %2298 = vmatprep.subr.mxu0 0.0
        %2299 = vmatpush1.msra.mxu0 0.0
        %2300 = vmatprep.subr.mxu0 0.0
        %2301 = vmatpush1.msra.mxu0 0.0
        %2302 = vmatprep.subr.mxu0 0.0
        %2303 = vmatpush1.msra.mxu0 0.0
        %2304 = vmatprep.subr.mxu0 0.0
        %2305 = vmatpush1.msra.mxu0 0.0
        %2306 = vmatprep.subr.mxu0 0.0
        %2307 = vmatpush1.msra.mxu0 0.0
        %2308 = vmatprep.subr.mxu0 0.0
        %2309 = vmatpush1.msra.mxu0 0.0
        %2310 = vmatprep.subr.mxu0 0.0
        %2311 = vmatpush1.msra.mxu0 0.0
        %2312 = vmatprep.subr.mxu0 0.0
        %2313 = vmatpush1.msra.mxu0 0.0
        %2314 = vmatprep.subr.mxu0 0.0
        %2315 = vmatpush1.msra.mxu0 0.0
        %2316 = vmatprep.subr.mxu0 0.0
        %2317 = vmatpush1.msra.mxu0 0.0
        %2318 = vmatprep.subr.mxu0 0.0
        %2319 = vmatpush1.msra.mxu0 0.0
        %2320 = vmatprep.mubr.f32.mxu0 0.0
        %2321 = vmatmul.mubr.f32.gmra.mrb[0].mxu0 %v2254
        %v2322 = vpop.f32.mrb[0].mxu0
        %v2323 = vadd.f32 %v2249, %v2322
        %v2324 = vpop.f32.mrb[0].mxu0
        %v2325 = vadd.f32 %v2251, %v2324
        %2326 = vdwg.mxu0
        %v2328 = vsel %vm664, %v2171, 0
        %v2331 = vsel %vm664, %v2172, 0
        %2333 = vmatprep.subr.mxu0 %v2164
        %2334 = vmatpush1.msra.mxu0 %v2163
        %2335 = vmatprep.subr.mxu0 %v2166
        %2336 = vmatpush1.msra.mxu0 %v2165
        %2337 = vmatprep.subr.mxu0 %v2168
        %2338 = vmatpush1.msra.mxu0 %v2167
        %2339 = vmatprep.subr.mxu0 %v2170
        %2340 = vmatpush1.msra.mxu0 %v2169
        %2341 = vmatprep.subr.mxu0 %v2331
        %2342 = vmatpush1.msra.mxu0 %v2328
        %2343 = vmatprep.subr.mxu0 0.0
        %2344 = vmatpush1.msra.mxu0 0.0
        %2345 = vmatprep.subr.mxu0 0.0
        %2346 = vmatpush1.msra.mxu0 0.0
        %2347 = vmatprep.subr.mxu0 0.0
        %2348 = vmatpush1.msra.mxu0 0.0
        %2349 = vmatprep.subr.mxu0 0.0
        %2350 = vmatpush1.msra.mxu0 0.0
        %2351 = vmatprep.subr.mxu0 0.0
        %2352 = vmatpush1.msra.mxu0 0.0
        %2353 = vmatprep.subr.mxu0 0.0
        %2354 = vmatpush1.msra.mxu0 0.0
        %2355 = vmatprep.subr.mxu0 0.0
        %2356 = vmatpush1.msra.mxu0 0.0
        %2357 = vmatprep.subr.mxu0 0.0
        %2358 = vmatpush1.msra.mxu0 0.0
        %2359 = vmatprep.subr.mxu0 0.0
        %2360 = vmatpush1.msra.mxu0 0.0
        %2361 = vmatprep.subr.mxu0 0.0
        %2362 = vmatpush1.msra.mxu0 0.0
        %2363 = vmatprep.subr.mxu0 0.0
        %2364 = vmatpush1.msra.mxu0 0.0
        %2365 = vmatprep.subr.mxu0 0.0
        %2366 = vmatpush1.msra.mxu0 0.0
        %2367 = vmatprep.subr.mxu0 0.0
        %2368 = vmatpush1.msra.mxu0 0.0
        %2369 = vmatprep.subr.mxu0 0.0
        %2370 = vmatpush1.msra.mxu0 0.0
        %2371 = vmatprep.subr.mxu0 0.0
        %2372 = vmatpush1.msra.mxu0 0.0
        %2373 = vmatprep.subr.mxu0 0.0
        %2374 = vmatpush1.msra.mxu0 0.0
        %2375 = vmatprep.subr.mxu0 0.0
        %2376 = vmatpush1.msra.mxu0 0.0
        %2377 = vmatprep.subr.mxu0 0.0
        %2378 = vmatpush1.msra.mxu0 0.0
        %2379 = vmatprep.subr.mxu0 0.0
        %2380 = vmatpush1.msra.mxu0 0.0
        %2381 = vmatprep.subr.mxu0 0.0
        %2382 = vmatpush1.msra.mxu0 0.0
        %2383 = vmatprep.subr.mxu0 0.0
        %2384 = vmatpush1.msra.mxu0 0.0
        %2385 = vmatprep.subr.mxu0 0.0
        %2386 = vmatpush1.msra.mxu0 0.0
        %2387 = vmatprep.subr.mxu0 0.0
        %2388 = vmatpush1.msra.mxu0 0.0
        %2389 = vmatprep.subr.mxu0 0.0
        %2390 = vmatpush1.msra.mxu0 0.0
        %2391 = vmatprep.subr.mxu0 0.0
        %2392 = vmatpush1.msra.mxu0 0.0
        %2393 = vmatprep.subr.mxu0 0.0
        %2394 = vmatpush1.msra.mxu0 0.0
        %2395 = vmatprep.subr.mxu0 0.0
        %2396 = vmatpush1.msra.mxu0 0.0
        %2397 = vmatprep.mubr.f32.mxu0 0.0
        %2398 = vmatmul.mubr.f32.gmra.mrb[0].mxu0 %v2254
        %v2399 = vpop.f32.mrb[0].mxu0
        %v2400 = vadd.f32 0.0, %v2399
        %v2401 = vpop.f32.mrb[0].mxu0
        %v2402 = vadd.f32 0.0, %v2401
        %2403 = vdwg.mxu0
        %v2404 = vadd.f32 %v2323, %v2400
        %v2405 = vadd.f32 %v2325, %v2402
        %v2408 = vcombine.low %v2404, %v2405
        %2410 = vst [vmem:[%s471] sm:$0x77] %v2408
        %v2412 = vunpack.c.l.s4 1966171168
        %v2413 = vunpack.c.0.s8 %v2412
        %v2414 = vlaneseq
        %v2415 = vshrl.u32 %v2414, 7
        %v2416 = vsub.s32 %v2413, %v2415
        %v2417 = vrot.slane %v2033, %v2416
        %v2418 = vcombine.high %v2417, %v2417
        %v2420 = vunpack.c.l.s4 1966171168
        %v2421 = vunpack.c.0.s8 %v2420
        %v2422 = vlaneseq
        %v2423 = vshrl.u32 %v2422, 7
        %v2424 = vsub.s32 %v2421, %v2423
        %v2425 = vrot.slane %v2417, %v2424
        %v2427 = vunpack.c.l.s4 1966171168
        %v2428 = vunpack.c.0.s8 %v2427
        %v2429 = vlaneseq
        %v2430 = vshrl.u32 %v2429, 7
        %v2431 = vsub.s32 %v2428, %v2430
        %v2432 = vrot.slane %v2418, %v2431
        %v2433 = vcombine.high %v2425, %v2425
        %v2434 = vcombine.high %v2432, %v2432
        %v2439 = vrot.slane %v2425, 1
        %v2440 = vrot.slane %v2432, 1
        %v2441 = vrot.slane %v2433, 1
        %v2442 = vrot.slane %v2434, 1
        %2447 = vrot.lane.b32.xlu0 %v2425, 112
        %v2448 = vpop.permute.xlu0 %2447
        %2449 = vrot.lane.b32.xlu0 %v2432, 112
        %v2450 = vpop.permute.xlu0 %2449
        %2451 = vrot.lane.b32.xlu0 %v2433, 112
        %v2452 = vpop.permute.xlu0 %2451
        %2453 = vrot.lane.b32.xlu0 %v2434, 112
        %v2454 = vpop.permute.xlu0 %2453
        %v2455 = vrot.slane %v2448, 1
        %v2456 = vrot.slane %v2450, 1
        %v2457 = vrot.slane %v2452, 1
        %v2458 = vrot.slane %v2454, 1
        %2459 = vrot.lane.b32.xlu0 %v2425, 96
        %v2460 = vpop.permute.xlu0 %2459
        %2461 = vrot.lane.b32.xlu0 %v2432, 96
        %v2462 = vpop.permute.xlu0 %2461
        %2463 = vrot.lane.b32.xlu0 %v2433, 96
        %v2464 = vpop.permute.xlu0 %2463
        %2465 = vrot.lane.b32.xlu0 %v2434, 96
        %v2466 = vpop.permute.xlu0 %2465
        %v2467 = vrot.slane %v2460, 1
        %v2468 = vrot.slane %v2462, 1
        %v2469 = vrot.slane %v2464, 1
        %v2470 = vrot.slane %v2466, 1
        %2471 = vrot.lane.b32.xlu0 %v2425, 80
        %v2472 = vpop.permute.xlu0 %2471
        %2473 = vrot.lane.b32.xlu0 %v2432, 80
        %v2474 = vpop.permute.xlu0 %2473
        %2475 = vrot.lane.b32.xlu0 %v2433, 80
        %v2476 = vpop.permute.xlu0 %2475
        %2477 = vrot.lane.b32.xlu0 %v2434, 80
        %v2478 = vpop.permute.xlu0 %2477
        %v2479 = vrot.slane %v2472, 1
        %v2480 = vrot.slane %v2474, 1
        %v2481 = vrot.slane %v2476, 1
        %v2482 = vrot.slane %v2478, 1
        %2483 = vrot.lane.b32.xlu0 %v2425, 64
        %v2484 = vpop.permute.xlu0 %2483
        %2485 = vrot.lane.b32.xlu0 %v2432, 64
        %v2486 = vpop.permute.xlu0 %2485
        %2487 = vrot.lane.b32.xlu0 %v2433, 64
        %v2488 = vpop.permute.xlu0 %2487
        %2489 = vrot.lane.b32.xlu0 %v2434, 64
        %v2490 = vpop.permute.xlu0 %2489
        %v2491 = vrot.slane %v2484, 1
        %v2492 = vrot.slane %v2486, 1
        %v2493 = vrot.slane %v2488, 1
        %v2494 = vrot.slane %v2490, 1
        %2495 = vrot.lane.b32.xlu0 %v2425, 48
        %v2496 = vpop.permute.xlu0 %2495
        %2497 = vrot.lane.b32.xlu0 %v2432, 48
        %v2498 = vpop.permute.xlu0 %2497
        %2499 = vrot.lane.b32.xlu0 %v2433, 48
        %v2500 = vpop.permute.xlu0 %2499
        %2501 = vrot.lane.b32.xlu0 %v2434, 48
        %v2502 = vpop.permute.xlu0 %2501
        %v2503 = vrot.slane %v2496, 1
        %v2504 = vrot.slane %v2498, 1
        %v2505 = vrot.slane %v2500, 1
        %v2506 = vrot.slane %v2502, 1
        %2507 = vrot.lane.b32.xlu0 %v2425, 32
        %v2508 = vpop.permute.xlu0 %2507
        %2509 = vrot.lane.b32.xlu0 %v2432, 32
        %v2510 = vpop.permute.xlu0 %2509
        %2511 = vrot.lane.b32.xlu0 %v2433, 32
        %v2512 = vpop.permute.xlu0 %2511
        %2513 = vrot.lane.b32.xlu0 %v2434, 32
        %v2514 = vpop.permute.xlu0 %2513
        %v2515 = vrot.slane %v2508, 1
        %v2516 = vrot.slane %v2510, 1
        %v2517 = vrot.slane %v2512, 1
        %v2518 = vrot.slane %v2514, 1
        %2519 = vrot.lane.b32.xlu0 %v2425, 16
        %v2520 = vpop.permute.xlu0 %2519
        %2521 = vrot.lane.b32.xlu0 %v2432, 16
        %v2522 = vpop.permute.xlu0 %2521
        %2523 = vrot.lane.b32.xlu0 %v2433, 16
        %v2524 = vpop.permute.xlu0 %2523
        %2525 = vrot.lane.b32.xlu0 %v2434, 16
        %v2526 = vpop.permute.xlu0 %2525
        %v2527 = vrot.slane %v2520, 1
        %v2528 = vrot.slane %v2522, 1
        %v2529 = vrot.slane %v2524, 1
        %v2530 = vrot.slane %v2526, 1
        %v2531 = vlaneseq
        %v2532 = vshrl.u32 %v2531, 7
        %v2533 = vsub.s32 0, %v2532
        %v2534 = vrot.slane %v2425, %v2533
        %v2535 = vlaneseq
        %v2536 = vshrl.u32 %v2535, 7
        %v2537 = vsub.s32 0, %v2536
        %v2538 = vrot.slane %v2432, %v2537
        %v2539 = vlaneseq
        %v2540 = vshrl.u32 %v2539, 7
        %v2541 = vsub.s32 0, %v2540
        %v2542 = vrot.slane %v2433, %v2541
        %v2543 = vlaneseq
        %v2544 = vshrl.u32 %v2543, 7
        %v2545 = vsub.s32 0, %v2544
        %v2546 = vrot.slane %v2434, %v2545
        %2547 = vrot.lane.b32.xlu0 %v2534, 112
        %v2548 = vpop.permute.xlu0 %2547
        %2549 = vrot.lane.b32.xlu0 %v2538, 112
        %v2550 = vpop.permute.xlu0 %2549
        %2551 = vrot.lane.b32.xlu0 %v2542, 112
        %v2552 = vpop.permute.xlu0 %2551
        %2553 = vrot.lane.b32.xlu0 %v2546, 112
        %v2554 = vpop.permute.xlu0 %2553
        %2559 = vrot.lane.b32.xlu0 %v2534, 96
        %v2560 = vpop.permute.xlu0 %2559
        %2561 = vrot.lane.b32.xlu0 %v2538, 96
        %v2562 = vpop.permute.xlu0 %2561
        %2563 = vrot.lane.b32.xlu0 %v2542, 96
        %v2564 = vpop.permute.xlu0 %2563
        %2565 = vrot.lane.b32.xlu0 %v2546, 96
        %v2566 = vpop.permute.xlu0 %2565
        %2571 = vrot.lane.b32.xlu0 %v2534, 80
        %v2572 = vpop.permute.xlu0 %2571
        %2573 = vrot.lane.b32.xlu0 %v2538, 80
        %v2574 = vpop.permute.xlu0 %2573
        %2575 = vrot.lane.b32.xlu0 %v2542, 80
        %v2576 = vpop.permute.xlu0 %2575
        %2577 = vrot.lane.b32.xlu0 %v2546, 80
        %v2578 = vpop.permute.xlu0 %2577
        %2583 = vrot.lane.b32.xlu0 %v2534, 64
        %v2584 = vpop.permute.xlu0 %2583
        %2585 = vrot.lane.b32.xlu0 %v2538, 64
        %v2586 = vpop.permute.xlu0 %2585
        %2587 = vrot.lane.b32.xlu0 %v2542, 64
        %v2588 = vpop.permute.xlu0 %2587
        %2589 = vrot.lane.b32.xlu0 %v2546, 64
        %v2590 = vpop.permute.xlu0 %2589
        %2595 = vrot.lane.b32.xlu0 %v2534, 48
        %v2596 = vpop.permute.xlu0 %2595
        %2597 = vrot.lane.b32.xlu0 %v2538, 48
        %v2598 = vpop.permute.xlu0 %2597
        %2599 = vrot.lane.b32.xlu0 %v2542, 48
        %v2600 = vpop.permute.xlu0 %2599
        %2601 = vrot.lane.b32.xlu0 %v2546, 48
        %v2602 = vpop.permute.xlu0 %2601
        %2607 = vrot.lane.b32.xlu0 %v2534, 32
        %v2608 = vpop.permute.xlu0 %2607
        %2609 = vrot.lane.b32.xlu0 %v2538, 32
        %v2610 = vpop.permute.xlu0 %2609
        %2611 = vrot.lane.b32.xlu0 %v2542, 32
        %v2612 = vpop.permute.xlu0 %2611
        %2613 = vrot.lane.b32.xlu0 %v2546, 32
        %v2614 = vpop.permute.xlu0 %2613
        %2619 = vrot.lane.b32.xlu0 %v2534, 16
        %v2620 = vpop.permute.xlu0 %2619
        %2621 = vrot.lane.b32.xlu0 %v2538, 16
        %v2622 = vpop.permute.xlu0 %2621
        %2623 = vrot.lane.b32.xlu0 %v2542, 16
        %v2624 = vpop.permute.xlu0 %2623
        %2625 = vrot.lane.b32.xlu0 %v2546, 16
        %v2626 = vpop.permute.xlu0 %2625
        %v2631 = vlaneseq
        %v2632 = vshrl.u32 %v2631, 7
        %v2633 = vsub.s32 0, %v2632
        %v2634 = vrot.slane %v2455, %v2633
        %v2635 = vlaneseq
        %v2636 = vshrl.u32 %v2635, 7
        %v2637 = vsub.s32 0, %v2636
        %v2638 = vrot.slane %v2456, %v2637
        %v2639 = vlaneseq
        %v2640 = vshrl.u32 %v2639, 7
        %v2641 = vsub.s32 0, %v2640
        %v2642 = vrot.slane %v2457, %v2641
        %v2643 = vlaneseq
        %v2644 = vshrl.u32 %v2643, 7
        %v2645 = vsub.s32 0, %v2644
        %v2646 = vrot.slane %v2458, %v2645
        %v2651 = vlaneseq
        %v2652 = vshrl.u32 %v2651, 7
        %v2653 = vsub.s32 0, %v2652
        %v2654 = vrot.slane %v2467, %v2653
        %v2655 = vlaneseq
        %v2656 = vshrl.u32 %v2655, 7
        %v2657 = vsub.s32 0, %v2656
        %v2658 = vrot.slane %v2468, %v2657
        %v2659 = vlaneseq
        %v2660 = vshrl.u32 %v2659, 7
        %v2661 = vsub.s32 0, %v2660
        %v2662 = vrot.slane %v2469, %v2661
        %v2663 = vlaneseq
        %v2664 = vshrl.u32 %v2663, 7
        %v2665 = vsub.s32 0, %v2664
        %v2666 = vrot.slane %v2470, %v2665
        %v2671 = vlaneseq
        %v2672 = vshrl.u32 %v2671, 7
        %v2673 = vsub.s32 0, %v2672
        %v2674 = vrot.slane %v2479, %v2673
        %v2675 = vlaneseq
        %v2676 = vshrl.u32 %v2675, 7
        %v2677 = vsub.s32 0, %v2676
        %v2678 = vrot.slane %v2480, %v2677
        %v2679 = vlaneseq
        %v2680 = vshrl.u32 %v2679, 7
        %v2681 = vsub.s32 0, %v2680
        %v2682 = vrot.slane %v2481, %v2681
        %v2683 = vlaneseq
        %v2684 = vshrl.u32 %v2683, 7
        %v2685 = vsub.s32 0, %v2684
        %v2686 = vrot.slane %v2482, %v2685
        %v2691 = vlaneseq
        %v2692 = vshrl.u32 %v2691, 7
        %v2693 = vsub.s32 0, %v2692
        %v2694 = vrot.slane %v2491, %v2693
        %v2695 = vlaneseq
        %v2696 = vshrl.u32 %v2695, 7
        %v2697 = vsub.s32 0, %v2696
        %v2698 = vrot.slane %v2492, %v2697
        %v2699 = vlaneseq
        %v2700 = vshrl.u32 %v2699, 7
        %v2701 = vsub.s32 0, %v2700
        %v2702 = vrot.slane %v2493, %v2701
        %v2703 = vlaneseq
        %v2704 = vshrl.u32 %v2703, 7
        %v2705 = vsub.s32 0, %v2704
        %v2706 = vrot.slane %v2494, %v2705
        %v2711 = vlaneseq
        %v2712 = vshrl.u32 %v2711, 7
        %v2713 = vsub.s32 0, %v2712
        %v2714 = vrot.slane %v2503, %v2713
        %v2715 = vlaneseq
        %v2716 = vshrl.u32 %v2715, 7
        %v2717 = vsub.s32 0, %v2716
        %v2718 = vrot.slane %v2504, %v2717
        %v2719 = vlaneseq
        %v2720 = vshrl.u32 %v2719, 7
        %v2721 = vsub.s32 0, %v2720
        %v2722 = vrot.slane %v2505, %v2721
        %v2723 = vlaneseq
        %v2724 = vshrl.u32 %v2723, 7
        %v2725 = vsub.s32 0, %v2724
        %v2726 = vrot.slane %v2506, %v2725
        %v2731 = vlaneseq
        %v2732 = vshrl.u32 %v2731, 7
        %v2733 = vsub.s32 0, %v2732
        %v2734 = vrot.slane %v2515, %v2733
        %v2735 = vlaneseq
        %v2736 = vshrl.u32 %v2735, 7
        %v2737 = vsub.s32 0, %v2736
        %v2738 = vrot.slane %v2516, %v2737
        %v2739 = vlaneseq
        %v2740 = vshrl.u32 %v2739, 7
        %v2741 = vsub.s32 0, %v2740
        %v2742 = vrot.slane %v2517, %v2741
        %v2743 = vlaneseq
        %v2744 = vshrl.u32 %v2743, 7
        %v2745 = vsub.s32 0, %v2744
        %v2746 = vrot.slane %v2518, %v2745
        %v2751 = vlaneseq
        %v2752 = vshrl.u32 %v2751, 7
        %v2753 = vsub.s32 0, %v2752
        %v2754 = vrot.slane %v2527, %v2753
        %v2755 = vlaneseq
        %v2756 = vshrl.u32 %v2755, 7
        %v2757 = vsub.s32 0, %v2756
        %v2758 = vrot.slane %v2528, %v2757
        %v2759 = vlaneseq
        %v2760 = vshrl.u32 %v2759, 7
        %v2761 = vsub.s32 0, %v2760
        %v2762 = vrot.slane %v2529, %v2761
        %v2763 = vlaneseq
        %v2764 = vshrl.u32 %v2763, 7
        %v2765 = vsub.s32 0, %v2764
        %v2766 = vrot.slane %v2530, %v2765
        %vm2771 = vcmask 1040384
        %v2772 = vsel %vm2771, %v2425, %v2548
        %v2773 = vsel %vm2771, %v2432, %v2550
        %v2774 = vsel %vm2771, %v2433, %v2552
        %v2775 = vsel %vm2771, %v2434, %v2554
        %vm2776 = vcmask 1041408
        %v2777 = vsel %vm2776, %v2772, %v2560
        %v2778 = vsel %vm2776, %v2773, %v2562
        %v2779 = vsel %vm2776, %v2774, %v2564
        %v2780 = vsel %vm2776, %v2775, %v2566
        %vm2781 = vcmask 1042432
        %v2782 = vsel %vm2781, %v2777, %v2572
        %v2783 = vsel %vm2781, %v2778, %v2574
        %v2784 = vsel %vm2781, %v2779, %v2576
        %v2785 = vsel %vm2781, %v2780, %v2578
        %v2786 = vsel %vm620, %v2782, %v2584
        %v2787 = vsel %vm620, %v2783, %v2586
        %v2788 = vsel %vm620, %v2784, %v2588
        %v2789 = vsel %vm620, %v2785, %v2590
        %v2790 = vsel %vm664, %v2786, %v2596
        %v2791 = vsel %vm664, %v2787, %v2598
        %v2792 = vsel %vm664, %v2788, %v2600
        %v2793 = vsel %vm664, %v2789, %v2602
        %vm2794 = vcmask 1045504
        %v2795 = vsel %vm2794, %v2790, %v2608
        %v2796 = vsel %vm2794, %v2791, %v2610
        %v2797 = vsel %vm2794, %v2792, %v2612
        %v2798 = vsel %vm2794, %v2793, %v2614
        %vm2799 = vcmask 1046528
        %v2800 = vsel %vm2799, %v2795, %v2620
        %v2801 = vsel %vm2799, %v2796, %v2622
        %v2802 = vsel %vm2799, %v2797, %v2624
        %v2803 = vsel %vm2799, %v2798, %v2626
        %v2804 = vsel %vm2771, %v2439, %v2634
        %v2805 = vsel %vm2771, %v2440, %v2638
        %v2806 = vsel %vm2771, %v2441, %v2642
        %v2807 = vsel %vm2771, %v2442, %v2646
        %v2808 = vsel %vm2776, %v2804, %v2654
        %v2809 = vsel %vm2776, %v2805, %v2658
        %v2810 = vsel %vm2776, %v2806, %v2662
        %v2811 = vsel %vm2776, %v2807, %v2666
        %v2812 = vsel %vm2781, %v2808, %v2674
        %v2813 = vsel %vm2781, %v2809, %v2678
        %v2814 = vsel %vm2781, %v2810, %v2682
        %v2815 = vsel %vm2781, %v2811, %v2686
        %v2816 = vsel %vm620, %v2812, %v2694
        %v2817 = vsel %vm620, %v2813, %v2698
        %v2818 = vsel %vm620, %v2814, %v2702
        %v2819 = vsel %vm620, %v2815, %v2706
        %v2820 = vsel %vm664, %v2816, %v2714
        %v2821 = vsel %vm664, %v2817, %v2718
        %v2822 = vsel %vm664, %v2818, %v2722
        %v2823 = vsel %vm664, %v2819, %v2726
        %v2824 = vsel %vm2794, %v2820, %v2734
        %v2825 = vsel %vm2794, %v2821, %v2738
        %v2826 = vsel %vm2794, %v2822, %v2742
        %v2827 = vsel %vm2794, %v2823, %v2746
        %v2828 = vsel %vm2799, %v2824, %v2754
        %v2829 = vsel %vm2799, %v2825, %v2758
        %v2830 = vsel %vm2799, %v2826, %v2762
        %v2831 = vsel %vm2799, %v2827, %v2766
        %v2832 = vld [vmem:[%s452] sm:$0xff]
        %v2833 = vld [vmem:[%s452 + $0x8] sm:$0xff]
        %v2834 = vld [vmem:[%s452 + $0x10] sm:$0xff]
        %v2835 = vld [vmem:[%s452 + $0x18] sm:$0xff]
        %v2836 = vld [vmem:[%s452 + $0x20] sm:$0xff]
        %v2837 = vld [vmem:[%s452 + $0x28] sm:$0xff]
        %v2838 = vld [vmem:[%s452 + $0x30] sm:$0xff]
        %v2839 = vld [vmem:[%s452 + $0x38] sm:$0xff]
        %v2840 = vld [vmem:[%s458] sm:$0xff]
        %v2841 = vld [vmem:[%s458 + $0x8] sm:$0xff]
        %v2842 = vld [vmem:[%s458 + $0x10] sm:$0xff]
        %v2843 = vld [vmem:[%s458 + $0x18] sm:$0xff]
        %v2844 = vld [vmem:[%s458 + $0x20] sm:$0xff]
        %v2845 = vld [vmem:[%s458 + $0x28] sm:$0xff]
        %v2846 = vld [vmem:[%s458 + $0x30] sm:$0xff]
        %v2847 = vld [vmem:[%s458 + $0x38] sm:$0xff]
        %v2848 = vld [vmem:[%s465] sm:$0xff]
        %v2849 = vld [vmem:[%s465 + $0x8] sm:$0xff]
        %v2850 = vld [vmem:[%s465 + $0x10] sm:$0xff]
        %v2851 = vld [vmem:[%s465 + $0x18] sm:$0xff]
        %v2852 = vld [vmem:[%s465 + $0x20] sm:$0xff]
        %v2853 = vld [vmem:[%s465 + $0x28] sm:$0xff]
        %v2854 = vld [vmem:[%s465 + $0x30] sm:$0xff]
        %v2855 = vld [vmem:[%s465 + $0x38] sm:$0xff]
        %v2856 = vsub.f32 %v2800, %v2832
        %v2857 = vsub.f32 %v2828, %v2833
        %v2858 = vsub.f32 %v2801, %v2834
        %v2859 = vsub.f32 %v2829, %v2835
        %v2860 = vsub.f32 %v2802, %v2836
        %v2861 = vsub.f32 %v2830, %v2837
        %v2862 = vsub.f32 %v2803, %v2838
        %v2863 = vsub.f32 %v2831, %v2839
        %v2864 = vsub.f32 %v2856, %v2840
        %v2865 = vsub.f32 %v2857, %v2841
        %v2866 = vsub.f32 %v2858, %v2842
        %v2867 = vsub.f32 %v2859, %v2843
        %v2868 = vsub.f32 %v2860, %v2844
        %v2869 = vsub.f32 %v2861, %v2845
        %v2870 = vsub.f32 %v2862, %v2846
        %v2871 = vsub.f32 %v2863, %v2847
        %v2872 = vadd.f32 %v2864, %v2848
        %v2873 = vadd.f32 %v2865, %v2849
        %v2874 = vadd.f32 %v2866, %v2850
        %v2875 = vadd.f32 %v2867, %v2851
        %v2876 = vadd.f32 %v2868, %v2852
        %v2877 = vadd.f32 %v2869, %v2853
        %v2878 = vadd.f32 %v2870, %v2854
        %v2879 = vadd.f32 %v2871, %v2855
        %v2880 = vadd.f32 %v2856, %v2840
        %v2881 = vadd.f32 %v2857, %v2841
        %v2882 = vadd.f32 %v2858, %v2842
        %v2883 = vadd.f32 %v2859, %v2843
        %v2884 = vadd.f32 %v2860, %v2844
        %v2885 = vadd.f32 %v2861, %v2845
        %v2886 = vadd.f32 %v2862, %v2846
        %v2887 = vadd.f32 %v2863, %v2847
        %v2888 = vsub.f32 %v2880, %v2848
        %v2889 = vsub.f32 %v2881, %v2849
        %v2890 = vsub.f32 %v2882, %v2850
        %v2891 = vsub.f32 %v2883, %v2851
        %v2892 = vsub.f32 %v2884, %v2852
        %v2893 = vsub.f32 %v2885, %v2853
        %v2894 = vsub.f32 %v2886, %v2854
        %v2895 = vsub.f32 %v2887, %v2855
        %v2896 = vadd.f32 %v2800, %v2832
        %v2897 = vadd.f32 %v2828, %v2833
        %v2898 = vadd.f32 %v2801, %v2834
        %v2899 = vadd.f32 %v2829, %v2835
        %v2900 = vadd.f32 %v2802, %v2836
        %v2901 = vadd.f32 %v2830, %v2837
        %v2902 = vadd.f32 %v2803, %v2838
        %v2903 = vadd.f32 %v2831, %v2839
        %v2904 = vsub.f32 %v2896, %v2840
        %v2905 = vsub.f32 %v2897, %v2841
        %v2906 = vsub.f32 %v2898, %v2842
        %v2907 = vsub.f32 %v2899, %v2843
        %v2908 = vsub.f32 %v2900, %v2844
        %v2909 = vsub.f32 %v2901, %v2845
        %v2910 = vsub.f32 %v2902, %v2846
        %v2911 = vsub.f32 %v2903, %v2847
        %v2912 = vsub.f32 %v2904, %v2848
        %v2913 = vsub.f32 %v2905, %v2849
        %v2914 = vsub.f32 %v2906, %v2850
        %v2915 = vsub.f32 %v2907, %v2851
        %v2916 = vsub.f32 %v2908, %v2852
        %v2917 = vsub.f32 %v2909, %v2853
        %v2918 = vsub.f32 %v2910, %v2854
        %v2919 = vsub.f32 %v2911, %v2855
        %v2920 = vadd.f32 %v2896, %v2840
        %v2921 = vadd.f32 %v2897, %v2841
        %v2922 = vadd.f32 %v2898, %v2842
        %v2923 = vadd.f32 %v2899, %v2843
        %v2924 = vadd.f32 %v2900, %v2844
        %v2925 = vadd.f32 %v2901, %v2845
        %v2926 = vadd.f32 %v2902, %v2846
        %v2927 = vadd.f32 %v2903, %v2847
        %v2928 = vadd.f32 %v2920, %v2848
        %v2929 = vadd.f32 %v2921, %v2849
        %v2930 = vadd.f32 %v2922, %v2850
        %v2931 = vadd.f32 %v2923, %v2851
        %v2932 = vadd.f32 %v2924, %v2852
        %v2933 = vadd.f32 %v2925, %v2853
        %v2934 = vadd.f32 %v2926, %v2854
        %v2935 = vadd.f32 %v2927, %v2855
        %v2936 = vld [vmem:[%s6] sm:$0xff]
        %v2937 = vld [vmem:[%s6 + $0x8] sm:$0xff]
        %v2938 = vld [vmem:[%s7] sm:$0xff]
        %v2939 = vld [vmem:[%s7 + $0x8] sm:$0xff]
        %v2940 = vpack.c.bf16 %v2873, %v2872
        %v2941 = vpack.c.bf16 %v2875, %v2874
        %v2942 = vpack.c.bf16 %v2877, %v2876
        %v2943 = vpack.c.bf16 %v2879, %v2878
        %v2944 = vunpack.c.l.bf16 %v2940
        %v2945 = vunpack.c.h.bf16 %v2940
        %v2946 = vunpack.c.l.bf16 %v2941
        %v2947 = vunpack.c.h.bf16 %v2941
        %v2948 = vunpack.c.l.bf16 %v2942
        %v2949 = vunpack.c.h.bf16 %v2942
        %v2950 = vunpack.c.l.bf16 %v2943
        %v2951 = vunpack.c.h.bf16 %v2943
        %v2952 = vsub.f32 %v2872, %v2944
        %v2953 = vsub.f32 %v2873, %v2945
        %v2954 = vsub.f32 %v2874, %v2946
        %v2955 = vsub.f32 %v2875, %v2947
        %v2956 = vsub.f32 %v2876, %v2948
        %v2957 = vsub.f32 %v2877, %v2949
        %v2958 = vsub.f32 %v2878, %v2950
        %v2959 = vsub.f32 %v2879, %v2951
        %v2961 = vsel %vm526, %v2952, 0
        %v2964 = vsel %vm526, %v2953, 0
        %v2967 = vsel %vm526, %v2954, 0
        %v2970 = vsel %vm526, %v2955, 0
        %v2973 = vsel %vm526, %v2956, 0
        %v2976 = vsel %vm526, %v2957, 0
        %v2979 = vsel %vm526, %v2958, 0
        %v2982 = vsel %vm526, %v2959, 0
        %2984 = vmatprep.subr.mxu0 0.0
        %2985 = vmatpush1.msra.mxu0 %v2936
        %2986 = vmatprep.subr.mxu0 0.0
        %2987 = vmatpush1.msra.mxu0 %v2937
        %2988 = vmatprep.subr.mxu0 0.0
        %2989 = vmatpush1.msra.mxu0 0.0
        %2990 = vmatprep.subr.mxu0 0.0
        %2991 = vmatpush1.msra.mxu0 0.0
        %2992 = vmatprep.subr.mxu0 0.0
        %2993 = vmatpush1.msra.mxu0 0.0
        %2994 = vmatprep.subr.mxu0 0.0
        %2995 = vmatpush1.msra.mxu0 0.0
        %2996 = vmatprep.subr.mxu0 0.0
        %2997 = vmatpush1.msra.mxu0 0.0
        %2998 = vmatprep.subr.mxu0 0.0
        %2999 = vmatpush1.msra.mxu0 0.0
        %3000 = vmatprep.subr.mxu0 0.0
        %3001 = vmatpush1.msra.mxu0 0.0
        %3002 = vmatprep.subr.mxu0 0.0
        %3003 = vmatpush1.msra.mxu0 0.0
        %3004 = vmatprep.subr.mxu0 0.0
        %3005 = vmatpush1.msra.mxu0 0.0
        %3006 = vmatprep.subr.mxu0 0.0
        %3007 = vmatpush1.msra.mxu0 0.0
        %3008 = vmatprep.subr.mxu0 0.0
        %3009 = vmatpush1.msra.mxu0 0.0
        %3010 = vmatprep.subr.mxu0 0.0
        %3011 = vmatpush1.msra.mxu0 0.0
        %3012 = vmatprep.subr.mxu0 0.0
        %3013 = vmatpush1.msra.mxu0 0.0
        %3014 = vmatprep.subr.mxu0 0.0
        %3015 = vmatpush1.msra.mxu0 0.0
        %3016 = vmatprep.subr.mxu0 0.0
        %3017 = vmatpush1.msra.mxu0 0.0
        %3018 = vmatprep.subr.mxu0 0.0
        %3019 = vmatpush1.msra.mxu0 0.0
        %3020 = vmatprep.subr.mxu0 0.0
        %3021 = vmatpush1.msra.mxu0 0.0
        %3022 = vmatprep.subr.mxu0 0.0
        %3023 = vmatpush1.msra.mxu0 0.0
        %3024 = vmatprep.subr.mxu0 0.0
        %3025 = vmatpush1.msra.mxu0 0.0
        %3026 = vmatprep.subr.mxu0 0.0
        %3027 = vmatpush1.msra.mxu0 0.0
        %3028 = vmatprep.subr.mxu0 0.0
        %3029 = vmatpush1.msra.mxu0 0.0
        %3030 = vmatprep.subr.mxu0 0.0
        %3031 = vmatpush1.msra.mxu0 0.0
        %3032 = vmatprep.subr.mxu0 0.0
        %3033 = vmatpush1.msra.mxu0 0.0
        %3034 = vmatprep.subr.mxu0 0.0
        %3035 = vmatpush1.msra.mxu0 0.0
        %3036 = vmatprep.subr.mxu0 0.0
        %3037 = vmatpush1.msra.mxu0 0.0
        %3038 = vmatprep.subr.mxu0 0.0
        %3039 = vmatpush1.msra.mxu0 0.0
        %3040 = vmatprep.subr.mxu0 0.0
        %3041 = vmatpush1.msra.mxu0 0.0
        %3042 = vmatprep.subr.mxu0 0.0
        %3043 = vmatpush1.msra.mxu0 0.0
        %3044 = vmatprep.subr.mxu0 0.0
        %3045 = vmatpush1.msra.mxu0 0.0
        %3046 = vmatprep.subr.mxu0 0.0
        %3047 = vmatpush1.msra.mxu0 0.0
        %3048 = vmatprep.mubr.f32.mxu0 0.0
        %3049 = vmatmul.mubr.f32.gmra.mrb[0].mxu0 %v2961
        %v3050 = vpop.f32.mrb[0].mxu0
        %v3051 = vadd.f32 0.0, %v3050
        %v3052 = vpop.f32.mrb[0].mxu0
        %3053 = vmatprep.mubr.f32.mxu0 0.0
        %3054 = vmatmul.mubr.f32.gmra.mrb[0].mxu0 %v2964
        %v3055 = vpop.f32.mrb[0].mxu0
        %v3056 = vadd.f32 0.0, %v3055
        %v3057 = vpop.f32.mrb[0].mxu0
        %3058 = vmatprep.mubr.f32.mxu0 0.0
        %3059 = vmatmul.mubr.f32.gmra.mrb[0].mxu0 %v2967
        %v3060 = vpop.f32.mrb[0].mxu0
        %v3061 = vadd.f32 0.0, %v3060
        %v3062 = vpop.f32.mrb[0].mxu0
        %3063 = vmatprep.mubr.f32.mxu0 0.0
        %3064 = vmatmul.mubr.f32.gmra.mrb[0].mxu0 %v2970
        %v3065 = vpop.f32.mrb[0].mxu0
        %v3066 = vadd.f32 0.0, %v3065
        %v3067 = vpop.f32.mrb[0].mxu0
        %3068 = vmatprep.mubr.f32.mxu0 0.0
        %3069 = vmatmul.mubr.f32.gmra.mrb[0].mxu0 %v2973
        %v3070 = vpop.f32.mrb[0].mxu0
        %v3071 = vadd.f32 0.0, %v3070
        %v3072 = vpop.f32.mrb[0].mxu0
        %3073 = vmatprep.mubr.f32.mxu0 0.0
        %3074 = vmatmul.mubr.f32.gmra.mrb[0].mxu0 %v2976
        %v3075 = vpop.f32.mrb[0].mxu0
        %v3076 = vadd.f32 0.0, %v3075
        %v3077 = vpop.f32.mrb[0].mxu0
        %3078 = vmatprep.mubr.f32.mxu0 0.0
        %3079 = vmatmul.mubr.f32.gmra.mrb[0].mxu0 %v2979
        %v3080 = vpop.f32.mrb[0].mxu0
        %v3081 = vadd.f32 0.0, %v3080
        %v3082 = vpop.f32.mrb[0].mxu0
        %3083 = vmatprep.mubr.f32.mxu0 0.0
        %3084 = vmatmul.mubr.f32.gmra.mrb[0].mxu0 %v2982
        %v3085 = vpop.f32.mrb[0].mxu0
        %v3086 = vadd.f32 0.0, %v3085
        %v3087 = vpop.f32.mrb[0].mxu0
        %3088 = vdwg.mxu0
        %v3090 = vsel %vm526, %v2944, 0
        %v3093 = vsel %vm526, %v2945, 0
        %v3096 = vsel %vm526, %v2946, 0
        %v3099 = vsel %vm526, %v2947, 0
        %v3102 = vsel %vm526, %v2948, 0
        %v3105 = vsel %vm526, %v2949, 0
        %v3108 = vsel %vm526, %v2950, 0
        %v3111 = vsel %vm526, %v2951, 0
        %3113 = vmatprep.subr.mxu0 0.0
        %3114 = vmatpush1.msra.mxu0 %v2936
        %3115 = vmatprep.subr.mxu0 0.0
        %3116 = vmatpush1.msra.mxu0 %v2937
        %3117 = vmatprep.subr.mxu0 0.0
        %3118 = vmatpush1.msra.mxu0 0.0
        %3119 = vmatprep.subr.mxu0 0.0
        %3120 = vmatpush1.msra.mxu0 0.0
        %3121 = vmatprep.subr.mxu0 0.0
        %3122 = vmatpush1.msra.mxu0 0.0
        %3123 = vmatprep.subr.mxu0 0.0
        %3124 = vmatpush1.msra.mxu0 0.0
        %3125 = vmatprep.subr.mxu0 0.0
        %3126 = vmatpush1.msra.mxu0 0.0
        %3127 = vmatprep.subr.mxu0 0.0
        %3128 = vmatpush1.msra.mxu0 0.0
        %3129 = vmatprep.subr.mxu0 0.0
        %3130 = vmatpush1.msra.mxu0 0.0
        %3131 = vmatprep.subr.mxu0 0.0
        %3132 = vmatpush1.msra.mxu0 0.0
        %3133 = vmatprep.subr.mxu0 0.0
        %3134 = vmatpush1.msra.mxu0 0.0
        %3135 = vmatprep.subr.mxu0 0.0
        %3136 = vmatpush1.msra.mxu0 0.0
        %3137 = vmatprep.subr.mxu0 0.0
        %3138 = vmatpush1.msra.mxu0 0.0
        %3139 = vmatprep.subr.mxu0 0.0
        %3140 = vmatpush1.msra.mxu0 0.0
        %3141 = vmatprep.subr.mxu0 0.0
        %3142 = vmatpush1.msra.mxu0 0.0
        %3143 = vmatprep.subr.mxu0 0.0
        %3144 = vmatpush1.msra.mxu0 0.0
        %3145 = vmatprep.subr.mxu0 0.0
        %3146 = vmatpush1.msra.mxu0 0.0
        %3147 = vmatprep.subr.mxu0 0.0
        %3148 = vmatpush1.msra.mxu0 0.0
        %3149 = vmatprep.subr.mxu0 0.0
        %3150 = vmatpush1.msra.mxu0 0.0
        %3151 = vmatprep.subr.mxu0 0.0
        %3152 = vmatpush1.msra.mxu0 0.0
        %3153 = vmatprep.subr.mxu0 0.0
        %3154 = vmatpush1.msra.mxu0 0.0
        %3155 = vmatprep.subr.mxu0 0.0
        %3156 = vmatpush1.msra.mxu0 0.0
        %3157 = vmatprep.subr.mxu0 0.0
        %3158 = vmatpush1.msra.mxu0 0.0
        %3159 = vmatprep.subr.mxu0 0.0
        %3160 = vmatpush1.msra.mxu0 0.0
        %3161 = vmatprep.subr.mxu0 0.0
        %3162 = vmatpush1.msra.mxu0 0.0
        %3163 = vmatprep.subr.mxu0 0.0
        %3164 = vmatpush1.msra.mxu0 0.0
        %3165 = vmatprep.subr.mxu0 0.0
        %3166 = vmatpush1.msra.mxu0 0.0
        %3167 = vmatprep.subr.mxu0 0.0
        %3168 = vmatpush1.msra.mxu0 0.0
        %3169 = vmatprep.subr.mxu0 0.0
        %3170 = vmatpush1.msra.mxu0 0.0
        %3171 = vmatprep.subr.mxu0 0.0
        %3172 = vmatpush1.msra.mxu0 0.0
        %3173 = vmatprep.subr.mxu0 0.0
        %3174 = vmatpush1.msra.mxu0 0.0
        %3175 = vmatprep.subr.mxu0 0.0
        %3176 = vmatpush1.msra.mxu0 0.0
        %3177 = vmatprep.mubr.f32.mxu0 0.0
        %3178 = vmatmul.mubr.f32.gmra.mrb[0].mxu0 %v3090
        %v3179 = vpop.f32.mrb[0].mxu0
        %v3180 = vadd.f32 %v3051, %v3179
        %v3181 = vpop.f32.mrb[0].mxu0
        %3182 = vmatprep.mubr.f32.mxu0 0.0
        %3183 = vmatmul.mubr.f32.gmra.mrb[0].mxu0 %v3093
        %v3184 = vpop.f32.mrb[0].mxu0
        %v3185 = vadd.f32 %v3056, %v3184
        %v3186 = vpop.f32.mrb[0].mxu0
        %3187 = vmatprep.mubr.f32.mxu0 0.0
        %3188 = vmatmul.mubr.f32.gmra.mrb[0].mxu0 %v3096
        %v3189 = vpop.f32.mrb[0].mxu0
        %v3190 = vadd.f32 %v3061, %v3189
        %v3191 = vpop.f32.mrb[0].mxu0
        %3192 = vmatprep.mubr.f32.mxu0 0.0
        %3193 = vmatmul.mubr.f32.gmra.mrb[0].mxu0 %v3099
        %v3194 = vpop.f32.mrb[0].mxu0
        %v3195 = vadd.f32 %v3066, %v3194
        %v3196 = vpop.f32.mrb[0].mxu0
        %3197 = vmatprep.mubr.f32.mxu0 0.0
        %3198 = vmatmul.mubr.f32.gmra.mrb[0].mxu0 %v3102
        %v3199 = vpop.f32.mrb[0].mxu0
        %v3200 = vadd.f32 %v3071, %v3199
        %v3201 = vpop.f32.mrb[0].mxu0
        %3202 = vmatprep.mubr.f32.mxu0 0.0
        %3203 = vmatmul.mubr.f32.gmra.mrb[0].mxu0 %v3105
        %v3204 = vpop.f32.mrb[0].mxu0
        %v3205 = vadd.f32 %v3076, %v3204
        %v3206 = vpop.f32.mrb[0].mxu0
        %3207 = vmatprep.mubr.f32.mxu0 0.0
        %3208 = vmatmul.mubr.f32.gmra.mrb[0].mxu0 %v3108
        %v3209 = vpop.f32.mrb[0].mxu0
        %v3210 = vadd.f32 %v3081, %v3209
        %v3211 = vpop.f32.mrb[0].mxu0
        %3212 = vmatprep.mubr.f32.mxu0 0.0
        %3213 = vmatmul.mubr.f32.gmra.mrb[0].mxu0 %v3111
        %v3214 = vpop.f32.mrb[0].mxu0
        %v3215 = vadd.f32 %v3086, %v3214
        %v3216 = vpop.f32.mrb[0].mxu0
        %3217 = vdwg.mxu0
        %v3218 = vpack.c.bf16 %v2913, %v2912
        %v3219 = vpack.c.bf16 %v2915, %v2914
        %v3220 = vpack.c.bf16 %v2917, %v2916
        %v3221 = vpack.c.bf16 %v2919, %v2918
        %v3222 = vunpack.c.l.bf16 %v3218
        %v3223 = vunpack.c.h.bf16 %v3218
        %v3224 = vunpack.c.l.bf16 %v3219
        %v3225 = vunpack.c.h.bf16 %v3219
        %v3226 = vunpack.c.l.bf16 %v3220
        %v3227 = vunpack.c.h.bf16 %v3220
        %v3228 = vunpack.c.l.bf16 %v3221
        %v3229 = vunpack.c.h.bf16 %v3221
        %v3230 = vsub.f32 %v2912, %v3222
        %v3231 = vsub.f32 %v2913, %v3223
        %v3232 = vsub.f32 %v2914, %v3224
        %v3233 = vsub.f32 %v2915, %v3225
        %v3234 = vsub.f32 %v2916, %v3226
        %v3235 = vsub.f32 %v2917, %v3227
        %v3236 = vsub.f32 %v2918, %v3228
        %v3237 = vsub.f32 %v2919, %v3229
        %v3239 = vsel %vm526, %v3230, 0
        %v3242 = vsel %vm526, %v3231, 0
        %v3245 = vsel %vm526, %v3232, 0
        %v3248 = vsel %vm526, %v3233, 0
        %v3251 = vsel %vm526, %v3234, 0
        %v3254 = vsel %vm526, %v3235, 0
        %v3257 = vsel %vm526, %v3236, 0
        %v3260 = vsel %vm526, %v3237, 0
        %3262 = vmatprep.subr.mxu0 0.0
        %3263 = vmatpush1.msra.mxu0 %v2938
        %3264 = vmatprep.subr.mxu0 0.0
        %3265 = vmatpush1.msra.mxu0 %v2939
        %3266 = vmatprep.subr.mxu0 0.0
        %3267 = vmatpush1.msra.mxu0 0.0
        %3268 = vmatprep.subr.mxu0 0.0
        %3269 = vmatpush1.msra.mxu0 0.0
        %3270 = vmatprep.subr.mxu0 0.0
        %3271 = vmatpush1.msra.mxu0 0.0
        %3272 = vmatprep.subr.mxu0 0.0
        %3273 = vmatpush1.msra.mxu0 0.0
        %3274 = vmatprep.subr.mxu0 0.0
        %3275 = vmatpush1.msra.mxu0 0.0
        %3276 = vmatprep.subr.mxu0 0.0
        %3277 = vmatpush1.msra.mxu0 0.0
        %3278 = vmatprep.subr.mxu0 0.0
        %3279 = vmatpush1.msra.mxu0 0.0
        %3280 = vmatprep.subr.mxu0 0.0
        %3281 = vmatpush1.msra.mxu0 0.0
        %3282 = vmatprep.subr.mxu0 0.0
        %3283 = vmatpush1.msra.mxu0 0.0
        %3284 = vmatprep.subr.mxu0 0.0
        %3285 = vmatpush1.msra.mxu0 0.0
        %3286 = vmatprep.subr.mxu0 0.0
        %3287 = vmatpush1.msra.mxu0 0.0
        %3288 = vmatprep.subr.mxu0 0.0
        %3289 = vmatpush1.msra.mxu0 0.0
        %3290 = vmatprep.subr.mxu0 0.0
        %3291 = vmatpush1.msra.mxu0 0.0
        %3292 = vmatprep.subr.mxu0 0.0
        %3293 = vmatpush1.msra.mxu0 0.0
        %3294 = vmatprep.subr.mxu0 0.0
        %3295 = vmatpush1.msra.mxu0 0.0
        %3296 = vmatprep.subr.mxu0 0.0
        %3297 = vmatpush1.msra.mxu0 0.0
        %3298 = vmatprep.subr.mxu0 0.0
        %3299 = vmatpush1.msra.mxu0 0.0
        %3300 = vmatprep.subr.mxu0 0.0
        %3301 = vmatpush1.msra.mxu0 0.0
        %3302 = vmatprep.subr.mxu0 0.0
        %3303 = vmatpush1.msra.mxu0 0.0
        %3304 = vmatprep.subr.mxu0 0.0
        %3305 = vmatpush1.msra.mxu0 0.0
        %3306 = vmatprep.subr.mxu0 0.0
        %3307 = vmatpush1.msra.mxu0 0.0
        %3308 = vmatprep.subr.mxu0 0.0
        %3309 = vmatpush1.msra.mxu0 0.0
        %3310 = vmatprep.subr.mxu0 0.0
        %3311 = vmatpush1.msra.mxu0 0.0
        %3312 = vmatprep.subr.mxu0 0.0
        %3313 = vmatpush1.msra.mxu0 0.0
        %3314 = vmatprep.subr.mxu0 0.0
        %3315 = vmatpush1.msra.mxu0 0.0
        %3316 = vmatprep.subr.mxu0 0.0
        %3317 = vmatpush1.msra.mxu0 0.0
        %3318 = vmatprep.subr.mxu0 0.0
        %3319 = vmatpush1.msra.mxu0 0.0
        %3320 = vmatprep.subr.mxu0 0.0
        %3321 = vmatpush1.msra.mxu0 0.0
        %3322 = vmatprep.subr.mxu0 0.0
        %3323 = vmatpush1.msra.mxu0 0.0
        %3324 = vmatprep.subr.mxu0 0.0
        %3325 = vmatpush1.msra.mxu0 0.0
        %3326 = vmatprep.mubr.f32.mxu0 0.0
        %3327 = vmatmul.mubr.f32.gmra.mrb[0].mxu0 %v3239
        %v3328 = vpop.f32.mrb[0].mxu0
        %v3329 = vadd.f32 0.0, %v3328
        %v3330 = vpop.f32.mrb[0].mxu0
        %3331 = vmatprep.mubr.f32.mxu0 0.0
        %3332 = vmatmul.mubr.f32.gmra.mrb[0].mxu0 %v3242
        %v3333 = vpop.f32.mrb[0].mxu0
        %v3334 = vadd.f32 0.0, %v3333
        %v3335 = vpop.f32.mrb[0].mxu0
        %3336 = vmatprep.mubr.f32.mxu0 0.0
        %3337 = vmatmul.mubr.f32.gmra.mrb[0].mxu0 %v3245
        %v3338 = vpop.f32.mrb[0].mxu0
        %v3339 = vadd.f32 0.0, %v3338
        %v3340 = vpop.f32.mrb[0].mxu0
        %3341 = vmatprep.mubr.f32.mxu0 0.0
        %3342 = vmatmul.mubr.f32.gmra.mrb[0].mxu0 %v3248
        %v3343 = vpop.f32.mrb[0].mxu0
        %v3344 = vadd.f32 0.0, %v3343
        %v3345 = vpop.f32.mrb[0].mxu0
        %3346 = vmatprep.mubr.f32.mxu0 0.0
        %3347 = vmatmul.mubr.f32.gmra.mrb[0].mxu0 %v3251
        %v3348 = vpop.f32.mrb[0].mxu0
        %v3349 = vadd.f32 0.0, %v3348
        %v3350 = vpop.f32.mrb[0].mxu0
        %3351 = vmatprep.mubr.f32.mxu0 0.0
        %3352 = vmatmul.mubr.f32.gmra.mrb[0].mxu0 %v3254
        %v3353 = vpop.f32.mrb[0].mxu0
        %v3354 = vadd.f32 0.0, %v3353
        %v3355 = vpop.f32.mrb[0].mxu0
        %3356 = vmatprep.mubr.f32.mxu0 0.0
        %3357 = vmatmul.mubr.f32.gmra.mrb[0].mxu0 %v3257
        %v3358 = vpop.f32.mrb[0].mxu0
        %v3359 = vadd.f32 0.0, %v3358
        %v3360 = vpop.f32.mrb[0].mxu0
        %3361 = vmatprep.mubr.f32.mxu0 0.0
        %3362 = vmatmul.mubr.f32.gmra.mrb[0].mxu0 %v3260
        %v3363 = vpop.f32.mrb[0].mxu0
        %v3364 = vadd.f32 0.0, %v3363
        %v3365 = vpop.f32.mrb[0].mxu0
        %3366 = vdwg.mxu0
        %v3368 = vsel %vm526, %v3222, 0
        %v3371 = vsel %vm526, %v3223, 0
        %v3374 = vsel %vm526, %v3224, 0
        %v3377 = vsel %vm526, %v3225, 0
        %v3380 = vsel %vm526, %v3226, 0
        %v3383 = vsel %vm526, %v3227, 0
        %v3386 = vsel %vm526, %v3228, 0
        %v3389 = vsel %vm526, %v3229, 0
        %3391 = vmatprep.subr.mxu0 0.0
        %3392 = vmatpush1.msra.mxu0 %v2938
        %3393 = vmatprep.subr.mxu0 0.0
        %3394 = vmatpush1.msra.mxu0 %v2939
        %3395 = vmatprep.subr.mxu0 0.0
        %3396 = vmatpush1.msra.mxu0 0.0
        %3397 = vmatprep.subr.mxu0 0.0
        %3398 = vmatpush1.msra.mxu0 0.0
        %3399 = vmatprep.subr.mxu0 0.0
        %3400 = vmatpush1.msra.mxu0 0.0
        %3401 = vmatprep.subr.mxu0 0.0
        %3402 = vmatpush1.msra.mxu0 0.0
        %3403 = vmatprep.subr.mxu0 0.0
        %3404 = vmatpush1.msra.mxu0 0.0
        %3405 = vmatprep.subr.mxu0 0.0
        %3406 = vmatpush1.msra.mxu0 0.0
        %3407 = vmatprep.subr.mxu0 0.0
        %3408 = vmatpush1.msra.mxu0 0.0
        %3409 = vmatprep.subr.mxu0 0.0
        %3410 = vmatpush1.msra.mxu0 0.0
        %3411 = vmatprep.subr.mxu0 0.0
        %3412 = vmatpush1.msra.mxu0 0.0
        %3413 = vmatprep.subr.mxu0 0.0
        %3414 = vmatpush1.msra.mxu0 0.0
        %3415 = vmatprep.subr.mxu0 0.0
        %3416 = vmatpush1.msra.mxu0 0.0
        %3417 = vmatprep.subr.mxu0 0.0
        %3418 = vmatpush1.msra.mxu0 0.0
        %3419 = vmatprep.subr.mxu0 0.0
        %3420 = vmatpush1.msra.mxu0 0.0
        %3421 = vmatprep.subr.mxu0 0.0
        %3422 = vmatpush1.msra.mxu0 0.0
        %3423 = vmatprep.subr.mxu0 0.0
        %3424 = vmatpush1.msra.mxu0 0.0
        %3425 = vmatprep.subr.mxu0 0.0
        %3426 = vmatpush1.msra.mxu0 0.0
        %3427 = vmatprep.subr.mxu0 0.0
        %3428 = vmatpush1.msra.mxu0 0.0
        %3429 = vmatprep.subr.mxu0 0.0
        %3430 = vmatpush1.msra.mxu0 0.0
        %3431 = vmatprep.subr.mxu0 0.0
        %3432 = vmatpush1.msra.mxu0 0.0
        %3433 = vmatprep.subr.mxu0 0.0
        %3434 = vmatpush1.msra.mxu0 0.0
        %3435 = vmatprep.subr.mxu0 0.0
        %3436 = vmatpush1.msra.mxu0 0.0
        %3437 = vmatprep.subr.mxu0 0.0
        %3438 = vmatpush1.msra.mxu0 0.0
        %3439 = vmatprep.subr.mxu0 0.0
        %3440 = vmatpush1.msra.mxu0 0.0
        %3441 = vmatprep.subr.mxu0 0.0
        %3442 = vmatpush1.msra.mxu0 0.0
        %3443 = vmatprep.subr.mxu0 0.0
        %3444 = vmatpush1.msra.mxu0 0.0
        %3445 = vmatprep.subr.mxu0 0.0
        %3446 = vmatpush1.msra.mxu0 0.0
        %3447 = vmatprep.subr.mxu0 0.0
        %3448 = vmatpush1.msra.mxu0 0.0
        %3449 = vmatprep.subr.mxu0 0.0
        %3450 = vmatpush1.msra.mxu0 0.0
        %3451 = vmatprep.subr.mxu0 0.0
        %3452 = vmatpush1.msra.mxu0 0.0
        %3453 = vmatprep.subr.mxu0 0.0
        %3454 = vmatpush1.msra.mxu0 0.0
        %3455 = vmatprep.mubr.f32.mxu0 0.0
        %3456 = vmatmul.mubr.f32.gmra.mrb[0].mxu0 %v3368
        %v3457 = vpop.f32.mrb[0].mxu0
        %v3458 = vadd.f32 %v3329, %v3457
        %v3459 = vpop.f32.mrb[0].mxu0
        %3460 = vmatprep.mubr.f32.mxu0 0.0
        %3461 = vmatmul.mubr.f32.gmra.mrb[0].mxu0 %v3371
        %v3462 = vpop.f32.mrb[0].mxu0
        %v3463 = vadd.f32 %v3334, %v3462
        %v3464 = vpop.f32.mrb[0].mxu0
        %3465 = vmatprep.mubr.f32.mxu0 0.0
        %3466 = vmatmul.mubr.f32.gmra.mrb[0].mxu0 %v3374
        %v3467 = vpop.f32.mrb[0].mxu0
        %v3468 = vadd.f32 %v3339, %v3467
        %v3469 = vpop.f32.mrb[0].mxu0
        %3470 = vmatprep.mubr.f32.mxu0 0.0
        %3471 = vmatmul.mubr.f32.gmra.mrb[0].mxu0 %v3377
        %v3472 = vpop.f32.mrb[0].mxu0
        %v3473 = vadd.f32 %v3344, %v3472
        %v3474 = vpop.f32.mrb[0].mxu0
        %3475 = vmatprep.mubr.f32.mxu0 0.0
        %3476 = vmatmul.mubr.f32.gmra.mrb[0].mxu0 %v3380
        %v3477 = vpop.f32.mrb[0].mxu0
        %v3478 = vadd.f32 %v3349, %v3477
        %v3479 = vpop.f32.mrb[0].mxu0
        %3480 = vmatprep.mubr.f32.mxu0 0.0
        %3481 = vmatmul.mubr.f32.gmra.mrb[0].mxu0 %v3383
        %v3482 = vpop.f32.mrb[0].mxu0
        %v3483 = vadd.f32 %v3354, %v3482
        %v3484 = vpop.f32.mrb[0].mxu0
        %3485 = vmatprep.mubr.f32.mxu0 0.0
        %3486 = vmatmul.mubr.f32.gmra.mrb[0].mxu0 %v3386
        %v3487 = vpop.f32.mrb[0].mxu0
        %v3488 = vadd.f32 %v3359, %v3487
        %v3489 = vpop.f32.mrb[0].mxu0
        %3490 = vmatprep.mubr.f32.mxu0 0.0
        %3491 = vmatmul.mubr.f32.gmra.mrb[0].mxu0 %v3389
        %v3492 = vpop.f32.mrb[0].mxu0
        %v3493 = vadd.f32 %v3364, %v3492
        %v3494 = vpop.f32.mrb[0].mxu0
        %3495 = vdwg.mxu0
        %v3496 = vadd.f32 %v3180, %v3458
        %v3497 = vadd.f32 %v3185, %v3463
        %v3498 = vadd.f32 %v3190, %v3468
        %v3499 = vadd.f32 %v3195, %v3473
        %v3500 = vadd.f32 %v3200, %v3478
        %v3501 = vadd.f32 %v3205, %v3483
        %v3502 = vadd.f32 %v3210, %v3488
        %v3503 = vadd.f32 %v3215, %v3493
        %v3504 = vpack.c.bf16 %v2889, %v2888
        %v3505 = vpack.c.bf16 %v2891, %v2890
        %v3506 = vpack.c.bf16 %v2893, %v2892
        %v3507 = vpack.c.bf16 %v2895, %v2894
        %v3508 = vunpack.c.l.bf16 %v3504
        %v3509 = vunpack.c.h.bf16 %v3504
        %v3510 = vunpack.c.l.bf16 %v3505
        %v3511 = vunpack.c.h.bf16 %v3505
        %v3512 = vunpack.c.l.bf16 %v3506
        %v3513 = vunpack.c.h.bf16 %v3506
        %v3514 = vunpack.c.l.bf16 %v3507
        %v3515 = vunpack.c.h.bf16 %v3507
        %v3516 = vsub.f32 %v2888, %v3508
        %v3517 = vsub.f32 %v2889, %v3509
        %v3518 = vsub.f32 %v2890, %v3510
        %v3519 = vsub.f32 %v2891, %v3511
        %v3520 = vsub.f32 %v2892, %v3512
        %v3521 = vsub.f32 %v2893, %v3513
        %v3522 = vsub.f32 %v2894, %v3514
        %v3523 = vsub.f32 %v2895, %v3515
        %v3525 = vsel %vm526, %v3516, 0
        %v3528 = vsel %vm526, %v3517, 0
        %v3531 = vsel %vm526, %v3518, 0
        %v3534 = vsel %vm526, %v3519, 0
        %v3537 = vsel %vm526, %v3520, 0
        %v3540 = vsel %vm526, %v3521, 0
        %v3543 = vsel %vm526, %v3522, 0
        %v3546 = vsel %vm526, %v3523, 0
        %3548 = vmatprep.subr.mxu0 0.0
        %3549 = vmatpush1.msra.mxu0 %v2936
        %3550 = vmatprep.subr.mxu0 0.0
        %3551 = vmatpush1.msra.mxu0 %v2937
        %3552 = vmatprep.subr.mxu0 0.0
        %3553 = vmatpush1.msra.mxu0 0.0
        %3554 = vmatprep.subr.mxu0 0.0
        %3555 = vmatpush1.msra.mxu0 0.0
        %3556 = vmatprep.subr.mxu0 0.0
        %3557 = vmatpush1.msra.mxu0 0.0
        %3558 = vmatprep.subr.mxu0 0.0
        %3559 = vmatpush1.msra.mxu0 0.0
        %3560 = vmatprep.subr.mxu0 0.0
        %3561 = vmatpush1.msra.mxu0 0.0
        %3562 = vmatprep.subr.mxu0 0.0
        %3563 = vmatpush1.msra.mxu0 0.0
        %3564 = vmatprep.subr.mxu0 0.0
        %3565 = vmatpush1.msra.mxu0 0.0
        %3566 = vmatprep.subr.mxu0 0.0
        %3567 = vmatpush1.msra.mxu0 0.0
        %3568 = vmatprep.subr.mxu0 0.0
        %3569 = vmatpush1.msra.mxu0 0.0
        %3570 = vmatprep.subr.mxu0 0.0
        %3571 = vmatpush1.msra.mxu0 0.0
        %3572 = vmatprep.subr.mxu0 0.0
        %3573 = vmatpush1.msra.mxu0 0.0
        %3574 = vmatprep.subr.mxu0 0.0
        %3575 = vmatpush1.msra.mxu0 0.0
        %3576 = vmatprep.subr.mxu0 0.0
        %3577 = vmatpush1.msra.mxu0 0.0
        %3578 = vmatprep.subr.mxu0 0.0
        %3579 = vmatpush1.msra.mxu0 0.0
        %3580 = vmatprep.subr.mxu0 0.0
        %3581 = vmatpush1.msra.mxu0 0.0
        %3582 = vmatprep.subr.mxu0 0.0
        %3583 = vmatpush1.msra.mxu0 0.0
        %3584 = vmatprep.subr.mxu0 0.0
        %3585 = vmatpush1.msra.mxu0 0.0
        %3586 = vmatprep.subr.mxu0 0.0
        %3587 = vmatpush1.msra.mxu0 0.0
        %3588 = vmatprep.subr.mxu0 0.0
        %3589 = vmatpush1.msra.mxu0 0.0
        %3590 = vmatprep.subr.mxu0 0.0
        %3591 = vmatpush1.msra.mxu0 0.0
        %3592 = vmatprep.subr.mxu0 0.0
        %3593 = vmatpush1.msra.mxu0 0.0
        %3594 = vmatprep.subr.mxu0 0.0
        %3595 = vmatpush1.msra.mxu0 0.0
        %3596 = vmatprep.subr.mxu0 0.0
        %3597 = vmatpush1.msra.mxu0 0.0
        %3598 = vmatprep.subr.mxu0 0.0
        %3599 = vmatpush1.msra.mxu0 0.0
        %3600 = vmatprep.subr.mxu0 0.0
        %3601 = vmatpush1.msra.mxu0 0.0
        %3602 = vmatprep.subr.mxu0 0.0
        %3603 = vmatpush1.msra.mxu0 0.0
        %3604 = vmatprep.subr.mxu0 0.0
        %3605 = vmatpush1.msra.mxu0 0.0
        %3606 = vmatprep.subr.mxu0 0.0
        %3607 = vmatpush1.msra.mxu0 0.0
        %3608 = vmatprep.subr.mxu0 0.0
        %3609 = vmatpush1.msra.mxu0 0.0
        %3610 = vmatprep.subr.mxu0 0.0
        %3611 = vmatpush1.msra.mxu0 0.0
        %3612 = vmatprep.mubr.f32.mxu0 0.0
        %3613 = vmatmul.mubr.f32.gmra.mrb[0].mxu0 %v3525
        %v3614 = vpop.f32.mrb[0].mxu0
        %v3615 = vadd.f32 0.0, %v3614
        %v3616 = vpop.f32.mrb[0].mxu0
        %3617 = vmatprep.mubr.f32.mxu0 0.0
        %3618 = vmatmul.mubr.f32.gmra.mrb[0].mxu0 %v3528
        %v3619 = vpop.f32.mrb[0].mxu0
        %v3620 = vadd.f32 0.0, %v3619
        %v3621 = vpop.f32.mrb[0].mxu0
        %3622 = vmatprep.mubr.f32.mxu0 0.0
        %3623 = vmatmul.mubr.f32.gmra.mrb[0].mxu0 %v3531
        %v3624 = vpop.f32.mrb[0].mxu0
        %v3625 = vadd.f32 0.0, %v3624
        %v3626 = vpop.f32.mrb[0].mxu0
        %3627 = vmatprep.mubr.f32.mxu0 0.0
        %3628 = vmatmul.mubr.f32.gmra.mrb[0].mxu0 %v3534
        %v3629 = vpop.f32.mrb[0].mxu0
        %v3630 = vadd.f32 0.0, %v3629
        %v3631 = vpop.f32.mrb[0].mxu0
        %3632 = vmatprep.mubr.f32.mxu0 0.0
        %3633 = vmatmul.mubr.f32.gmra.mrb[0].mxu0 %v3537
        %v3634 = vpop.f32.mrb[0].mxu0
        %v3635 = vadd.f32 0.0, %v3634
        %v3636 = vpop.f32.mrb[0].mxu0
        %3637 = vmatprep.mubr.f32.mxu0 0.0
        %3638 = vmatmul.mubr.f32.gmra.mrb[0].mxu0 %v3540
        %v3639 = vpop.f32.mrb[0].mxu0
        %v3640 = vadd.f32 0.0, %v3639
        %v3641 = vpop.f32.mrb[0].mxu0
        %3642 = vmatprep.mubr.f32.mxu0 0.0
        %3643 = vmatmul.mubr.f32.gmra.mrb[0].mxu0 %v3543
        %v3644 = vpop.f32.mrb[0].mxu0
        %v3645 = vadd.f32 0.0, %v3644
        %v3646 = vpop.f32.mrb[0].mxu0
        %3647 = vmatprep.mubr.f32.mxu0 0.0
        %3648 = vmatmul.mubr.f32.gmra.mrb[0].mxu0 %v3546
        %v3649 = vpop.f32.mrb[0].mxu0
        %v3650 = vadd.f32 0.0, %v3649
        %v3651 = vpop.f32.mrb[0].mxu0
        %3652 = vdwg.mxu0
        %v3654 = vsel %vm526, %v3508, 0
        %v3657 = vsel %vm526, %v3509, 0
        %v3660 = vsel %vm526, %v3510, 0
        %v3663 = vsel %vm526, %v3511, 0
        %v3666 = vsel %vm526, %v3512, 0
        %v3669 = vsel %vm526, %v3513, 0
        %v3672 = vsel %vm526, %v3514, 0
        %v3675 = vsel %vm526, %v3515, 0
        %3677 = vmatprep.subr.mxu0 0.0
        %3678 = vmatpush1.msra.mxu0 %v2936
        %3679 = vmatprep.subr.mxu0 0.0
        %3680 = vmatpush1.msra.mxu0 %v2937
        %3681 = vmatprep.subr.mxu0 0.0
        %3682 = vmatpush1.msra.mxu0 0.0
        %3683 = vmatprep.subr.mxu0 0.0
        %3684 = vmatpush1.msra.mxu0 0.0
        %3685 = vmatprep.subr.mxu0 0.0
        %3686 = vmatpush1.msra.mxu0 0.0
        %3687 = vmatprep.subr.mxu0 0.0
        %3688 = vmatpush1.msra.mxu0 0.0
        %3689 = vmatprep.subr.mxu0 0.0
        %3690 = vmatpush1.msra.mxu0 0.0
        %3691 = vmatprep.subr.mxu0 0.0
        %3692 = vmatpush1.msra.mxu0 0.0
        %3693 = vmatprep.subr.mxu0 0.0
        %3694 = vmatpush1.msra.mxu0 0.0
        %3695 = vmatprep.subr.mxu0 0.0
        %3696 = vmatpush1.msra.mxu0 0.0
        %3697 = vmatprep.subr.mxu0 0.0
        %3698 = vmatpush1.msra.mxu0 0.0
        %3699 = vmatprep.subr.mxu0 0.0
        %3700 = vmatpush1.msra.mxu0 0.0
        %3701 = vmatprep.subr.mxu0 0.0
        %3702 = vmatpush1.msra.mxu0 0.0
        %3703 = vmatprep.subr.mxu0 0.0
        %3704 = vmatpush1.msra.mxu0 0.0
        %3705 = vmatprep.subr.mxu0 0.0
        %3706 = vmatpush1.msra.mxu0 0.0
        %3707 = vmatprep.subr.mxu0 0.0
        %3708 = vmatpush1.msra.mxu0 0.0
        %3709 = vmatprep.subr.mxu0 0.0
        %3710 = vmatpush1.msra.mxu0 0.0
        %3711 = vmatprep.subr.mxu0 0.0
        %3712 = vmatpush1.msra.mxu0 0.0
        %3713 = vmatprep.subr.mxu0 0.0
        %3714 = vmatpush1.msra.mxu0 0.0
        %3715 = vmatprep.subr.mxu0 0.0
        %3716 = vmatpush1.msra.mxu0 0.0
        %3717 = vmatprep.subr.mxu0 0.0
        %3718 = vmatpush1.msra.mxu0 0.0
        %3719 = vmatprep.subr.mxu0 0.0
        %3720 = vmatpush1.msra.mxu0 0.0
        %3721 = vmatprep.subr.mxu0 0.0
        %3722 = vmatpush1.msra.mxu0 0.0
        %3723 = vmatprep.subr.mxu0 0.0
        %3724 = vmatpush1.msra.mxu0 0.0
        %3725 = vmatprep.subr.mxu0 0.0
        %3726 = vmatpush1.msra.mxu0 0.0
        %3727 = vmatprep.subr.mxu0 0.0
        %3728 = vmatpush1.msra.mxu0 0.0
        %3729 = vmatprep.subr.mxu0 0.0
        %3730 = vmatpush1.msra.mxu0 0.0
        %3731 = vmatprep.subr.mxu0 0.0
        %3732 = vmatpush1.msra.mxu0 0.0
        %3733 = vmatprep.subr.mxu0 0.0
        %3734 = vmatpush1.msra.mxu0 0.0
        %3735 = vmatprep.subr.mxu0 0.0
        %3736 = vmatpush1.msra.mxu0 0.0
        %3737 = vmatprep.subr.mxu0 0.0
        %3738 = vmatpush1.msra.mxu0 0.0
        %3739 = vmatprep.subr.mxu0 0.0
        %3740 = vmatpush1.msra.mxu0 0.0
        %3741 = vmatprep.mubr.f32.mxu0 0.0
        %3742 = vmatmul.mubr.f32.gmra.mrb[0].mxu0 %v3654
        %v3743 = vpop.f32.mrb[0].mxu0
        %v3744 = vadd.f32 %v3615, %v3743
        %v3745 = vpop.f32.mrb[0].mxu0
        %3746 = vmatprep.mubr.f32.mxu0 0.0
        %3747 = vmatmul.mubr.f32.gmra.mrb[0].mxu0 %v3657
        %v3748 = vpop.f32.mrb[0].mxu0
        %v3749 = vadd.f32 %v3620, %v3748
        %v3750 = vpop.f32.mrb[0].mxu0
        %3751 = vmatprep.mubr.f32.mxu0 0.0
        %3752 = vmatmul.mubr.f32.gmra.mrb[0].mxu0 %v3660
        %v3753 = vpop.f32.mrb[0].mxu0
        %v3754 = vadd.f32 %v3625, %v3753
        %v3755 = vpop.f32.mrb[0].mxu0
        %3756 = vmatprep.mubr.f32.mxu0 0.0
        %3757 = vmatmul.mubr.f32.gmra.mrb[0].mxu0 %v3663
        %v3758 = vpop.f32.mrb[0].mxu0
        %v3759 = vadd.f32 %v3630, %v3758
        %v3760 = vpop.f32.mrb[0].mxu0
        %3761 = vmatprep.mubr.f32.mxu0 0.0
        %3762 = vmatmul.mubr.f32.gmra.mrb[0].mxu0 %v3666
        %v3763 = vpop.f32.mrb[0].mxu0
        %v3764 = vadd.f32 %v3635, %v3763
        %v3765 = vpop.f32.mrb[0].mxu0
        %3766 = vmatprep.mubr.f32.mxu0 0.0
        %3767 = vmatmul.mubr.f32.gmra.mrb[0].mxu0 %v3669
        %v3768 = vpop.f32.mrb[0].mxu0
        %v3769 = vadd.f32 %v3640, %v3768
        %v3770 = vpop.f32.mrb[0].mxu0
        %3771 = vmatprep.mubr.f32.mxu0 0.0
        %3772 = vmatmul.mubr.f32.gmra.mrb[0].mxu0 %v3672
        %v3773 = vpop.f32.mrb[0].mxu0
        %v3774 = vadd.f32 %v3645, %v3773
        %v3775 = vpop.f32.mrb[0].mxu0
        %3776 = vmatprep.mubr.f32.mxu0 0.0
        %3777 = vmatmul.mubr.f32.gmra.mrb[0].mxu0 %v3675
        %v3778 = vpop.f32.mrb[0].mxu0
        %v3779 = vadd.f32 %v3650, %v3778
        %v3780 = vpop.f32.mrb[0].mxu0
        %3781 = vdwg.mxu0
        %v3782 = vpack.c.bf16 %v2929, %v2928
        %v3783 = vpack.c.bf16 %v2931, %v2930
        %v3784 = vpack.c.bf16 %v2933, %v2932
        %v3785 = vpack.c.bf16 %v2935, %v2934
        %v3786 = vunpack.c.l.bf16 %v3782
        %v3787 = vunpack.c.h.bf16 %v3782
        %v3788 = vunpack.c.l.bf16 %v3783
        %v3789 = vunpack.c.h.bf16 %v3783
        %v3790 = vunpack.c.l.bf16 %v3784
        %v3791 = vunpack.c.h.bf16 %v3784
        %v3792 = vunpack.c.l.bf16 %v3785
        %v3793 = vunpack.c.h.bf16 %v3785
        %v3794 = vsub.f32 %v2928, %v3786
        %v3795 = vsub.f32 %v2929, %v3787
        %v3796 = vsub.f32 %v2930, %v3788
        %v3797 = vsub.f32 %v2931, %v3789
        %v3798 = vsub.f32 %v2932, %v3790
        %v3799 = vsub.f32 %v2933, %v3791
        %v3800 = vsub.f32 %v2934, %v3792
        %v3801 = vsub.f32 %v2935, %v3793
        %v3803 = vsel %vm526, %v3794, 0
        %v3806 = vsel %vm526, %v3795, 0
        %v3809 = vsel %vm526, %v3796, 0
        %v3812 = vsel %vm526, %v3797, 0
        %v3815 = vsel %vm526, %v3798, 0
        %v3818 = vsel %vm526, %v3799, 0
        %v3821 = vsel %vm526, %v3800, 0
        %v3824 = vsel %vm526, %v3801, 0
        %3826 = vmatprep.subr.mxu0 0.0
        %3827 = vmatpush1.msra.mxu0 %v2938
        %3828 = vmatprep.subr.mxu0 0.0
        %3829 = vmatpush1.msra.mxu0 %v2939
        %3830 = vmatprep.subr.mxu0 0.0
        %3831 = vmatpush1.msra.mxu0 0.0
        %3832 = vmatprep.subr.mxu0 0.0
        %3833 = vmatpush1.msra.mxu0 0.0
        %3834 = vmatprep.subr.mxu0 0.0
        %3835 = vmatpush1.msra.mxu0 0.0
        %3836 = vmatprep.subr.mxu0 0.0
        %3837 = vmatpush1.msra.mxu0 0.0
        %3838 = vmatprep.subr.mxu0 0.0
        %3839 = vmatpush1.msra.mxu0 0.0
        %3840 = vmatprep.subr.mxu0 0.0
        %3841 = vmatpush1.msra.mxu0 0.0
        %3842 = vmatprep.subr.mxu0 0.0
        %3843 = vmatpush1.msra.mxu0 0.0
        %3844 = vmatprep.subr.mxu0 0.0
        %3845 = vmatpush1.msra.mxu0 0.0
        %3846 = vmatprep.subr.mxu0 0.0
        %3847 = vmatpush1.msra.mxu0 0.0
        %3848 = vmatprep.subr.mxu0 0.0
        %3849 = vmatpush1.msra.mxu0 0.0
        %3850 = vmatprep.subr.mxu0 0.0
        %3851 = vmatpush1.msra.mxu0 0.0
        %3852 = vmatprep.subr.mxu0 0.0
        %3853 = vmatpush1.msra.mxu0 0.0
        %3854 = vmatprep.subr.mxu0 0.0
        %3855 = vmatpush1.msra.mxu0 0.0
        %3856 = vmatprep.subr.mxu0 0.0
        %3857 = vmatpush1.msra.mxu0 0.0
        %3858 = vmatprep.subr.mxu0 0.0
        %3859 = vmatpush1.msra.mxu0 0.0
        %3860 = vmatprep.subr.mxu0 0.0
        %3861 = vmatpush1.msra.mxu0 0.0
        %3862 = vmatprep.subr.mxu0 0.0
        %3863 = vmatpush1.msra.mxu0 0.0
        %3864 = vmatprep.subr.mxu0 0.0
        %3865 = vmatpush1.msra.mxu0 0.0
        %3866 = vmatprep.subr.mxu0 0.0
        %3867 = vmatpush1.msra.mxu0 0.0
        %3868 = vmatprep.subr.mxu0 0.0
        %3869 = vmatpush1.msra.mxu0 0.0
        %3870 = vmatprep.subr.mxu0 0.0
        %3871 = vmatpush1.msra.mxu0 0.0
        %3872 = vmatprep.subr.mxu0 0.0
        %3873 = vmatpush1.msra.mxu0 0.0
        %3874 = vmatprep.subr.mxu0 0.0
        %3875 = vmatpush1.msra.mxu0 0.0
        %3876 = vmatprep.subr.mxu0 0.0
        %3877 = vmatpush1.msra.mxu0 0.0
        %3878 = vmatprep.subr.mxu0 0.0
        %3879 = vmatpush1.msra.mxu0 0.0
        %3880 = vmatprep.subr.mxu0 0.0
        %3881 = vmatpush1.msra.mxu0 0.0
        %3882 = vmatprep.subr.mxu0 0.0
        %3883 = vmatpush1.msra.mxu0 0.0
        %3884 = vmatprep.subr.mxu0 0.0
        %3885 = vmatpush1.msra.mxu0 0.0
        %3886 = vmatprep.subr.mxu0 0.0
        %3887 = vmatpush1.msra.mxu0 0.0
        %3888 = vmatprep.subr.mxu0 0.0
        %3889 = vmatpush1.msra.mxu0 0.0
        %3890 = vmatprep.mubr.f32.mxu0 0.0
        %3891 = vmatmul.mubr.f32.gmra.mrb[0].mxu0 %v3803
        %v3892 = vpop.f32.mrb[0].mxu0
        %v3893 = vadd.f32 0.0, %v3892
        %v3894 = vpop.f32.mrb[0].mxu0
        %3895 = vmatprep.mubr.f32.mxu0 0.0
        %3896 = vmatmul.mubr.f32.gmra.mrb[0].mxu0 %v3806
        %v3897 = vpop.f32.mrb[0].mxu0
        %v3898 = vadd.f32 0.0, %v3897
        %v3899 = vpop.f32.mrb[0].mxu0
        %3900 = vmatprep.mubr.f32.mxu0 0.0
        %3901 = vmatmul.mubr.f32.gmra.mrb[0].mxu0 %v3809
        %v3902 = vpop.f32.mrb[0].mxu0
        %v3903 = vadd.f32 0.0, %v3902
        %v3904 = vpop.f32.mrb[0].mxu0
        %3905 = vmatprep.mubr.f32.mxu0 0.0
        %3906 = vmatmul.mubr.f32.gmra.mrb[0].mxu0 %v3812
        %v3907 = vpop.f32.mrb[0].mxu0
        %v3908 = vadd.f32 0.0, %v3907
        %v3909 = vpop.f32.mrb[0].mxu0
        %3910 = vmatprep.mubr.f32.mxu0 0.0
        %3911 = vmatmul.mubr.f32.gmra.mrb[0].mxu0 %v3815
        %v3912 = vpop.f32.mrb[0].mxu0
        %v3913 = vadd.f32 0.0, %v3912
        %v3914 = vpop.f32.mrb[0].mxu0
        %3915 = vmatprep.mubr.f32.mxu0 0.0
        %3916 = vmatmul.mubr.f32.gmra.mrb[0].mxu0 %v3818
        %v3917 = vpop.f32.mrb[0].mxu0
        %v3918 = vadd.f32 0.0, %v3917
        %v3919 = vpop.f32.mrb[0].mxu0
        %3920 = vmatprep.mubr.f32.mxu0 0.0
        %3921 = vmatmul.mubr.f32.gmra.mrb[0].mxu0 %v3821
        %v3922 = vpop.f32.mrb[0].mxu0
        %v3923 = vadd.f32 0.0, %v3922
        %v3924 = vpop.f32.mrb[0].mxu0
        %3925 = vmatprep.mubr.f32.mxu0 0.0
        %3926 = vmatmul.mubr.f32.gmra.mrb[0].mxu0 %v3824
        %v3927 = vpop.f32.mrb[0].mxu0
        %v3928 = vadd.f32 0.0, %v3927
        %v3929 = vpop.f32.mrb[0].mxu0
        %3930 = vdwg.mxu0
        %v3932 = vsel %vm526, %v3786, 0
        %v3935 = vsel %vm526, %v3787, 0
        %v3938 = vsel %vm526, %v3788, 0
        %v3941 = vsel %vm526, %v3789, 0
        %v3944 = vsel %vm526, %v3790, 0
        %v3947 = vsel %vm526, %v3791, 0
        %v3950 = vsel %vm526, %v3792, 0
        %v3953 = vsel %vm526, %v3793, 0
        %3955 = vmatprep.subr.mxu0 0.0
        %3956 = vmatpush1.msra.mxu0 %v2938
        %3957 = vmatprep.subr.mxu0 0.0
        %3958 = vmatpush1.msra.mxu0 %v2939
        %3959 = vmatprep.subr.mxu0 0.0
        %3960 = vmatpush1.msra.mxu0 0.0
        %3961 = vmatprep.subr.mxu0 0.0
        %3962 = vmatpush1.msra.mxu0 0.0
        %3963 = vmatprep.subr.mxu0 0.0
        %3964 = vmatpush1.msra.mxu0 0.0
        %3965 = vmatprep.subr.mxu0 0.0
        %3966 = vmatpush1.msra.mxu0 0.0
        %3967 = vmatprep.subr.mxu0 0.0
        %3968 = vmatpush1.msra.mxu0 0.0
        %3969 = vmatprep.subr.mxu0 0.0
        %3970 = vmatpush1.msra.mxu0 0.0
        %3971 = vmatprep.subr.mxu0 0.0
        %3972 = vmatpush1.msra.mxu0 0.0
        %3973 = vmatprep.subr.mxu0 0.0
        %3974 = vmatpush1.msra.mxu0 0.0
        %3975 = vmatprep.subr.mxu0 0.0
        %3976 = vmatpush1.msra.mxu0 0.0
        %3977 = vmatprep.subr.mxu0 0.0
        %3978 = vmatpush1.msra.mxu0 0.0
        %3979 = vmatprep.subr.mxu0 0.0
        %3980 = vmatpush1.msra.mxu0 0.0
        %3981 = vmatprep.subr.mxu0 0.0
        %3982 = vmatpush1.msra.mxu0 0.0
        %3983 = vmatprep.subr.mxu0 0.0
        %3984 = vmatpush1.msra.mxu0 0.0
        %3985 = vmatprep.subr.mxu0 0.0
        %3986 = vmatpush1.msra.mxu0 0.0
        %3987 = vmatprep.subr.mxu0 0.0
        %3988 = vmatpush1.msra.mxu0 0.0
        %3989 = vmatprep.subr.mxu0 0.0
        %3990 = vmatpush1.msra.mxu0 0.0
        %3991 = vmatprep.subr.mxu0 0.0
        %3992 = vmatpush1.msra.mxu0 0.0
        %3993 = vmatprep.subr.mxu0 0.0
        %3994 = vmatpush1.msra.mxu0 0.0
        %3995 = vmatprep.subr.mxu0 0.0
        %3996 = vmatpush1.msra.mxu0 0.0
        %3997 = vmatprep.subr.mxu0 0.0
        %3998 = vmatpush1.msra.mxu0 0.0
        %3999 = vmatprep.subr.mxu0 0.0
        %4000 = vmatpush1.msra.mxu0 0.0
        %4001 = vmatprep.subr.mxu0 0.0
        %4002 = vmatpush1.msra.mxu0 0.0
        %4003 = vmatprep.subr.mxu0 0.0
        %4004 = vmatpush1.msra.mxu0 0.0
        %4005 = vmatprep.subr.mxu0 0.0
        %4006 = vmatpush1.msra.mxu0 0.0
        %4007 = vmatprep.subr.mxu0 0.0
        %4008 = vmatpush1.msra.mxu0 0.0
        %4009 = vmatprep.subr.mxu0 0.0
        %4010 = vmatpush1.msra.mxu0 0.0
        %4011 = vmatprep.subr.mxu0 0.0
        %4012 = vmatpush1.msra.mxu0 0.0
        %4013 = vmatprep.subr.mxu0 0.0
        %4014 = vmatpush1.msra.mxu0 0.0
        %4015 = vmatprep.subr.mxu0 0.0
        %4016 = vmatpush1.msra.mxu0 0.0
        %4017 = vmatprep.subr.mxu0 0.0
        %4018 = vmatpush1.msra.mxu0 0.0
        %4019 = vmatprep.mubr.f32.mxu0 0.0
        %4020 = vmatmul.mubr.f32.gmra.mrb[0].mxu0 %v3932
        %v4021 = vpop.f32.mrb[0].mxu0
        %v4022 = vadd.f32 %v3893, %v4021
        %v4023 = vpop.f32.mrb[0].mxu0
        %4024 = vmatprep.mubr.f32.mxu0 0.0
        %4025 = vmatmul.mubr.f32.gmra.mrb[0].mxu0 %v3935
        %v4026 = vpop.f32.mrb[0].mxu0
        %v4027 = vadd.f32 %v3898, %v4026
        %v4028 = vpop.f32.mrb[0].mxu0
        %4029 = vmatprep.mubr.f32.mxu0 0.0
        %4030 = vmatmul.mubr.f32.gmra.mrb[0].mxu0 %v3938
        %v4031 = vpop.f32.mrb[0].mxu0
        %v4032 = vadd.f32 %v3903, %v4031
        %v4033 = vpop.f32.mrb[0].mxu0
        %4034 = vmatprep.mubr.f32.mxu0 0.0
        %4035 = vmatmul.mubr.f32.gmra.mrb[0].mxu0 %v3941
        %v4036 = vpop.f32.mrb[0].mxu0
        %v4037 = vadd.f32 %v3908, %v4036
        %v4038 = vpop.f32.mrb[0].mxu0
        %4039 = vmatprep.mubr.f32.mxu0 0.0
        %4040 = vmatmul.mubr.f32.gmra.mrb[0].mxu0 %v3944
        %v4041 = vpop.f32.mrb[0].mxu0
        %v4042 = vadd.f32 %v3913, %v4041
        %v4043 = vpop.f32.mrb[0].mxu0
        %4044 = vmatprep.mubr.f32.mxu0 0.0
        %4045 = vmatmul.mubr.f32.gmra.mrb[0].mxu0 %v3947
        %v4046 = vpop.f32.mrb[0].mxu0
        %v4047 = vadd.f32 %v3918, %v4046
        %v4048 = vpop.f32.mrb[0].mxu0
        %4049 = vmatprep.mubr.f32.mxu0 0.0
        %4050 = vmatmul.mubr.f32.gmra.mrb[0].mxu0 %v3950
        %v4051 = vpop.f32.mrb[0].mxu0
        %v4052 = vadd.f32 %v3923, %v4051
        %v4053 = vpop.f32.mrb[0].mxu0
        %4054 = vmatprep.mubr.f32.mxu0 0.0
        %4055 = vmatmul.mubr.f32.gmra.mrb[0].mxu0 %v3953
        %v4056 = vpop.f32.mrb[0].mxu0
        %v4057 = vadd.f32 %v3928, %v4056
        %v4058 = vpop.f32.mrb[0].mxu0
        %4059 = vdwg.mxu0
        %v4060 = vadd.f32 %v3744, %v4022
        %v4061 = vadd.f32 %v3749, %v4027
        %v4062 = vadd.f32 %v3754, %v4032
        %v4063 = vadd.f32 %v3759, %v4037
        %v4064 = vadd.f32 %v3764, %v4042
        %v4065 = vadd.f32 %v3769, %v4047
        %v4066 = vadd.f32 %v3774, %v4052
        %v4067 = vadd.f32 %v3779, %v4057
        %v4068 = vld [vmem:[%s8] sm:$0xff]
        %v4069 = vld [vmem:[%s8 + $0x8] sm:$0xff]
        %v4070 = vld [vmem:[%s8 + $0x10] sm:$0xff]
        %v4071 = vld [vmem:[%s8 + $0x18] sm:$0xff]
        %v4072 = vld [vmem:[%s8 + $0x20] sm:$0xff]
        %v4073 = vld [vmem:[%s8 + $0x28] sm:$0xff]
        %v4074 = vld [vmem:[%s8 + $0x30] sm:$0xff]
        %v4075 = vld [vmem:[%s8 + $0x38] sm:$0xff]
        %v4076 = vld [vmem:[%s8 + $0x40] sm:$0xff]
        %v4077 = vld [vmem:[%s8 + $0x48] sm:$0xff]
        %v4078 = vld [vmem:[%s8 + $0x50] sm:$0xff]
        %v4079 = vld [vmem:[%s8 + $0x58] sm:$0xff]
        %v4080 = vld [vmem:[%s8 + $0x60] sm:$0xff]
        %v4081 = vld [vmem:[%s8 + $0x68] sm:$0xff]
        %v4082 = vld [vmem:[%s8 + $0x70] sm:$0xff]
        %v4083 = vld [vmem:[%s8 + $0x78] sm:$0xff]
        %v4084 = vpack.c.bf16 %v3497, %v3496
        %v4085 = vpack.c.bf16 %v3499, %v3498
        %v4086 = vpack.c.bf16 %v3501, %v3500
        %v4087 = vpack.c.bf16 %v3503, %v3502
        %v4088 = vunpack.c.l.bf16 %v4084
        %v4089 = vunpack.c.h.bf16 %v4084
        %v4090 = vunpack.c.l.bf16 %v4085
        %v4091 = vunpack.c.h.bf16 %v4085
        %v4092 = vunpack.c.l.bf16 %v4086
        %v4093 = vunpack.c.h.bf16 %v4086
        %v4094 = vunpack.c.l.bf16 %v4087
        %v4095 = vunpack.c.h.bf16 %v4087
        %v4096 = vsub.f32 %v3496, %v4088
        %v4097 = vsub.f32 %v3497, %v4089
        %v4098 = vsub.f32 %v3498, %v4090
        %v4099 = vsub.f32 %v3499, %v4091
        %v4100 = vsub.f32 %v3500, %v4092
        %v4101 = vsub.f32 %v3501, %v4093
        %v4102 = vsub.f32 %v3502, %v4094
        %v4103 = vsub.f32 %v3503, %v4095
        %vm4104 = vcmask 523264
        %v4106 = vsel %vm4104, %v4068, 0
        %v4109 = vsel %vm4104, %v4069, 0
        %v4112 = vsel %vm4104, %v4070, 0
        %v4115 = vsel %vm4104, %v4071, 0
        %v4118 = vsel %vm4104, %v4072, 0
        %v4121 = vsel %vm4104, %v4073, 0
        %v4124 = vsel %vm4104, %v4074, 0
        %v4127 = vsel %vm4104, %v4075, 0
        %v4130 = vsel %vm4104, %v4076, 0
        %v4133 = vsel %vm4104, %v4077, 0
        %v4136 = vsel %vm4104, %v4078, 0
        %v4139 = vsel %vm4104, %v4079, 0
        %v4142 = vsel %vm4104, %v4080, 0
        %v4145 = vsel %vm4104, %v4081, 0
        %v4148 = vsel %vm4104, %v4082, 0
        %v4151 = vsel %vm4104, %v4083, 0
        %4153 = vmatprep.subr.mxu0 0.0
        %4154 = vmatpush1.msra.mxu0 %v4096
        %4155 = vmatprep.subr.mxu0 0.0
        %4156 = vmatpush1.msra.mxu0 %v4097
        %4157 = vmatprep.subr.mxu0 0.0
        %4158 = vmatpush1.msra.mxu0 %v4098
        %4159 = vmatprep.subr.mxu0 0.0
        %4160 = vmatpush1.msra.mxu0 %v4099
        %4161 = vmatprep.subr.mxu0 0.0
        %4162 = vmatpush1.msra.mxu0 %v4100
        %4163 = vmatprep.subr.mxu0 0.0
        %4164 = vmatpush1.msra.mxu0 %v4101
        %4165 = vmatprep.subr.mxu0 0.0
        %4166 = vmatpush1.msra.mxu0 %v4102
        %4167 = vmatprep.subr.mxu0 0.0
        %4168 = vmatpush1.msra.mxu0 %v4103
        %4169 = vmatprep.subr.mxu0 0.0
        %4170 = vmatpush1.msra.mxu0 0.0
        %4171 = vmatprep.subr.mxu0 0.0
        %4172 = vmatpush1.msra.mxu0 0.0
        %4173 = vmatprep.subr.mxu0 0.0
        %4174 = vmatpush1.msra.mxu0 0.0
        %4175 = vmatprep.subr.mxu0 0.0
        %4176 = vmatpush1.msra.mxu0 0.0
        %4177 = vmatprep.subr.mxu0 0.0
        %4178 = vmatpush1.msra.mxu0 0.0
        %4179 = vmatprep.subr.mxu0 0.0
        %4180 = vmatpush1.msra.mxu0 0.0
        %4181 = vmatprep.subr.mxu0 0.0
        %4182 = vmatpush1.msra.mxu0 0.0
        %4183 = vmatprep.subr.mxu0 0.0
        %4184 = vmatpush1.msra.mxu0 0.0
        %4185 = vmatprep.subr.mxu0 0.0
        %4186 = vmatpush1.msra.mxu0 0.0
        %4187 = vmatprep.subr.mxu0 0.0
        %4188 = vmatpush1.msra.mxu0 0.0
        %4189 = vmatprep.subr.mxu0 0.0
        %4190 = vmatpush1.msra.mxu0 0.0
        %4191 = vmatprep.subr.mxu0 0.0
        %4192 = vmatpush1.msra.mxu0 0.0
        %4193 = vmatprep.subr.mxu0 0.0
        %4194 = vmatpush1.msra.mxu0 0.0
        %4195 = vmatprep.subr.mxu0 0.0
        %4196 = vmatpush1.msra.mxu0 0.0
        %4197 = vmatprep.subr.mxu0 0.0
        %4198 = vmatpush1.msra.mxu0 0.0
        %4199 = vmatprep.subr.mxu0 0.0
        %4200 = vmatpush1.msra.mxu0 0.0
        %4201 = vmatprep.subr.mxu0 0.0
        %4202 = vmatpush1.msra.mxu0 0.0
        %4203 = vmatprep.subr.mxu0 0.0
        %4204 = vmatpush1.msra.mxu0 0.0
        %4205 = vmatprep.subr.mxu0 0.0
        %4206 = vmatpush1.msra.mxu0 0.0
        %4207 = vmatprep.subr.mxu0 0.0
        %4208 = vmatpush1.msra.mxu0 0.0
        %4209 = vmatprep.subr.mxu0 0.0
        %4210 = vmatpush1.msra.mxu0 0.0
        %4211 = vmatprep.subr.mxu0 0.0
        %4212 = vmatpush1.msra.mxu0 0.0
        %4213 = vmatprep.subr.mxu0 0.0
        %4214 = vmatpush1.msra.mxu0 0.0
        %4215 = vmatprep.subr.mxu0 0.0
        %4216 = vmatpush1.msra.mxu0 0.0
        %4217 = vmatprep.mubr.f32.mxu0 0.0
        %4218 = vmatmul.mubr.f32.gmra.mrb[0].mxu0 %v4106
        %v4219 = vpop.f32.mrb[0].mxu0
        %v4220 = vadd.f32 0.0, %v4219
        %v4221 = vpop.f32.mrb[0].mxu0
        %4222 = vmatprep.mubr.f32.mxu0 0.0
        %4223 = vmatmul.mubr.f32.gmra.mrb[0].mxu0 %v4109
        %v4224 = vpop.f32.mrb[0].mxu0
        %v4225 = vadd.f32 0.0, %v4224
        %v4226 = vpop.f32.mrb[0].mxu0
        %4227 = vmatprep.mubr.f32.mxu0 0.0
        %4228 = vmatmul.mubr.f32.gmra.mrb[0].mxu0 %v4112
        %v4229 = vpop.f32.mrb[0].mxu0
        %v4230 = vadd.f32 0.0, %v4229
        %v4231 = vpop.f32.mrb[0].mxu0
        %4232 = vmatprep.mubr.f32.mxu0 0.0
        %4233 = vmatmul.mubr.f32.gmra.mrb[0].mxu0 %v4115
        %v4234 = vpop.f32.mrb[0].mxu0
        %v4235 = vadd.f32 0.0, %v4234
        %v4236 = vpop.f32.mrb[0].mxu0
        %4237 = vmatprep.mubr.f32.mxu0 0.0
        %4238 = vmatmul.mubr.f32.gmra.mrb[0].mxu0 %v4118
        %v4239 = vpop.f32.mrb[0].mxu0
        %v4240 = vadd.f32 0.0, %v4239
        %v4241 = vpop.f32.mrb[0].mxu0
        %4242 = vmatprep.mubr.f32.mxu0 0.0
        %4243 = vmatmul.mubr.f32.gmra.mrb[0].mxu0 %v4121
        %v4244 = vpop.f32.mrb[0].mxu0
        %v4245 = vadd.f32 0.0, %v4244
        %v4246 = vpop.f32.mrb[0].mxu0
        %4247 = vmatprep.mubr.f32.mxu0 0.0
        %4248 = vmatmul.mubr.f32.gmra.mrb[0].mxu0 %v4124
        %v4249 = vpop.f32.mrb[0].mxu0
        %v4250 = vadd.f32 0.0, %v4249
        %v4251 = vpop.f32.mrb[0].mxu0
        %4252 = vmatprep.mubr.f32.mxu0 0.0
        %4253 = vmatmul.mubr.f32.gmra.mrb[0].mxu0 %v4127
        %v4254 = vpop.f32.mrb[0].mxu0
        %v4255 = vadd.f32 0.0, %v4254
        %v4256 = vpop.f32.mrb[0].mxu0
        %4257 = vmatprep.mubr.f32.mxu0 0.0
        %4258 = vmatmul.mubr.f32.gmra.mrb[0].mxu0 %v4130
        %v4259 = vpop.f32.mrb[0].mxu0
        %v4260 = vadd.f32 0.0, %v4259
        %v4261 = vpop.f32.mrb[0].mxu0
        %4262 = vmatprep.mubr.f32.mxu0 0.0
        %4263 = vmatmul.mubr.f32.gmra.mrb[0].mxu0 %v4133
        %v4264 = vpop.f32.mrb[0].mxu0
        %v4265 = vadd.f32 0.0, %v4264
        %v4266 = vpop.f32.mrb[0].mxu0
        %4267 = vmatprep.mubr.f32.mxu0 0.0
        %4268 = vmatmul.mubr.f32.gmra.mrb[0].mxu0 %v4136
        %v4269 = vpop.f32.mrb[0].mxu0
        %v4270 = vadd.f32 0.0, %v4269
        %v4271 = vpop.f32.mrb[0].mxu0
        %4272 = vmatprep.mubr.f32.mxu0 0.0
        %4273 = vmatmul.mubr.f32.gmra.mrb[0].mxu0 %v4139
        %v4274 = vpop.f32.mrb[0].mxu0
        %v4275 = vadd.f32 0.0, %v4274
        %v4276 = vpop.f32.mrb[0].mxu0
        %4277 = vmatprep.mubr.f32.mxu0 0.0
        %4278 = vmatmul.mubr.f32.gmra.mrb[0].mxu0 %v4142
        %v4279 = vpop.f32.mrb[0].mxu0
        %v4280 = vadd.f32 0.0, %v4279
        %v4281 = vpop.f32.mrb[0].mxu0
        %4282 = vmatprep.mubr.f32.mxu0 0.0
        %4283 = vmatmul.mubr.f32.gmra.mrb[0].mxu0 %v4145
        %v4284 = vpop.f32.mrb[0].mxu0
        %v4285 = vadd.f32 0.0, %v4284
        %v4286 = vpop.f32.mrb[0].mxu0
        %4287 = vmatprep.mubr.f32.mxu0 0.0
        %4288 = vmatmul.mubr.f32.gmra.mrb[0].mxu0 %v4148
        %v4289 = vpop.f32.mrb[0].mxu0
        %v4290 = vadd.f32 0.0, %v4289
        %v4291 = vpop.f32.mrb[0].mxu0
        %4292 = vmatprep.mubr.f32.mxu0 0.0
        %4293 = vmatmul.mubr.f32.gmra.mrb[0].mxu0 %v4151
        %v4294 = vpop.f32.mrb[0].mxu0
        %v4295 = vadd.f32 0.0, %v4294
        %v4296 = vpop.f32.mrb[0].mxu0
        %4297 = vdwg.mxu0
        %4298 = vmatprep.subr.mxu0 0.0
        %4299 = vmatpush1.msra.mxu0 %v4088
        %4300 = vmatprep.subr.mxu0 0.0
        %4301 = vmatpush1.msra.mxu0 %v4089
        %4302 = vmatprep.subr.mxu0 0.0
        %4303 = vmatpush1.msra.mxu0 %v4090
        %4304 = vmatprep.subr.mxu0 0.0
        %4305 = vmatpush1.msra.mxu0 %v4091
        %4306 = vmatprep.subr.mxu0 0.0
        %4307 = vmatpush1.msra.mxu0 %v4092
        %4308 = vmatprep.subr.mxu0 0.0
        %4309 = vmatpush1.msra.mxu0 %v4093
        %4310 = vmatprep.subr.mxu0 0.0
        %4311 = vmatpush1.msra.mxu0 %v4094
        %4312 = vmatprep.subr.mxu0 0.0
        %4313 = vmatpush1.msra.mxu0 %v4095
        %4314 = vmatprep.subr.mxu0 0.0
        %4315 = vmatpush1.msra.mxu0 0.0
        %4316 = vmatprep.subr.mxu0 0.0
        %4317 = vmatpush1.msra.mxu0 0.0
        %4318 = vmatprep.subr.mxu0 0.0
        %4319 = vmatpush1.msra.mxu0 0.0
        %4320 = vmatprep.subr.mxu0 0.0
        %4321 = vmatpush1.msra.mxu0 0.0
        %4322 = vmatprep.subr.mxu0 0.0
        %4323 = vmatpush1.msra.mxu0 0.0
        %4324 = vmatprep.subr.mxu0 0.0
        %4325 = vmatpush1.msra.mxu0 0.0
        %4326 = vmatprep.subr.mxu0 0.0
        %4327 = vmatpush1.msra.mxu0 0.0
        %4328 = vmatprep.subr.mxu0 0.0
        %4329 = vmatpush1.msra.mxu0 0.0
        %4330 = vmatprep.subr.mxu0 0.0
        %4331 = vmatpush1.msra.mxu0 0.0
        %4332 = vmatprep.subr.mxu0 0.0
        %4333 = vmatpush1.msra.mxu0 0.0
        %4334 = vmatprep.subr.mxu0 0.0
        %4335 = vmatpush1.msra.mxu0 0.0
        %4336 = vmatprep.subr.mxu0 0.0
        %4337 = vmatpush1.msra.mxu0 0.0
        %4338 = vmatprep.subr.mxu0 0.0
        %4339 = vmatpush1.msra.mxu0 0.0
        %4340 = vmatprep.subr.mxu0 0.0
        %4341 = vmatpush1.msra.mxu0 0.0
        %4342 = vmatprep.subr.mxu0 0.0
        %4343 = vmatpush1.msra.mxu0 0.0
        %4344 = vmatprep.subr.mxu0 0.0
        %4345 = vmatpush1.msra.mxu0 0.0
        %4346 = vmatprep.subr.mxu0 0.0
        %4347 = vmatpush1.msra.mxu0 0.0
        %4348 = vmatprep.subr.mxu0 0.0
        %4349 = vmatpush1.msra.mxu0 0.0
        %4350 = vmatprep.subr.mxu0 0.0
        %4351 = vmatpush1.msra.mxu0 0.0
        %4352 = vmatprep.subr.mxu0 0.0
        %4353 = vmatpush1.msra.mxu0 0.0
        %4354 = vmatprep.subr.mxu0 0.0
        %4355 = vmatpush1.msra.mxu0 0.0
        %4356 = vmatprep.subr.mxu0 0.0
        %4357 = vmatpush1.msra.mxu0 0.0
        %4358 = vmatprep.subr.mxu0 0.0
        %4359 = vmatpush1.msra.mxu0 0.0
        %4360 = vmatprep.subr.mxu0 0.0
        %4361 = vmatpush1.msra.mxu0 0.0
        %4362 = vmatprep.mubr.f32.mxu0 0.0
        %4363 = vmatmul.mubr.f32.gmra.mrb[0].mxu0 %v4106
        %v4364 = vpop.f32.mrb[0].mxu0
        %v4365 = vadd.f32 %v4220, %v4364
        %v4366 = vpop.f32.mrb[0].mxu0
        %4367 = vmatprep.mubr.f32.mxu0 0.0
        %4368 = vmatmul.mubr.f32.gmra.mrb[0].mxu0 %v4109
        %v4369 = vpop.f32.mrb[0].mxu0
        %v4370 = vadd.f32 %v4225, %v4369
        %v4371 = vpop.f32.mrb[0].mxu0
        %4372 = vmatprep.mubr.f32.mxu0 0.0
        %4373 = vmatmul.mubr.f32.gmra.mrb[0].mxu0 %v4112
        %v4374 = vpop.f32.mrb[0].mxu0
        %v4375 = vadd.f32 %v4230, %v4374
        %v4376 = vpop.f32.mrb[0].mxu0
        %4377 = vmatprep.mubr.f32.mxu0 0.0
        %4378 = vmatmul.mubr.f32.gmra.mrb[0].mxu0 %v4115
        %v4379 = vpop.f32.mrb[0].mxu0
        %v4380 = vadd.f32 %v4235, %v4379
        %v4381 = vpop.f32.mrb[0].mxu0
        %4382 = vmatprep.mubr.f32.mxu0 0.0
        %4383 = vmatmul.mubr.f32.gmra.mrb[0].mxu0 %v4118
        %v4384 = vpop.f32.mrb[0].mxu0
        %v4385 = vadd.f32 %v4240, %v4384
        %v4386 = vpop.f32.mrb[0].mxu0
        %4387 = vmatprep.mubr.f32.mxu0 0.0
        %4388 = vmatmul.mubr.f32.gmra.mrb[0].mxu0 %v4121
        %v4389 = vpop.f32.mrb[0].mxu0
        %v4390 = vadd.f32 %v4245, %v4389
        %v4391 = vpop.f32.mrb[0].mxu0
        %4392 = vmatprep.mubr.f32.mxu0 0.0
        %4393 = vmatmul.mubr.f32.gmra.mrb[0].mxu0 %v4124
        %v4394 = vpop.f32.mrb[0].mxu0
        %v4395 = vadd.f32 %v4250, %v4394
        %v4396 = vpop.f32.mrb[0].mxu0
        %4397 = vmatprep.mubr.f32.mxu0 0.0
        %4398 = vmatmul.mubr.f32.gmra.mrb[0].mxu0 %v4127
        %v4399 = vpop.f32.mrb[0].mxu0
        %v4400 = vadd.f32 %v4255, %v4399
        %v4401 = vpop.f32.mrb[0].mxu0
        %4402 = vmatprep.mubr.f32.mxu0 0.0
        %4403 = vmatmul.mubr.f32.gmra.mrb[0].mxu0 %v4130
        %v4404 = vpop.f32.mrb[0].mxu0
        %v4405 = vadd.f32 %v4260, %v4404
        %v4406 = vpop.f32.mrb[0].mxu0
        %4407 = vmatprep.mubr.f32.mxu0 0.0
        %4408 = vmatmul.mubr.f32.gmra.mrb[0].mxu0 %v4133
        %v4409 = vpop.f32.mrb[0].mxu0
        %v4410 = vadd.f32 %v4265, %v4409
        %v4411 = vpop.f32.mrb[0].mxu0
        %4412 = vmatprep.mubr.f32.mxu0 0.0
        %4413 = vmatmul.mubr.f32.gmra.mrb[0].mxu0 %v4136
        %v4414 = vpop.f32.mrb[0].mxu0
        %v4415 = vadd.f32 %v4270, %v4414
        %v4416 = vpop.f32.mrb[0].mxu0
        %4417 = vmatprep.mubr.f32.mxu0 0.0
        %4418 = vmatmul.mubr.f32.gmra.mrb[0].mxu0 %v4139
        %v4419 = vpop.f32.mrb[0].mxu0
        %v4420 = vadd.f32 %v4275, %v4419
        %v4421 = vpop.f32.mrb[0].mxu0
        %4422 = vmatprep.mubr.f32.mxu0 0.0
        %4423 = vmatmul.mubr.f32.gmra.mrb[0].mxu0 %v4142
        %v4424 = vpop.f32.mrb[0].mxu0
        %v4425 = vadd.f32 %v4280, %v4424
        %v4426 = vpop.f32.mrb[0].mxu0
        %4427 = vmatprep.mubr.f32.mxu0 0.0
        %4428 = vmatmul.mubr.f32.gmra.mrb[0].mxu0 %v4145
        %v4429 = vpop.f32.mrb[0].mxu0
        %v4430 = vadd.f32 %v4285, %v4429
        %v4431 = vpop.f32.mrb[0].mxu0
        %4432 = vmatprep.mubr.f32.mxu0 0.0
        %4433 = vmatmul.mubr.f32.gmra.mrb[0].mxu0 %v4148
        %v4434 = vpop.f32.mrb[0].mxu0
        %v4435 = vadd.f32 %v4290, %v4434
        %v4436 = vpop.f32.mrb[0].mxu0
        %4437 = vmatprep.mubr.f32.mxu0 0.0
        %4438 = vmatmul.mubr.f32.gmra.mrb[0].mxu0 %v4151
        %v4439 = vpop.f32.mrb[0].mxu0
        %v4440 = vadd.f32 %v4295, %v4439
        %v4441 = vpop.f32.mrb[0].mxu0
        %4442 = vdwg.mxu0
        %v4443 = vld [vmem:[%s9] sm:$0xff]
        %v4444 = vld [vmem:[%s9 + $0x8] sm:$0xff]
        %v4445 = vld [vmem:[%s9 + $0x10] sm:$0xff]
        %v4446 = vld [vmem:[%s9 + $0x18] sm:$0xff]
        %v4447 = vld [vmem:[%s9 + $0x20] sm:$0xff]
        %v4448 = vld [vmem:[%s9 + $0x28] sm:$0xff]
        %v4449 = vld [vmem:[%s9 + $0x30] sm:$0xff]
        %v4450 = vld [vmem:[%s9 + $0x38] sm:$0xff]
        %v4451 = vld [vmem:[%s9 + $0x40] sm:$0xff]
        %v4452 = vld [vmem:[%s9 + $0x48] sm:$0xff]
        %v4453 = vld [vmem:[%s9 + $0x50] sm:$0xff]
        %v4454 = vld [vmem:[%s9 + $0x58] sm:$0xff]
        %v4455 = vld [vmem:[%s9 + $0x60] sm:$0xff]
        %v4456 = vld [vmem:[%s9 + $0x68] sm:$0xff]
        %v4457 = vld [vmem:[%s9 + $0x70] sm:$0xff]
        %v4458 = vld [vmem:[%s9 + $0x78] sm:$0xff]
        %v4459 = vpack.c.bf16 %v4061, %v4060
        %v4460 = vpack.c.bf16 %v4063, %v4062
        %v4461 = vpack.c.bf16 %v4065, %v4064
        %v4462 = vpack.c.bf16 %v4067, %v4066
        %v4463 = vunpack.c.l.bf16 %v4459
        %v4464 = vunpack.c.h.bf16 %v4459
        %v4465 = vunpack.c.l.bf16 %v4460
        %v4466 = vunpack.c.h.bf16 %v4460
        %v4467 = vunpack.c.l.bf16 %v4461
        %v4468 = vunpack.c.h.bf16 %v4461
        %v4469 = vunpack.c.l.bf16 %v4462
        %v4470 = vunpack.c.h.bf16 %v4462
        %v4471 = vsub.f32 %v4060, %v4463
        %v4472 = vsub.f32 %v4061, %v4464
        %v4473 = vsub.f32 %v4062, %v4465
        %v4474 = vsub.f32 %v4063, %v4466
        %v4475 = vsub.f32 %v4064, %v4467
        %v4476 = vsub.f32 %v4065, %v4468
        %v4477 = vsub.f32 %v4066, %v4469
        %v4478 = vsub.f32 %v4067, %v4470
        %v4480 = vsel %vm4104, %v4443, 0
        %v4483 = vsel %vm4104, %v4444, 0
        %v4486 = vsel %vm4104, %v4445, 0
        %v4489 = vsel %vm4104, %v4446, 0
        %v4492 = vsel %vm4104, %v4447, 0
        %v4495 = vsel %vm4104, %v4448, 0
        %v4498 = vsel %vm4104, %v4449, 0
        %v4501 = vsel %vm4104, %v4450, 0
        %v4504 = vsel %vm4104, %v4451, 0
        %v4507 = vsel %vm4104, %v4452, 0
        %v4510 = vsel %vm4104, %v4453, 0
        %v4513 = vsel %vm4104, %v4454, 0
        %v4516 = vsel %vm4104, %v4455, 0
        %v4519 = vsel %vm4104, %v4456, 0
        %v4522 = vsel %vm4104, %v4457, 0
        %v4525 = vsel %vm4104, %v4458, 0
        %4527 = vmatprep.subr.mxu0 0.0
        %4528 = vmatpush1.msra.mxu0 %v4471
        %4529 = vmatprep.subr.mxu0 0.0
        %4530 = vmatpush1.msra.mxu0 %v4472
        %4531 = vmatprep.subr.mxu0 0.0
        %4532 = vmatpush1.msra.mxu0 %v4473
        %4533 = vmatprep.subr.mxu0 0.0
        %4534 = vmatpush1.msra.mxu0 %v4474
        %4535 = vmatprep.subr.mxu0 0.0
        %4536 = vmatpush1.msra.mxu0 %v4475
        %4537 = vmatprep.subr.mxu0 0.0
        %4538 = vmatpush1.msra.mxu0 %v4476
        %4539 = vmatprep.subr.mxu0 0.0
        %4540 = vmatpush1.msra.mxu0 %v4477
        %4541 = vmatprep.subr.mxu0 0.0
        %4542 = vmatpush1.msra.mxu0 %v4478
        %4543 = vmatprep.subr.mxu0 0.0
        %4544 = vmatpush1.msra.mxu0 0.0
        %4545 = vmatprep.subr.mxu0 0.0
        %4546 = vmatpush1.msra.mxu0 0.0
        %4547 = vmatprep.subr.mxu0 0.0
        %4548 = vmatpush1.msra.mxu0 0.0
        %4549 = vmatprep.subr.mxu0 0.0
        %4550 = vmatpush1.msra.mxu0 0.0
        %4551 = vmatprep.subr.mxu0 0.0
        %4552 = vmatpush1.msra.mxu0 0.0
        %4553 = vmatprep.subr.mxu0 0.0
        %4554 = vmatpush1.msra.mxu0 0.0
        %4555 = vmatprep.subr.mxu0 0.0
        %4556 = vmatpush1.msra.mxu0 0.0
        %4557 = vmatprep.subr.mxu0 0.0
        %4558 = vmatpush1.msra.mxu0 0.0
        %4559 = vmatprep.subr.mxu0 0.0
        %4560 = vmatpush1.msra.mxu0 0.0
        %4561 = vmatprep.subr.mxu0 0.0
        %4562 = vmatpush1.msra.mxu0 0.0
        %4563 = vmatprep.subr.mxu0 0.0
        %4564 = vmatpush1.msra.mxu0 0.0
        %4565 = vmatprep.subr.mxu0 0.0
        %4566 = vmatpush1.msra.mxu0 0.0
        %4567 = vmatprep.subr.mxu0 0.0
        %4568 = vmatpush1.msra.mxu0 0.0
        %4569 = vmatprep.subr.mxu0 0.0
        %4570 = vmatpush1.msra.mxu0 0.0
        %4571 = vmatprep.subr.mxu0 0.0
        %4572 = vmatpush1.msra.mxu0 0.0
        %4573 = vmatprep.subr.mxu0 0.0
        %4574 = vmatpush1.msra.mxu0 0.0
        %4575 = vmatprep.subr.mxu0 0.0
        %4576 = vmatpush1.msra.mxu0 0.0
        %4577 = vmatprep.subr.mxu0 0.0
        %4578 = vmatpush1.msra.mxu0 0.0
        %4579 = vmatprep.subr.mxu0 0.0
        %4580 = vmatpush1.msra.mxu0 0.0
        %4581 = vmatprep.subr.mxu0 0.0
        %4582 = vmatpush1.msra.mxu0 0.0
        %4583 = vmatprep.subr.mxu0 0.0
        %4584 = vmatpush1.msra.mxu0 0.0
        %4585 = vmatprep.subr.mxu0 0.0
        %4586 = vmatpush1.msra.mxu0 0.0
        %4587 = vmatprep.subr.mxu0 0.0
        %4588 = vmatpush1.msra.mxu0 0.0
        %4589 = vmatprep.subr.mxu0 0.0
        %4590 = vmatpush1.msra.mxu0 0.0
        %4591 = vmatprep.mubr.f32.mxu0 0.0
        %4592 = vmatmul.mubr.f32.gmra.mrb[0].mxu0 %v4480
        %v4593 = vpop.f32.mrb[0].mxu0
        %v4594 = vadd.f32 0.0, %v4593
        %v4595 = vpop.f32.mrb[0].mxu0
        %4596 = vmatprep.mubr.f32.mxu0 0.0
        %4597 = vmatmul.mubr.f32.gmra.mrb[0].mxu0 %v4483
        %v4598 = vpop.f32.mrb[0].mxu0
        %v4599 = vadd.f32 0.0, %v4598
        %v4600 = vpop.f32.mrb[0].mxu0
        %4601 = vmatprep.mubr.f32.mxu0 0.0
        %4602 = vmatmul.mubr.f32.gmra.mrb[0].mxu0 %v4486
        %v4603 = vpop.f32.mrb[0].mxu0
        %v4604 = vadd.f32 0.0, %v4603
        %v4605 = vpop.f32.mrb[0].mxu0
        %4606 = vmatprep.mubr.f32.mxu0 0.0
        %4607 = vmatmul.mubr.f32.gmra.mrb[0].mxu0 %v4489
        %v4608 = vpop.f32.mrb[0].mxu0
        %v4609 = vadd.f32 0.0, %v4608
        %v4610 = vpop.f32.mrb[0].mxu0
        %4611 = vmatprep.mubr.f32.mxu0 0.0
        %4612 = vmatmul.mubr.f32.gmra.mrb[0].mxu0 %v4492
        %v4613 = vpop.f32.mrb[0].mxu0
        %v4614 = vadd.f32 0.0, %v4613
        %v4615 = vpop.f32.mrb[0].mxu0
        %4616 = vmatprep.mubr.f32.mxu0 0.0
        %4617 = vmatmul.mubr.f32.gmra.mrb[0].mxu0 %v4495
        %v4618 = vpop.f32.mrb[0].mxu0
        %v4619 = vadd.f32 0.0, %v4618
        %v4620 = vpop.f32.mrb[0].mxu0
        %4621 = vmatprep.mubr.f32.mxu0 0.0
        %4622 = vmatmul.mubr.f32.gmra.mrb[0].mxu0 %v4498
        %v4623 = vpop.f32.mrb[0].mxu0
        %v4624 = vadd.f32 0.0, %v4623
        %v4625 = vpop.f32.mrb[0].mxu0
        %4626 = vmatprep.mubr.f32.mxu0 0.0
        %4627 = vmatmul.mubr.f32.gmra.mrb[0].mxu0 %v4501
        %v4628 = vpop.f32.mrb[0].mxu0
        %v4629 = vadd.f32 0.0, %v4628
        %v4630 = vpop.f32.mrb[0].mxu0
        %4631 = vmatprep.mubr.f32.mxu0 0.0
        %4632 = vmatmul.mubr.f32.gmra.mrb[0].mxu0 %v4504
        %v4633 = vpop.f32.mrb[0].mxu0
        %v4634 = vadd.f32 0.0, %v4633
        %v4635 = vpop.f32.mrb[0].mxu0
        %4636 = vmatprep.mubr.f32.mxu0 0.0
        %4637 = vmatmul.mubr.f32.gmra.mrb[0].mxu0 %v4507
        %v4638 = vpop.f32.mrb[0].mxu0
        %v4639 = vadd.f32 0.0, %v4638
        %v4640 = vpop.f32.mrb[0].mxu0
        %4641 = vmatprep.mubr.f32.mxu0 0.0
        %4642 = vmatmul.mubr.f32.gmra.mrb[0].mxu0 %v4510
        %v4643 = vpop.f32.mrb[0].mxu0
        %v4644 = vadd.f32 0.0, %v4643
        %v4645 = vpop.f32.mrb[0].mxu0
        %4646 = vmatprep.mubr.f32.mxu0 0.0
        %4647 = vmatmul.mubr.f32.gmra.mrb[0].mxu0 %v4513
        %v4648 = vpop.f32.mrb[0].mxu0
        %v4649 = vadd.f32 0.0, %v4648
        %v4650 = vpop.f32.mrb[0].mxu0
        %4651 = vmatprep.mubr.f32.mxu0 0.0
        %4652 = vmatmul.mubr.f32.gmra.mrb[0].mxu0 %v4516
        %v4653 = vpop.f32.mrb[0].mxu0
        %v4654 = vadd.f32 0.0, %v4653
        %v4655 = vpop.f32.mrb[0].mxu0
        %4656 = vmatprep.mubr.f32.mxu0 0.0
        %4657 = vmatmul.mubr.f32.gmra.mrb[0].mxu0 %v4519
        %v4658 = vpop.f32.mrb[0].mxu0
        %v4659 = vadd.f32 0.0, %v4658
        %v4660 = vpop.f32.mrb[0].mxu0
        %4661 = vmatprep.mubr.f32.mxu0 0.0
        %4662 = vmatmul.mubr.f32.gmra.mrb[0].mxu0 %v4522
        %v4663 = vpop.f32.mrb[0].mxu0
        %v4664 = vadd.f32 0.0, %v4663
        %v4665 = vpop.f32.mrb[0].mxu0
        %4666 = vmatprep.mubr.f32.mxu0 0.0
        %4667 = vmatmul.mubr.f32.gmra.mrb[0].mxu0 %v4525
        %v4668 = vpop.f32.mrb[0].mxu0
        %v4669 = vadd.f32 0.0, %v4668
        %v4670 = vpop.f32.mrb[0].mxu0
        %4671 = vdwg.mxu0
        %4672 = vmatprep.subr.mxu0 0.0
        %4673 = vmatpush1.msra.mxu0 %v4463
        %4674 = vmatprep.subr.mxu0 0.0
        %4675 = vmatpush1.msra.mxu0 %v4464
        %4676 = vmatprep.subr.mxu0 0.0
        %4677 = vmatpush1.msra.mxu0 %v4465
        %4678 = vmatprep.subr.mxu0 0.0
        %4679 = vmatpush1.msra.mxu0 %v4466
        %4680 = vmatprep.subr.mxu0 0.0
        %4681 = vmatpush1.msra.mxu0 %v4467
        %4682 = vmatprep.subr.mxu0 0.0
        %4683 = vmatpush1.msra.mxu0 %v4468
        %4684 = vmatprep.subr.mxu0 0.0
        %4685 = vmatpush1.msra.mxu0 %v4469
        %4686 = vmatprep.subr.mxu0 0.0
        %4687 = vmatpush1.msra.mxu0 %v4470
        %4688 = vmatprep.subr.mxu0 0.0
        %4689 = vmatpush1.msra.mxu0 0.0
        %4690 = vmatprep.subr.mxu0 0.0
        %4691 = vmatpush1.msra.mxu0 0.0
        %4692 = vmatprep.subr.mxu0 0.0
        %4693 = vmatpush1.msra.mxu0 0.0
        %4694 = vmatprep.subr.mxu0 0.0
        %4695 = vmatpush1.msra.mxu0 0.0
        %4696 = vmatprep.subr.mxu0 0.0
        %4697 = vmatpush1.msra.mxu0 0.0
        %4698 = vmatprep.subr.mxu0 0.0
        %4699 = vmatpush1.msra.mxu0 0.0
        %4700 = vmatprep.subr.mxu0 0.0
        %4701 = vmatpush1.msra.mxu0 0.0
        %4702 = vmatprep.subr.mxu0 0.0
        %4703 = vmatpush1.msra.mxu0 0.0
        %4704 = vmatprep.subr.mxu0 0.0
        %4705 = vmatpush1.msra.mxu0 0.0
        %4706 = vmatprep.subr.mxu0 0.0
        %4707 = vmatpush1.msra.mxu0 0.0
        %4708 = vmatprep.subr.mxu0 0.0
        %4709 = vmatpush1.msra.mxu0 0.0
        %4710 = vmatprep.subr.mxu0 0.0
        %4711 = vmatpush1.msra.mxu0 0.0
        %4712 = vmatprep.subr.mxu0 0.0
        %4713 = vmatpush1.msra.mxu0 0.0
        %4714 = vmatprep.subr.mxu0 0.0
        %4715 = vmatpush1.msra.mxu0 0.0
        %4716 = vmatprep.subr.mxu0 0.0
        %4717 = vmatpush1.msra.mxu0 0.0
        %4718 = vmatprep.subr.mxu0 0.0
        %4719 = vmatpush1.msra.mxu0 0.0
        %4720 = vmatprep.subr.mxu0 0.0
        %4721 = vmatpush1.msra.mxu0 0.0
        %4722 = vmatprep.subr.mxu0 0.0
        %4723 = vmatpush1.msra.mxu0 0.0
        %4724 = vmatprep.subr.mxu0 0.0
        %4725 = vmatpush1.msra.mxu0 0.0
        %4726 = vmatprep.subr.mxu0 0.0
        %4727 = vmatpush1.msra.mxu0 0.0
        %4728 = vmatprep.subr.mxu0 0.0
        %4729 = vmatpush1.msra.mxu0 0.0
        %4730 = vmatprep.subr.mxu0 0.0
        %4731 = vmatpush1.msra.mxu0 0.0
        %4732 = vmatprep.subr.mxu0 0.0
        %4733 = vmatpush1.msra.mxu0 0.0
        %4734 = vmatprep.subr.mxu0 0.0
        %4735 = vmatpush1.msra.mxu0 0.0
        %4736 = vmatprep.mubr.f32.mxu0 0.0
        %4737 = vmatmul.mubr.f32.gmra.mrb[0].mxu0 %v4480
        %v4738 = vpop.f32.mrb[0].mxu0
        %v4739 = vadd.f32 %v4594, %v4738
        %v4740 = vpop.f32.mrb[0].mxu0
        %4741 = vmatprep.mubr.f32.mxu0 0.0
        %4742 = vmatmul.mubr.f32.gmra.mrb[0].mxu0 %v4483
        %v4743 = vpop.f32.mrb[0].mxu0
        %v4744 = vadd.f32 %v4599, %v4743
        %v4745 = vpop.f32.mrb[0].mxu0
        %4746 = vmatprep.mubr.f32.mxu0 0.0
        %4747 = vmatmul.mubr.f32.gmra.mrb[0].mxu0 %v4486
        %v4748 = vpop.f32.mrb[0].mxu0
        %v4749 = vadd.f32 %v4604, %v4748
        %v4750 = vpop.f32.mrb[0].mxu0
        %4751 = vmatprep.mubr.f32.mxu0 0.0
        %4752 = vmatmul.mubr.f32.gmra.mrb[0].mxu0 %v4489
        %v4753 = vpop.f32.mrb[0].mxu0
        %v4754 = vadd.f32 %v4609, %v4753
        %v4755 = vpop.f32.mrb[0].mxu0
        %4756 = vmatprep.mubr.f32.mxu0 0.0
        %4757 = vmatmul.mubr.f32.gmra.mrb[0].mxu0 %v4492
        %v4758 = vpop.f32.mrb[0].mxu0
        %v4759 = vadd.f32 %v4614, %v4758
        %v4760 = vpop.f32.mrb[0].mxu0
        %4761 = vmatprep.mubr.f32.mxu0 0.0
        %4762 = vmatmul.mubr.f32.gmra.mrb[0].mxu0 %v4495
        %v4763 = vpop.f32.mrb[0].mxu0
        %v4764 = vadd.f32 %v4619, %v4763
        %v4765 = vpop.f32.mrb[0].mxu0
        %4766 = vmatprep.mubr.f32.mxu0 0.0
        %4767 = vmatmul.mubr.f32.gmra.mrb[0].mxu0 %v4498
        %v4768 = vpop.f32.mrb[0].mxu0
        %v4769 = vadd.f32 %v4624, %v4768
        %v4770 = vpop.f32.mrb[0].mxu0
        %4771 = vmatprep.mubr.f32.mxu0 0.0
        %4772 = vmatmul.mubr.f32.gmra.mrb[0].mxu0 %v4501
        %v4773 = vpop.f32.mrb[0].mxu0
        %v4774 = vadd.f32 %v4629, %v4773
        %v4775 = vpop.f32.mrb[0].mxu0
        %4776 = vmatprep.mubr.f32.mxu0 0.0
        %4777 = vmatmul.mubr.f32.gmra.mrb[0].mxu0 %v4504
        %v4778 = vpop.f32.mrb[0].mxu0
        %v4779 = vadd.f32 %v4634, %v4778
        %v4780 = vpop.f32.mrb[0].mxu0
        %4781 = vmatprep.mubr.f32.mxu0 0.0
        %4782 = vmatmul.mubr.f32.gmra.mrb[0].mxu0 %v4507
        %v4783 = vpop.f32.mrb[0].mxu0
        %v4784 = vadd.f32 %v4639, %v4783
        %v4785 = vpop.f32.mrb[0].mxu0
        %4786 = vmatprep.mubr.f32.mxu0 0.0
        %4787 = vmatmul.mubr.f32.gmra.mrb[0].mxu0 %v4510
        %v4788 = vpop.f32.mrb[0].mxu0
        %v4789 = vadd.f32 %v4644, %v4788
        %v4790 = vpop.f32.mrb[0].mxu0
        %4791 = vmatprep.mubr.f32.mxu0 0.0
        %4792 = vmatmul.mubr.f32.gmra.mrb[0].mxu0 %v4513
        %v4793 = vpop.f32.mrb[0].mxu0
        %v4794 = vadd.f32 %v4649, %v4793
        %v4795 = vpop.f32.mrb[0].mxu0
        %4796 = vmatprep.mubr.f32.mxu0 0.0
        %4797 = vmatmul.mubr.f32.gmra.mrb[0].mxu0 %v4516
        %v4798 = vpop.f32.mrb[0].mxu0
        %v4799 = vadd.f32 %v4654, %v4798
        %v4800 = vpop.f32.mrb[0].mxu0
        %4801 = vmatprep.mubr.f32.mxu0 0.0
        %4802 = vmatmul.mubr.f32.gmra.mrb[0].mxu0 %v4519
        %v4803 = vpop.f32.mrb[0].mxu0
        %v4804 = vadd.f32 %v4659, %v4803
        %v4805 = vpop.f32.mrb[0].mxu0
        %4806 = vmatprep.mubr.f32.mxu0 0.0
        %4807 = vmatmul.mubr.f32.gmra.mrb[0].mxu0 %v4522
        %v4808 = vpop.f32.mrb[0].mxu0
        %v4809 = vadd.f32 %v4664, %v4808
        %v4810 = vpop.f32.mrb[0].mxu0
        %4811 = vmatprep.mubr.f32.mxu0 0.0
        %4812 = vmatmul.mubr.f32.gmra.mrb[0].mxu0 %v4525
        %v4813 = vpop.f32.mrb[0].mxu0
        %v4814 = vadd.f32 %v4669, %v4813
        %v4815 = vpop.f32.mrb[0].mxu0
        %4816 = vdwg.mxu0
        %v4817 = vadd.f32 %v4365, %v4739
        %v4818 = vadd.f32 %v4370, %v4744
        %v4819 = vadd.f32 %v4375, %v4749
        %v4820 = vadd.f32 %v4380, %v4754
        %v4821 = vadd.f32 %v4385, %v4759
        %v4822 = vadd.f32 %v4390, %v4764
        %v4823 = vadd.f32 %v4395, %v4769
        %v4824 = vadd.f32 %v4400, %v4774
        %v4825 = vadd.f32 %v4405, %v4779
        %v4826 = vadd.f32 %v4410, %v4784
        %v4827 = vadd.f32 %v4415, %v4789
        %v4828 = vadd.f32 %v4420, %v4794
        %v4829 = vadd.f32 %v4425, %v4799
        %v4830 = vadd.f32 %v4430, %v4804
        %v4831 = vadd.f32 %v4435, %v4809
        %v4832 = vadd.f32 %v4440, %v4814
        %vm4833 = vcmask 261120
        %4834 = vst.msk [vmem:[%s435] sm:$0xff] %vm4833, %v4817
        %4835 = vst.msk [vmem:[%s435 + $0x8] sm:$0xff] %vm4833, %v4818
        %4836 = vst.msk [vmem:[%s435 + $0x10] sm:$0xff] %vm4833, %v4819
        %4837 = vst.msk [vmem:[%s435 + $0x18] sm:$0xff] %vm4833, %v4820
        %4838 = vst.msk [vmem:[%s435 + $0x20] sm:$0xff] %vm4833, %v4821
        %4839 = vst.msk [vmem:[%s435 + $0x28] sm:$0xff] %vm4833, %v4822
        %4840 = vst.msk [vmem:[%s435 + $0x30] sm:$0xff] %vm4833, %v4823
        %4841 = vst.msk [vmem:[%s435 + $0x38] sm:$0xff] %vm4833, %v4824
        %4842 = vst.msk [vmem:[%s435 + $0x40] sm:$0xff] %vm4833, %v4825
        %4843 = vst.msk [vmem:[%s435 + $0x48] sm:$0xff] %vm4833, %v4826
        %4844 = vst.msk [vmem:[%s435 + $0x50] sm:$0xff] %vm4833, %v4827
        %4845 = vst.msk [vmem:[%s435 + $0x58] sm:$0xff] %vm4833, %v4828
        %4846 = vst.msk [vmem:[%s435 + $0x60] sm:$0xff] %vm4833, %v4829
        %4847 = vst.msk [vmem:[%s435 + $0x68] sm:$0xff] %vm4833, %v4830
        %4848 = vst.msk [vmem:[%s435 + $0x70] sm:$0xff] %vm4833, %v4831
        %4849 = vst.msk [vmem:[%s435 + $0x78] sm:$0xff] %vm4833, %v4832
        %s4850 = sand.u32 %s268, 1
        %s4851 = scalar_lea.sflag [#allocation3], %s4850
        %s4852 = sand.u32 %s268, 1
        %s4853 = smul.addr %s4852, 128
        %s4854 = scalar_lea.vmem [#allocation2], %s4853
        %p4855 = scmp.lt.s32.totalorder %s26, 1
        %s4856 = scalar_select %p4855, %s26, 1
        %s4857 = smul.addr %s4856, 2
        %s4858 = smul.addr %s4857, 4
        %s4859 = scalar_lea.vmem %s11, %s4858
        // Predicated region
        $region61: #{upfrg3_forward.1} parent=59 // pred_check
          %p4860 = pneg %p278
        $region62: #{upfrg3_forward.1} parent=59 // pred_check_branch
          %4862 = sbr.rel (%p4860) target = $region64
        $region63: #{upfrg3_forward.1} parent=59 // pred_region
          %s4864 = ssub.s32 2048, 2048
          %4865 = vsyncadd %s4851, %s4864
          %s4866 = smul.addr %s26, 16
          %s4867 = smul.addr %s4866, 128
          %s4868 = scalar_lea.hbm %s10, %s4867
          %s4869 = sshll.u32 %s4854, 4
          %s4870 = int_to_ptr.vmem [resolvable:$true] %s4869
          %4875 = dma.vmem_to_hbm [thread:$0]  %s4870, 2048, %s4868, %s4851, 128, 128, 8
        $region64: #{upfrg3_forward.1} parent=59 // pred_fallthru
          _
        // Predicated region
        $region65: #{upfrg3_forward.1} parent=59 // pred_check
          %p4876 = pneg %p304
        $region66: #{upfrg3_forward.1} parent=59 // pred_check_branch
          %4878 = sbr.rel (%p4876) target = $region68
        $region67: #{upfrg3_forward.1} parent=59 // pred_region
          _
        $region68: #{upfrg3_forward.1} parent=59 // pred_fallthru
          _
      $region60: #{upfrg3_forward.1} parent=5 // pred_fallthru
        _
      %p4879 = scmp.le.s32.totalorder 2, %s21
      // Predicated region
      $region69: #{upfrg3_forward.1} parent=5 // pred_check
        %p4880 = pneg %p4879
      $region70: #{upfrg3_forward.1} parent=5 // pred_check_branch
        %4882 = sbr.rel (%p4880) target = $region72
      $region71: #{upfrg3_forward.1} parent=5 // pred_region
        %s4883 = ssub.s32 %s21, 2
        // Predicated region
        $region73: #{upfrg3_forward.1} parent=71 // pred_check
          %p4884 = pneg %p284
        $region74: #{upfrg3_forward.1} parent=71 // pred_check_branch
          %4886 = sbr.rel (%p4884) target = $region76
        $region75: #{upfrg3_forward.1} parent=71 // pred_region
          %s4887 = sand.u32 %s269, 1
          %s4888 = scalar_lea.sflag [#allocation3], %s4887
          %s4889 = sand.u32 %s269, 1
          %s4890 = smul.addr %s4889, 128
          %s4891 = scalar_lea.vmem [#allocation2], %s4890
          %4892 = dma.done %s4888, 2048
        $region76: #{upfrg3_forward.1} parent=71 // pred_fallthru
          _
        // Predicated region
        $region77: #{upfrg3_forward.1} parent=71 // pred_check
          %p4893 = pneg %p310
        $region78: #{upfrg3_forward.1} parent=71 // pred_check_branch
          %4895 = sbr.rel (%p4893) target = $region80
        $region79: #{upfrg3_forward.1} parent=71 // pred_region
          %p4896 = scmp.lt.s32.totalorder %s27, 1
          %s4897 = scalar_select %p4896, %s27, 1
          %s4898 = smul.addr %s4897, 2
          %s4899 = smul.addr %s4898, 4
          %s4900 = scalar_lea.vmem %s11, %s4899
        $region80: #{upfrg3_forward.1} parent=71 // pred_fallthru
          _
      $region72: #{upfrg3_forward.1} parent=5 // pred_fallthru
        _
    $region6: #{upfrg3_forward.1} parent=1 // loop_footer
      %s25 = sadd.s32 1, %s21
    $region7: #{upfrg3_forward.1} parent=1 // loop_footer_branch
      %20 = sbr.rel target = $region3
    $region8: #{upfrg3_forward.1} parent=1 // loop_exit
      _
    %4901 = vsyncpa [#allocation3], 1
    %s4902 = scalar_lea.sflag [#allocation3], 1
    %4903 = vsyncpa %s4902, 1

</llo_original>
